<compile_context>
chip_gen: v6e
topology: v6e:2x2x1
jax: 0.10.0
libtpu: 0.0.40
codegen_flags: <defaults>
</compile_context>

<pallas_src>
import jax
import jax.numpy as jnp
import numpy as np
from jax.experimental import pallas as pl
from jax.experimental.pallas import tpu as pltpu  # noqa: F401  (TPU backend)

# ---- small hyperparameters consistent with the module structure -------------
VOCAB = 65            # vocab_size
V_PAD = 128           # lane-padded logits width
N_EMBD = 64           # n_embd
N_HEAD = 4            # n_head
HEAD = N_EMBD // N_HEAD
N_LAYER = 2           # n_layer
BLOCK_SIZE = 16       # block_size (context length; T == BLOCK_SIZE below)
FF = 4 * N_EMBD
EPS = 1e-5            # nn.LayerNorm default eps

EMB_ROWS = 128        # combined embedding table rows (tok @ 0, pos @ POS_OFF)
POS_OFF = 72          # offset of position-embedding rows (>= VOCAB, mult of 8)
VEC_W = 256           # lane width of the packed gain/bias operand (>= FF)
LOG2_T = BLOCK_SIZE.bit_length() - 1
assert BLOCK_SIZE == (1 << LOG2_T)


# =============================== kernel ======================================
def _layernorm(z, g, b):
    mu = jnp.mean(z, axis=-1, keepdims=True)
    var = jnp.mean((z - mu) ** 2, axis=-1, keepdims=True)
    return (z - mu) * jax.lax.rsqrt(var + EPS) * g + b


def _gpt_kernel(idx_ref, emb_ref, wqkv_ref, wp_ref, w1_ref, w2_ref, lmw_ref,
                vecs_ref, o_ref):
    """Whole GPT forward: token ids (R, 1) -> lane-padded logits (R, V_PAD)."""
    R = idx_ref.shape[0]                 # R = B * T (batch folded into rows)
    C, D, T = N_EMBD, HEAD, BLOCK_SIZE

    def vrow(i, n):                      # one packed gain/bias row -> (1, n)
        return vecs_ref[i:i + 1, :n]

    # ---- embeddings: two-hot row selector @ combined (tok | pos) table -----
    col = jax.lax.broadcasted_iota(jnp.int32, (R, EMB_ROWS), 1)
    row = jax.lax.broadcasted_iota(jnp.int32, (R, EMB_ROWS), 0)
    pos_id = (row & (T - 1)) + POS_OFF                      # position of row r
    hot = jnp.logical_or(col == idx_ref[...], col == pos_id).astype(jnp.float32)
    x = jnp.dot(hot, emb_ref[...], preferred_element_type=jnp.float32)  # (R, C)

    # ---- block-diagonal causal mask over folded (batch*time) rows ----------
    r_i = jax.lax.broadcasted_iota(jnp.int32, (R, R), 0)
    s_i = jax.lax.broadcasted_iota(jnp.int32, (R, R), 1)
    ok = jnp.logical_and(s_i <= r_i, (r_i >> LOG2_T) == (s_i >> LOG2_T))
    neg_mask = jnp.where(ok, 0.0, -1e30).astype(jnp.float32)            # (R, R)

    for l in range(N_LAYER):             # static unroll; weights resident in VMEM
        base = 7 * l
        ln1_g, ln1_b = vrow(base + 0, C), vrow(base + 1, C)
        bp = vrow(base + 2, C)
        ln2_g, ln2_b = vrow(base + 3, C), vrow(base + 4, C)
        b1, b2 = vrow(base + 5, FF), vrow(base + 6, C)

        # ---------------- self-attention branch ----------------
        xn = _layernorm(x, ln1_g, ln1_b)                                 # (R, C)
        xnh = jnp.broadcast_to(xn.astype(jnp.bfloat16)[None],
                               (N_HEAD, R, C))                           # (H, R, C)
        # fused per-head QKV projection (q columns pre-scaled by n_embd**-0.5)
        qkv = jnp.einsum('hrc,hcy->hry', xnh, wqkv_ref[l],
                         preferred_element_type=jnp.float32)             # (H, R, 3D)
        q = qkv[..., 0:D]
        k = qkv[..., D:2 * D]
        v = qkv[..., 2 * D:3 * D]

        s = jnp.einsum('hrd,hsd->hrs', q, k,
                       preferred_element_type=jnp.float32)               # (H, R, R)
        s = s + neg_mask[None]
        s = s - jnp.max(s, axis=-1, keepdims=True)
        p = jnp.exp(s)
        p = p * pl.reciprocal(jnp.sum(p, axis=-1, keepdims=True), approx=True)
        # TODO(synk): attention / residual / MLP dropout omitted (eval mode).

        oh = jnp.einsum('hrs,hsd->hrd', p, v,
                        preferred_element_type=jnp.float32)              # (H, R, D)
        proj = jnp.einsum('hrd,hdc->hrc', oh.astype(jnp.bfloat16), wp_ref[l],
                          preferred_element_type=jnp.float32)            # (H, R, C)
        x = x + jnp.sum(proj, axis=0) + bp

        # ---------------- feed-forward branch ----------------
        xn2 = _layernorm(x, ln2_g, ln2_b)
        h = jnp.dot(xn2.astype(jnp.bfloat16), w1_ref[l],
                    preferred_element_type=jnp.float32) + b1             # (R, FF)
        h = jnp.maximum(h, 0.0)
        x = x + jnp.dot(h.astype(jnp.bfloat16), w2_ref[l],
                        preferred_element_type=jnp.float32) + b2

    # ---------------- final LayerNorm + lm_head (lane-padded) ----------------
    fb = 7 * N_LAYER
    xf = _layernorm(x, vrow(fb + 0, C), vrow(fb + 1, C))
    o_ref[...] = (jnp.dot(xf.astype(jnp.bfloat16), lmw_ref[...],
                          preferred_element_type=jnp.float32)
                  + vrow(fb + 2, V_PAD))


# ============================ pallas wrapper ==================================
@jax.jit
def gpt_forward(idx, kp):
    """GPT.forward with targets=None -> logits of shape (B, T, VOCAB)."""
    B, T = idx.shape
    assert T == BLOCK_SIZE, "kernel bakes T=BLOCK_SIZE into mask/positions"
    R = B * T
    idx_col = idx.reshape(R, 1).astype(jnp.int32)   # layout-only reshape

    logits_pad = pl.pallas_call(
        _gpt_kernel,
        out_shape=jax.ShapeDtypeStruct((R, V_PAD), jnp.float32),
        # no grid: single invocation, all operands fully resident in VMEM
    )(idx_col, kp["emb"], kp["wqkv"], kp["wp"], kp["w1"], kp["w2"],
      kp["lm_w"], kp["vecs"])

    return logits_pad[:, :VOCAB].reshape(B, T, VOCAB)
    # TODO(synk): cross-entropy loss branch (targets != None) and generate()
    # (host-side multinomial sampling loop) are not part of the kernel path.


# ============================== parameters ====================================
def init_params(key):
    """Canonical (PyTorch-layout-equivalent) parameters; weights stored (in, out)."""
    def nrm(k, shape, scale=0.02):
        return (scale * jax.random.normal(k, shape)).astype(jnp.float32)

    keys = iter(jax.random.split(key, 8 + 8 * N_LAYER))
    params = {
        "tok_emb": nrm(next(keys), (VOCAB, N_EMBD), 1.0),
        "pos_emb": nrm(next(keys), (BLOCK_SIZE, N_EMBD), 1.0),
        "lnf_g": jnp.ones((1, N_EMBD), jnp.float32),
        "lnf_b": jnp.zeros((1, N_EMBD), jnp.float32),
        "lm_w": nrm(next(keys), (N_EMBD, VOCAB)),
        "lm_b": jnp.zeros((1, VOCAB), jnp.float32),
        "blocks": [],
    }
    for _ in range(N_LAYER):
        params["blocks"].append({
            "ln1_g": jnp.ones((1, N_EMBD), jnp.float32),
            "ln1_b": jnp.zeros((1, N_EMBD), jnp.float32),
            "wq": nrm(next(keys), (N_EMBD, N_EMBD)),
            "wk": nrm(next(keys), (N_EMBD, N_EMBD)),
            "wv": nrm(next(keys), (N_EMBD, N_EMBD)),
            "wp": nrm(next(keys), (N_EMBD, N_EMBD)),
            "bp": jnp.zeros((1, N_EMBD), jnp.float32),
            "ln2_g": jnp.ones((1, N_EMBD), jnp.float32),
            "ln2_b": jnp.zeros((1, N_EMBD), jnp.float32),
            "w1": nrm(next(keys), (N_EMBD, FF)),
            "b1": jnp.zeros((1, FF), jnp.float32),
            "w2": nrm(next(keys), (FF, N_EMBD)),
            "b2": jnp.zeros((1, N_EMBD), jnp.float32),
        })
    return params


def prepare_kernel_params(params):
    """Repack canonical params into the kernel layout:
       * fused, pre-scaled per-head QKV weights (L, H, C, 3*HEAD) in bf16,
       * per-head output-projection weights (L, H, HEAD, C) in bf16,
       * FFN / lm_head weights in bf16 (lm_head lane-padded to 128),
       * combined tok/pos embedding table (128, C) in f32,
       * all gains/biases packed into one (7*L+3, 256) f32 array."""
    blocks = params["blocks"]
    scale = float(N_EMBD) ** -0.5        # torch Head scales by n_embd**-0.5

    wqkv = jnp.stack([
        jnp.stack([
            jnp.concatenate(
                [blk["wq"][:, h * HEAD:(h + 1) * HEAD] * scale,
                 blk["wk"][:, h * HEAD:(h + 1) * HEAD],
                 blk["wv"][:, h * HEAD:(h + 1) * HEAD]], axis=1)     # (C, 3*HEAD)
            for h in range(N_HEAD)])
        for blk in blocks]).astype(jnp.bfloat16)                     # (L,H,C,3D)

    wp = jnp.stack([blk["wp"].reshape(N_HEAD, HEAD, N_EMBD)
                    for blk in blocks]).astype(jnp.bfloat16)         # (L,H,D,C)
    w1 = jnp.stack([blk["w1"] for blk in blocks]).astype(jnp.bfloat16)  # (L,C,FF)
    w2 = jnp.stack([blk["w2"] for blk in blocks]).astype(jnp.bfloat16)  # (L,FF,C)
    lm_w = jnp.pad(params["lm_w"],
                   ((0, 0), (0, V_PAD - VOCAB))).astype(jnp.bfloat16)   # (C,128)

    emb = jnp.zeros((EMB_ROWS, N_EMBD), jnp.float32)
    emb = emb.at[:VOCAB].set(params["tok_emb"])
    emb = emb.at[POS_OFF:POS_OFF + BLOCK_SIZE].set(params["pos_emb"])

    def vec_row(v):
        v = v.reshape(-1).astype(jnp.float32)
        return jnp.pad(v, (0, VEC_W - v.shape[0]))

    rows = []
    for blk in blocks:
        rows += [vec_row(blk["ln1_g"]), vec_row(blk["ln1_b"]), vec_row(blk["bp"]),
                 vec_row(blk["ln2_g"]), vec_row(blk["ln2_b"]),
                 vec_row(blk["b1"]), vec_row(blk["b2"])]
    rows += [vec_row(params["lnf_g"]), vec_row(params["lnf_b"]),
             vec_row(params["lm_b"])]
    vecs = jnp.stack(rows)                                            # (7L+3, 256)

    return {"emb": emb, "wqkv": wqkv, "wp": wp, "w1": w1, "w2": w2,
            "lm_w": lm_w, "vecs": vecs}


# ========================= pure-JAX reference (checking) ======================
def ref_forward(idx, params):
    B, T = idx.shape
    x = jnp.take(params["tok_emb"], idx, axis=0) + params["pos_emb"][:T][None]

    def ln(z, g, b):
        mu = jnp.mean(z, axis=-1, keepdims=True)
        var = jnp.mean((z - mu) ** 2, axis=-1, keepdims=True)
        return (z - mu) * jax.lax.rsqrt(var + EPS) * g + b

    causal = jnp.tril(jnp.ones((T, T), bool))
    for bp in params["blocks"]:
        xn = ln(x, bp["ln1_g"], bp["ln1_b"])
        q, k, v = xn @ bp["wq"], xn @ bp["wk"], xn @ bp["wv"]
        heads = []
        for h in range(N_HEAD):
            lo, hi = h * HEAD, (h + 1) * HEAD
            wei = (q[..., lo:hi] @ jnp.swapaxes(k[..., lo:hi], -1, -2)) * (N_EMBD ** -0.5)
            wei = jnp.where(causal, wei, -jnp.inf)
            wei = jax.nn.softmax(wei, axis=-1)
            heads.append(wei @ v[..., lo:hi])
        att = jnp.concatenate(heads, axis=-1) @ bp["wp"] + bp["bp"]
        x = x + att
        xn2 = ln(x, bp["ln2_g"], bp["ln2_b"])
        ff = jnp.maximum(xn2 @ bp["w1"] + bp["b1"], 0.0) @ bp["w2"] + bp["b2"]
        x = x + ff
    x = ln(x, params["lnf_g"], params["lnf_b"])
    return x @ params["lm_w"] + params["lm_b"]


# ================================== main ======================================
if __name__ == "__main__":
    key = jax.random.PRNGKey(0)
    k_idx, k_par = jax.random.split(key)

    B, T = 2, BLOCK_SIZE
    idx = jax.random.randint(k_idx, (B, T), 0, VOCAB, dtype=jnp.int32)
    params = init_params(k_par)
    kparams = prepare_kernel_params(params)

    logits = gpt_forward(idx, kparams)
    logits = jax.block_until_ready(logits)

    assert logits.shape == (B, T, VOCAB), logits.shape
    ref = ref_forward(idx, params)
    np.testing.assert_allclose(np.asarray(logits), np.asarray(ref),
                               atol=2e-2, rtol=2e-2)
    print("KERNEL_OK")
</pallas_src>

<mosaic_0001>
module attributes {stable_mosaic.version = 11 : i64} {
  func.func @_gpt_kernel(%arg0: memref<32x1xi32, #tpu.memory_space<vmem>>, %arg1: memref<128x64xf32, #tpu.memory_space<vmem>>, %arg2: memref<2x4x64x48xbf16, #tpu.memory_space<vmem>>, %arg3: memref<2x4x16x64xbf16, #tpu.memory_space<vmem>>, %arg4: memref<2x64x256xbf16, #tpu.memory_space<vmem>>, %arg5: memref<2x256x64xbf16, #tpu.memory_space<vmem>>, %arg6: memref<64x128xbf16, #tpu.memory_space<vmem>>, %arg7: memref<17x256xf32, #tpu.memory_space<vmem>>, %arg8: memref<32x128xf32, #tpu.memory_space<vmem>>) attributes {dimension_semantics = [], scalar_prefetch = 0 : i64, scratch_operands = 0 : i64, tpu.core_type = #tpu.core_type<tc>} {
    %0 = tpu.iota {dimensions = array<i32: 1>} : vector<32x128xi32>
    %1 = tpu.iota {dimensions = array<i32: 0>} : vector<32x128xi32>
    %c15_i32 = arith.constant 15 : i32
    %2 = vector.broadcast %c15_i32 : i32 to vector<32x128xi32>
    %3 = arith.andi %1, %2 : vector<32x128xi32>
    %c72_i32 = arith.constant 72 : i32
    %4 = vector.broadcast %c72_i32 : i32 to vector<32x128xi32>
    %5 = arith.addi %3, %4 : vector<32x128xi32>
    %c0 = arith.constant 0 : index
    %c0_0 = arith.constant 0 : index
    %6 = vector.load %arg0[%c0, %c0_0] : memref<32x1xi32, #tpu.memory_space<vmem>>, vector<32x1xi32>
    %7 = vector.broadcast %6 : vector<32x1xi32> to vector<32x128xi32>
    %8 = arith.cmpi eq, %0, %7 : vector<32x128xi32>
    %9 = arith.cmpi eq, %0, %5 : vector<32x128xi32>
    %10 = arith.ori %8, %9 : vector<32x128xi1>
    %11 = arith.extui %10 : vector<32x128xi1> to vector<32x128xi32>
    %12 = arith.sitofp %11 : vector<32x128xi32> to vector<32x128xf32>
    %c0_1 = arith.constant 0 : index
    %c0_2 = arith.constant 0 : index
    %13 = vector.load %arg1[%c0_1, %c0_2] : memref<128x64xf32, #tpu.memory_space<vmem>>, vector<128x64xf32>
    %cst = arith.constant dense<0.000000e+00> : vector<32x64xf32>
    %14 = tpu.matmul %12, %13, %cst {dimension_numbers = #tpu.dot_dimension_numbers<[1], [0], [0], [1], [0, 0, 1, 1], [], []>} : vector<32x128xf32>, vector<128x64xf32>, vector<32x64xf32> -> vector<32x64xf32>
    %15 = tpu.iota {dimensions = array<i32: 0>} : vector<32x32xi32>
    %16 = tpu.iota {dimensions = array<i32: 1>} : vector<32x32xi32>
    %17 = arith.cmpi sle, %16, %15 : vector<32x32xi32>
    %c4_i32 = arith.constant 4 : i32
    %18 = vector.broadcast %c4_i32 : i32 to vector<32x32xi32>
    %19 = arith.shrsi %15, %18 : vector<32x32xi32>
    %c4_i32_3 = arith.constant 4 : i32
    %20 = vector.broadcast %c4_i32_3 : i32 to vector<32x32xi32>
    %21 = arith.shrsi %16, %20 : vector<32x32xi32>
    %22 = arith.cmpi eq, %19, %21 : vector<32x32xi32>
    %23 = arith.andi %17, %22 : vector<32x32xi1>
    %cst_4 = arith.constant 0.000000e+00 : f32
    %cst_5 = arith.constant -1.000000e+30 : f32
    %24 = vector.broadcast %cst_4 : f32 to vector<32x32xf32>
    %25 = vector.broadcast %cst_5 : f32 to vector<32x32xf32>
    %26 = arith.select %23, %24, %25 : vector<32x32xi1>, vector<32x32xf32>
    %c0_6 = arith.constant 0 : index
    %c0_7 = arith.constant 0 : index
    %27 = vector.load %arg7[%c0_6, %c0_7] : memref<17x256xf32, #tpu.memory_space<vmem>>, vector<1x64xf32>
    %c1 = arith.constant 1 : index
    %c0_8 = arith.constant 0 : index
    %28 = vector.load %arg7[%c1, %c0_8] : memref<17x256xf32, #tpu.memory_space<vmem>>, vector<1x64xf32>
    %c2 = arith.constant 2 : index
    %c0_9 = arith.constant 0 : index
    %29 = vector.load %arg7[%c2, %c0_9] : memref<17x256xf32, #tpu.memory_space<vmem>>, vector<1x64xf32>
    %c3 = arith.constant 3 : index
    %c0_10 = arith.constant 0 : index
    %30 = vector.load %arg7[%c3, %c0_10] : memref<17x256xf32, #tpu.memory_space<vmem>>, vector<1x64xf32>
    %c4 = arith.constant 4 : index
    %c0_11 = arith.constant 0 : index
    %31 = vector.load %arg7[%c4, %c0_11] : memref<17x256xf32, #tpu.memory_space<vmem>>, vector<1x64xf32>
    %c5 = arith.constant 5 : index
    %c0_12 = arith.constant 0 : index
    %32 = vector.load %arg7[%c5, %c0_12] : memref<17x256xf32, #tpu.memory_space<vmem>>, vector<1x256xf32>
    %c6 = arith.constant 6 : index
    %c0_13 = arith.constant 0 : index
    %33 = vector.load %arg7[%c6, %c0_13] : memref<17x256xf32, #tpu.memory_space<vmem>>, vector<1x64xf32>
    %cst_14 = arith.constant dense<0.000000e+00> : vector<32xf32>
    %34 = vector.multi_reduction <add>, %14, %cst_14 [1] : vector<32x64xf32> to vector<32xf32>
    %35 = vector.shape_cast %34 : vector<32xf32> to vector<32x1xf32>
    %cst_15 = arith.constant 6.400000e+01 : f32
    %36 = vector.broadcast %cst_15 : f32 to vector<32x1xf32>
    %37 = arith.divf %35, %36 : vector<32x1xf32>
    %38 = vector.broadcast %37 : vector<32x1xf32> to vector<32x64xf32>
    %39 = arith.subf %14, %38 : vector<32x64xf32>
    %40 = arith.mulf %39, %39 : vector<32x64xf32>
    %cst_16 = arith.constant dense<0.000000e+00> : vector<32xf32>
    %41 = vector.multi_reduction <add>, %40, %cst_16 [1] : vector<32x64xf32> to vector<32xf32>
    %42 = vector.shape_cast %41 : vector<32xf32> to vector<32x1xf32>
    %cst_17 = arith.constant 6.400000e+01 : f32
    %43 = vector.broadcast %cst_17 : f32 to vector<32x1xf32>
    %44 = arith.divf %42, %43 : vector<32x1xf32>
    %45 = vector.broadcast %37 : vector<32x1xf32> to vector<32x64xf32>
    %46 = arith.subf %14, %45 : vector<32x64xf32>
    %cst_18 = arith.constant 9.99999974E-6 : f32
    %47 = vector.broadcast %cst_18 : f32 to vector<32x1xf32>
    %48 = arith.addf %44, %47 : vector<32x1xf32>
    %49 = math.rsqrt %48 : vector<32x1xf32>
    %50 = vector.broadcast %49 : vector<32x1xf32> to vector<32x64xf32>
    %51 = arith.mulf %46, %50 : vector<32x64xf32>
    %52 = vector.broadcast %27 : vector<1x64xf32> to vector<32x64xf32>
    %53 = arith.mulf %51, %52 : vector<32x64xf32>
    %54 = vector.broadcast %28 : vector<1x64xf32> to vector<32x64xf32>
    %55 = arith.addf %53, %54 : vector<32x64xf32>
    %56 = arith.truncf %55 : vector<32x64xf32> to vector<32x64xbf16>
    %57 = vector.shape_cast %56 : vector<32x64xbf16> to vector<1x32x64xbf16>
    %58 = vector.shape_cast %57 : vector<1x32x64xbf16> to vector<1x32x64xbf16>
    %59 = vector.broadcast %58 : vector<1x32x64xbf16> to vector<4x32x64xbf16>
    %c0_19 = arith.constant 0 : index
    %c0_20 = arith.constant 0 : index
    %c0_21 = arith.constant 0 : index
    %c0_22 = arith.constant 0 : index
    %60 = vector.load %arg2[%c0_19, %c0_20, %c0_21, %c0_22] : memref<2x4x64x48xbf16, #tpu.memory_space<vmem>>, vector<1x4x64x48xbf16>
    %61 = vector.shape_cast %60 : vector<1x4x64x48xbf16> to vector<4x64x48xbf16>
    "tpu.trace_start"() <{level = 10 : i32, message = "hrc,hcy->hry"}> : () -> ()
    %cst_23 = arith.constant dense<0.000000e+00> : vector<4x32x48xf32>
    %62 = tpu.matmul %59, %61, %cst_23 {dimension_numbers = #tpu.dot_dimension_numbers<[2], [1], [1], [2], [0, 0, 0, 1, 1, 2], [0], [0]>} : vector<4x32x64xbf16>, vector<4x64x48xbf16>, vector<4x32x48xf32> -> vector<4x32x48xf32>
    "tpu.trace_stop"() : () -> ()
    %63 = vector.extract_strided_slice %62 {offsets = [0, 0, 0], sizes = [4, 32, 16], strides = [1, 1, 1]} : vector<4x32x48xf32> to vector<4x32x16xf32>
    %64 = vector.extract_strided_slice %62 {offsets = [0, 0, 16], sizes = [4, 32, 16], strides = [1, 1, 1]} : vector<4x32x48xf32> to vector<4x32x16xf32>
    %65 = vector.extract_strided_slice %62 {offsets = [0, 0, 32], sizes = [4, 32, 16], strides = [1, 1, 1]} : vector<4x32x48xf32> to vector<4x32x16xf32>
    "tpu.trace_start"() <{level = 10 : i32, message = "hrd,hsd->hrs"}> : () -> ()
    %cst_24 = arith.constant dense<0.000000e+00> : vector<4x32x32xf32>
    %66 = tpu.matmul %63, %64, %cst_24 {dimension_numbers = #tpu.dot_dimension_numbers<[2], [2], [1], [1], [0, 0, 0, 1, 1, 1], [0], [0]>} : vector<4x32x16xf32>, vector<4x32x16xf32>, vector<4x32x32xf32> -> vector<4x32x32xf32>
    "tpu.trace_stop"() : () -> ()
    %67 = vector.shape_cast %26 : vector<32x32xf32> to vector<1x32x32xf32>
    %68 = vector.broadcast %67 : vector<1x32x32xf32> to vector<4x32x32xf32>
    %69 = arith.addf %66, %68 : vector<4x32x32xf32>
    %cst_25 = arith.constant dense<0xFF800000> : vector<4x32xf32>
    %70 = vector.multi_reduction <maximumf>, %69, %cst_25 [2] : vector<4x32x32xf32> to vector<4x32xf32>
    %71 = vector.shape_cast %70 : vector<4x32xf32> to vector<4x32x1xf32>
    %72 = vector.broadcast %71 : vector<4x32x1xf32> to vector<4x32x32xf32>
    %73 = arith.subf %69, %72 : vector<4x32x32xf32>
    %74 = math.exp %73 : vector<4x32x32xf32>
    %cst_26 = arith.constant dense<0.000000e+00> : vector<4x32xf32>
    %75 = vector.multi_reduction <add>, %74, %cst_26 [2] : vector<4x32x32xf32> to vector<4x32xf32>
    %76 = vector.shape_cast %75 : vector<4x32xf32> to vector<4x32x1xf32>
    %77 = tpu.reciprocal %76 {approx = true} : vector<4x32x1xf32> -> vector<4x32x1xf32>
    %78 = vector.broadcast %77 : vector<4x32x1xf32> to vector<4x32x32xf32>
    %79 = arith.mulf %74, %78 : vector<4x32x32xf32>
    "tpu.trace_start"() <{level = 10 : i32, message = "hrs,hsd->hrd"}> : () -> ()
    %cst_27 = arith.constant dense<0.000000e+00> : vector<4x32x16xf32>
    %80 = tpu.matmul %79, %65, %cst_27 {dimension_numbers = #tpu.dot_dimension_numbers<[2], [1], [1], [2], [0, 0, 0, 1, 1, 2], [0], [0]>} : vector<4x32x32xf32>, vector<4x32x16xf32>, vector<4x32x16xf32> -> vector<4x32x16xf32>
    "tpu.trace_stop"() : () -> ()
    %81 = arith.truncf %80 : vector<4x32x16xf32> to vector<4x32x16xbf16>
    %c0_28 = arith.constant 0 : index
    %c0_29 = arith.constant 0 : index
    %c0_30 = arith.constant 0 : index
    %c0_31 = arith.constant 0 : index
    %82 = vector.load %arg3[%c0_28, %c0_29, %c0_30, %c0_31] : memref<2x4x16x64xbf16, #tpu.memory_space<vmem>>, vector<1x4x16x64xbf16>
    %83 = vector.shape_cast %82 : vector<1x4x16x64xbf16> to vector<4x16x64xbf16>
    "tpu.trace_start"() <{level = 10 : i32, message = "hrd,hdc->hrc"}> : () -> ()
    %cst_32 = arith.constant dense<0.000000e+00> : vector<4x32x64xf32>
    %84 = tpu.matmul %81, %83, %cst_32 {dimension_numbers = #tpu.dot_dimension_numbers<[2], [1], [1], [2], [0, 0, 0, 1, 1, 2], [0], [0]>} : vector<4x32x16xbf16>, vector<4x16x64xbf16>, vector<4x32x64xf32> -> vector<4x32x64xf32>
    "tpu.trace_stop"() : () -> ()
    %cst_33 = arith.constant dense<0.000000e+00> : vector<32x64xf32>
    %85 = vector.multi_reduction <add>, %84, %cst_33 [0] : vector<4x32x64xf32> to vector<32x64xf32>
    %86 = arith.addf %14, %85 : vector<32x64xf32>
    %87 = vector.broadcast %29 : vector<1x64xf32> to vector<32x64xf32>
    %88 = arith.addf %86, %87 : vector<32x64xf32>
    %cst_34 = arith.constant dense<0.000000e+00> : vector<32xf32>
    %89 = vector.multi_reduction <add>, %88, %cst_34 [1] : vector<32x64xf32> to vector<32xf32>
    %90 = vector.shape_cast %89 : vector<32xf32> to vector<32x1xf32>
    %cst_35 = arith.constant 6.400000e+01 : f32
    %91 = vector.broadcast %cst_35 : f32 to vector<32x1xf32>
    %92 = arith.divf %90, %91 : vector<32x1xf32>
    %93 = vector.broadcast %92 : vector<32x1xf32> to vector<32x64xf32>
    %94 = arith.subf %88, %93 : vector<32x64xf32>
    %95 = arith.mulf %94, %94 : vector<32x64xf32>
    %cst_36 = arith.constant dense<0.000000e+00> : vector<32xf32>
    %96 = vector.multi_reduction <add>, %95, %cst_36 [1] : vector<32x64xf32> to vector<32xf32>
    %97 = vector.shape_cast %96 : vector<32xf32> to vector<32x1xf32>
    %cst_37 = arith.constant 6.400000e+01 : f32
    %98 = vector.broadcast %cst_37 : f32 to vector<32x1xf32>
    %99 = arith.divf %97, %98 : vector<32x1xf32>
    %100 = vector.broadcast %92 : vector<32x1xf32> to vector<32x64xf32>
    %101 = arith.subf %88, %100 : vector<32x64xf32>
    %cst_38 = arith.constant 9.99999974E-6 : f32
    %102 = vector.broadcast %cst_38 : f32 to vector<32x1xf32>
    %103 = arith.addf %99, %102 : vector<32x1xf32>
    %104 = math.rsqrt %103 : vector<32x1xf32>
    %105 = vector.broadcast %104 : vector<32x1xf32> to vector<32x64xf32>
    %106 = arith.mulf %101, %105 : vector<32x64xf32>
    %107 = vector.broadcast %30 : vector<1x64xf32> to vector<32x64xf32>
    %108 = arith.mulf %106, %107 : vector<32x64xf32>
    %109 = vector.broadcast %31 : vector<1x64xf32> to vector<32x64xf32>
    %110 = arith.addf %108, %109 : vector<32x64xf32>
    %111 = arith.truncf %110 : vector<32x64xf32> to vector<32x64xbf16>
    %c0_39 = arith.constant 0 : index
    %c0_40 = arith.constant 0 : index
    %c0_41 = arith.constant 0 : index
    %112 = vector.load %arg4[%c0_39, %c0_40, %c0_41] : memref<2x64x256xbf16, #tpu.memory_space<vmem>>, vector<1x64x256xbf16>
    %113 = vector.shape_cast %112 : vector<1x64x256xbf16> to vector<64x256xbf16>
    %cst_42 = arith.constant dense<0.000000e+00> : vector<32x256xf32>
    %114 = tpu.matmul %111, %113, %cst_42 {dimension_numbers = #tpu.dot_dimension_numbers<[1], [0], [0], [1], [0, 0, 1, 1], [], []>} : vector<32x64xbf16>, vector<64x256xbf16>, vector<32x256xf32> -> vector<32x256xf32>
    %115 = vector.broadcast %32 : vector<1x256xf32> to vector<32x256xf32>
    %116 = arith.addf %114, %115 : vector<32x256xf32>
    %cst_43 = arith.constant 0.000000e+00 : f32
    %117 = vector.broadcast %cst_43 : f32 to vector<32x256xf32>
    %118 = arith.maximumf %116, %117 : vector<32x256xf32>
    %119 = arith.truncf %118 : vector<32x256xf32> to vector<32x256xbf16>
    %c0_44 = arith.constant 0 : index
    %c0_45 = arith.constant 0 : index
    %c0_46 = arith.constant 0 : index
    %120 = vector.load %arg5[%c0_44, %c0_45, %c0_46] : memref<2x256x64xbf16, #tpu.memory_space<vmem>>, vector<1x256x64xbf16>
    %121 = vector.shape_cast %120 : vector<1x256x64xbf16> to vector<256x64xbf16>
    %cst_47 = arith.constant dense<0.000000e+00> : vector<32x64xf32>
    %122 = tpu.matmul %119, %121, %cst_47 {dimension_numbers = #tpu.dot_dimension_numbers<[1], [0], [0], [1], [0, 0, 1, 1], [], []>} : vector<32x256xbf16>, vector<256x64xbf16>, vector<32x64xf32> -> vector<32x64xf32>
    %123 = arith.addf %88, %122 : vector<32x64xf32>
    %124 = vector.broadcast %33 : vector<1x64xf32> to vector<32x64xf32>
    %125 = arith.addf %123, %124 : vector<32x64xf32>
    %c7 = arith.constant 7 : index
    %c0_48 = arith.constant 0 : index
    %126 = vector.load %arg7[%c7, %c0_48] : memref<17x256xf32, #tpu.memory_space<vmem>>, vector<1x64xf32>
    %c8 = arith.constant 8 : index
    %c0_49 = arith.constant 0 : index
    %127 = vector.load %arg7[%c8, %c0_49] : memref<17x256xf32, #tpu.memory_space<vmem>>, vector<1x64xf32>
    %c9 = arith.constant 9 : index
    %c0_50 = arith.constant 0 : index
    %128 = vector.load %arg7[%c9, %c0_50] : memref<17x256xf32, #tpu.memory_space<vmem>>, vector<1x64xf32>
    %c10 = arith.constant 10 : index
    %c0_51 = arith.constant 0 : index
    %129 = vector.load %arg7[%c10, %c0_51] : memref<17x256xf32, #tpu.memory_space<vmem>>, vector<1x64xf32>
    %c11 = arith.constant 11 : index
    %c0_52 = arith.constant 0 : index
    %130 = vector.load %arg7[%c11, %c0_52] : memref<17x256xf32, #tpu.memory_space<vmem>>, vector<1x64xf32>
    %c12 = arith.constant 12 : index
    %c0_53 = arith.constant 0 : index
    %131 = vector.load %arg7[%c12, %c0_53] : memref<17x256xf32, #tpu.memory_space<vmem>>, vector<1x256xf32>
    %c13 = arith.constant 13 : index
    %c0_54 = arith.constant 0 : index
    %132 = vector.load %arg7[%c13, %c0_54] : memref<17x256xf32, #tpu.memory_space<vmem>>, vector<1x64xf32>
    %cst_55 = arith.constant dense<0.000000e+00> : vector<32xf32>
    %133 = vector.multi_reduction <add>, %125, %cst_55 [1] : vector<32x64xf32> to vector<32xf32>
    %134 = vector.shape_cast %133 : vector<32xf32> to vector<32x1xf32>
    %cst_56 = arith.constant 6.400000e+01 : f32
    %135 = vector.broadcast %cst_56 : f32 to vector<32x1xf32>
    %136 = arith.divf %134, %135 : vector<32x1xf32>
    %137 = vector.broadcast %136 : vector<32x1xf32> to vector<32x64xf32>
    %138 = arith.subf %125, %137 : vector<32x64xf32>
    %139 = arith.mulf %138, %138 : vector<32x64xf32>
    %cst_57 = arith.constant dense<0.000000e+00> : vector<32xf32>
    %140 = vector.multi_reduction <add>, %139, %cst_57 [1] : vector<32x64xf32> to vector<32xf32>
    %141 = vector.shape_cast %140 : vector<32xf32> to vector<32x1xf32>
    %cst_58 = arith.constant 6.400000e+01 : f32
    %142 = vector.broadcast %cst_58 : f32 to vector<32x1xf32>
    %143 = arith.divf %141, %142 : vector<32x1xf32>
    %144 = vector.broadcast %136 : vector<32x1xf32> to vector<32x64xf32>
    %145 = arith.subf %125, %144 : vector<32x64xf32>
    %cst_59 = arith.constant 9.99999974E-6 : f32
    %146 = vector.broadcast %cst_59 : f32 to vector<32x1xf32>
    %147 = arith.addf %143, %146 : vector<32x1xf32>
    %148 = math.rsqrt %147 : vector<32x1xf32>
    %149 = vector.broadcast %148 : vector<32x1xf32> to vector<32x64xf32>
    %150 = arith.mulf %145, %149 : vector<32x64xf32>
    %151 = vector.broadcast %126 : vector<1x64xf32> to vector<32x64xf32>
    %152 = arith.mulf %150, %151 : vector<32x64xf32>
    %153 = vector.broadcast %127 : vector<1x64xf32> to vector<32x64xf32>
    %154 = arith.addf %152, %153 : vector<32x64xf32>
    %155 = arith.truncf %154 : vector<32x64xf32> to vector<32x64xbf16>
    %156 = vector.shape_cast %155 : vector<32x64xbf16> to vector<1x32x64xbf16>
    %157 = vector.shape_cast %156 : vector<1x32x64xbf16> to vector<1x32x64xbf16>
    %158 = vector.broadcast %157 : vector<1x32x64xbf16> to vector<4x32x64xbf16>
    %c1_60 = arith.constant 1 : index
    %c0_61 = arith.constant 0 : index
    %c0_62 = arith.constant 0 : index
    %c0_63 = arith.constant 0 : index
    %159 = vector.load %arg2[%c1_60, %c0_61, %c0_62, %c0_63] : memref<2x4x64x48xbf16, #tpu.memory_space<vmem>>, vector<1x4x64x48xbf16>
    %160 = vector.shape_cast %159 : vector<1x4x64x48xbf16> to vector<4x64x48xbf16>
    "tpu.trace_start"() <{level = 10 : i32, message = "hrc,hcy->hry"}> : () -> ()
    %cst_64 = arith.constant dense<0.000000e+00> : vector<4x32x48xf32>
    %161 = tpu.matmul %158, %160, %cst_64 {dimension_numbers = #tpu.dot_dimension_numbers<[2], [1], [1], [2], [0, 0, 0, 1, 1, 2], [0], [0]>} : vector<4x32x64xbf16>, vector<4x64x48xbf16>, vector<4x32x48xf32> -> vector<4x32x48xf32>
    "tpu.trace_stop"() : () -> ()
    %162 = vector.extract_strided_slice %161 {offsets = [0, 0, 0], sizes = [4, 32, 16], strides = [1, 1, 1]} : vector<4x32x48xf32> to vector<4x32x16xf32>
    %163 = vector.extract_strided_slice %161 {offsets = [0, 0, 16], sizes = [4, 32, 16], strides = [1, 1, 1]} : vector<4x32x48xf32> to vector<4x32x16xf32>
    %164 = vector.extract_strided_slice %161 {offsets = [0, 0, 32], sizes = [4, 32, 16], strides = [1, 1, 1]} : vector<4x32x48xf32> to vector<4x32x16xf32>
    "tpu.trace_start"() <{level = 10 : i32, message = "hrd,hsd->hrs"}> : () -> ()
    %cst_65 = arith.constant dense<0.000000e+00> : vector<4x32x32xf32>
    %165 = tpu.matmul %162, %163, %cst_65 {dimension_numbers = #tpu.dot_dimension_numbers<[2], [2], [1], [1], [0, 0, 0, 1, 1, 1], [0], [0]>} : vector<4x32x16xf32>, vector<4x32x16xf32>, vector<4x32x32xf32> -> vector<4x32x32xf32>
    "tpu.trace_stop"() : () -> ()
    %166 = vector.shape_cast %26 : vector<32x32xf32> to vector<1x32x32xf32>
    %167 = vector.broadcast %166 : vector<1x32x32xf32> to vector<4x32x32xf32>
    %168 = arith.addf %165, %167 : vector<4x32x32xf32>
    %cst_66 = arith.constant dense<0xFF800000> : vector<4x32xf32>
    %169 = vector.multi_reduction <maximumf>, %168, %cst_66 [2] : vector<4x32x32xf32> to vector<4x32xf32>
    %170 = vector.shape_cast %169 : vector<4x32xf32> to vector<4x32x1xf32>
    %171 = vector.broadcast %170 : vector<4x32x1xf32> to vector<4x32x32xf32>
    %172 = arith.subf %168, %171 : vector<4x32x32xf32>
    %173 = math.exp %172 : vector<4x32x32xf32>
    %cst_67 = arith.constant dense<0.000000e+00> : vector<4x32xf32>
    %174 = vector.multi_reduction <add>, %173, %cst_67 [2] : vector<4x32x32xf32> to vector<4x32xf32>
    %175 = vector.shape_cast %174 : vector<4x32xf32> to vector<4x32x1xf32>
    %176 = tpu.reciprocal %175 {approx = true} : vector<4x32x1xf32> -> vector<4x32x1xf32>
    %177 = vector.broadcast %176 : vector<4x32x1xf32> to vector<4x32x32xf32>
    %178 = arith.mulf %173, %177 : vector<4x32x32xf32>
    "tpu.trace_start"() <{level = 10 : i32, message = "hrs,hsd->hrd"}> : () -> ()
    %cst_68 = arith.constant dense<0.000000e+00> : vector<4x32x16xf32>
    %179 = tpu.matmul %178, %164, %cst_68 {dimension_numbers = #tpu.dot_dimension_numbers<[2], [1], [1], [2], [0, 0, 0, 1, 1, 2], [0], [0]>} : vector<4x32x32xf32>, vector<4x32x16xf32>, vector<4x32x16xf32> -> vector<4x32x16xf32>
    "tpu.trace_stop"() : () -> ()
    %180 = arith.truncf %179 : vector<4x32x16xf32> to vector<4x32x16xbf16>
    %c1_69 = arith.constant 1 : index
    %c0_70 = arith.constant 0 : index
    %c0_71 = arith.constant 0 : index
    %c0_72 = arith.constant 0 : index
    %181 = vector.load %arg3[%c1_69, %c0_70, %c0_71, %c0_72] : memref<2x4x16x64xbf16, #tpu.memory_space<vmem>>, vector<1x4x16x64xbf16>
    %182 = vector.shape_cast %181 : vector<1x4x16x64xbf16> to vector<4x16x64xbf16>
    "tpu.trace_start"() <{level = 10 : i32, message = "hrd,hdc->hrc"}> : () -> ()
    %cst_73 = arith.constant dense<0.000000e+00> : vector<4x32x64xf32>
    %183 = tpu.matmul %180, %182, %cst_73 {dimension_numbers = #tpu.dot_dimension_numbers<[2], [1], [1], [2], [0, 0, 0, 1, 1, 2], [0], [0]>} : vector<4x32x16xbf16>, vector<4x16x64xbf16>, vector<4x32x64xf32> -> vector<4x32x64xf32>
    "tpu.trace_stop"() : () -> ()
    %cst_74 = arith.constant dense<0.000000e+00> : vector<32x64xf32>
    %184 = vector.multi_reduction <add>, %183, %cst_74 [0] : vector<4x32x64xf32> to vector<32x64xf32>
    %185 = arith.addf %125, %184 : vector<32x64xf32>
    %186 = vector.broadcast %128 : vector<1x64xf32> to vector<32x64xf32>
    %187 = arith.addf %185, %186 : vector<32x64xf32>
    %cst_75 = arith.constant dense<0.000000e+00> : vector<32xf32>
    %188 = vector.multi_reduction <add>, %187, %cst_75 [1] : vector<32x64xf32> to vector<32xf32>
    %189 = vector.shape_cast %188 : vector<32xf32> to vector<32x1xf32>
    %cst_76 = arith.constant 6.400000e+01 : f32
    %190 = vector.broadcast %cst_76 : f32 to vector<32x1xf32>
    %191 = arith.divf %189, %190 : vector<32x1xf32>
    %192 = vector.broadcast %191 : vector<32x1xf32> to vector<32x64xf32>
    %193 = arith.subf %187, %192 : vector<32x64xf32>
    %194 = arith.mulf %193, %193 : vector<32x64xf32>
    %cst_77 = arith.constant dense<0.000000e+00> : vector<32xf32>
    %195 = vector.multi_reduction <add>, %194, %cst_77 [1] : vector<32x64xf32> to vector<32xf32>
    %196 = vector.shape_cast %195 : vector<32xf32> to vector<32x1xf32>
    %cst_78 = arith.constant 6.400000e+01 : f32
    %197 = vector.broadcast %cst_78 : f32 to vector<32x1xf32>
    %198 = arith.divf %196, %197 : vector<32x1xf32>
    %199 = vector.broadcast %191 : vector<32x1xf32> to vector<32x64xf32>
    %200 = arith.subf %187, %199 : vector<32x64xf32>
    %cst_79 = arith.constant 9.99999974E-6 : f32
    %201 = vector.broadcast %cst_79 : f32 to vector<32x1xf32>
    %202 = arith.addf %198, %201 : vector<32x1xf32>
    %203 = math.rsqrt %202 : vector<32x1xf32>
    %204 = vector.broadcast %203 : vector<32x1xf32> to vector<32x64xf32>
    %205 = arith.mulf %200, %204 : vector<32x64xf32>
    %206 = vector.broadcast %129 : vector<1x64xf32> to vector<32x64xf32>
    %207 = arith.mulf %205, %206 : vector<32x64xf32>
    %208 = vector.broadcast %130 : vector<1x64xf32> to vector<32x64xf32>
    %209 = arith.addf %207, %208 : vector<32x64xf32>
    %210 = arith.truncf %209 : vector<32x64xf32> to vector<32x64xbf16>
    %c1_80 = arith.constant 1 : index
    %c0_81 = arith.constant 0 : index
    %c0_82 = arith.constant 0 : index
    %211 = vector.load %arg4[%c1_80, %c0_81, %c0_82] : memref<2x64x256xbf16, #tpu.memory_space<vmem>>, vector<1x64x256xbf16>
    %212 = vector.shape_cast %211 : vector<1x64x256xbf16> to vector<64x256xbf16>
    %cst_83 = arith.constant dense<0.000000e+00> : vector<32x256xf32>
    %213 = tpu.matmul %210, %212, %cst_83 {dimension_numbers = #tpu.dot_dimension_numbers<[1], [0], [0], [1], [0, 0, 1, 1], [], []>} : vector<32x64xbf16>, vector<64x256xbf16>, vector<32x256xf32> -> vector<32x256xf32>
    %214 = vector.broadcast %131 : vector<1x256xf32> to vector<32x256xf32>
    %215 = arith.addf %213, %214 : vector<32x256xf32>
    %cst_84 = arith.constant 0.000000e+00 : f32
    %216 = vector.broadcast %cst_84 : f32 to vector<32x256xf32>
    %217 = arith.maximumf %215, %216 : vector<32x256xf32>
    %218 = arith.truncf %217 : vector<32x256xf32> to vector<32x256xbf16>
    %c1_85 = arith.constant 1 : index
    %c0_86 = arith.constant 0 : index
    %c0_87 = arith.constant 0 : index
    %219 = vector.load %arg5[%c1_85, %c0_86, %c0_87] : memref<2x256x64xbf16, #tpu.memory_space<vmem>>, vector<1x256x64xbf16>
    %220 = vector.shape_cast %219 : vector<1x256x64xbf16> to vector<256x64xbf16>
    %cst_88 = arith.constant dense<0.000000e+00> : vector<32x64xf32>
    %221 = tpu.matmul %218, %220, %cst_88 {dimension_numbers = #tpu.dot_dimension_numbers<[1], [0], [0], [1], [0, 0, 1, 1], [], []>} : vector<32x256xbf16>, vector<256x64xbf16>, vector<32x64xf32> -> vector<32x64xf32>
    %222 = arith.addf %187, %221 : vector<32x64xf32>
    %223 = vector.broadcast %132 : vector<1x64xf32> to vector<32x64xf32>
    %224 = arith.addf %222, %223 : vector<32x64xf32>
    %c14 = arith.constant 14 : index
    %c0_89 = arith.constant 0 : index
    %225 = vector.load %arg7[%c14, %c0_89] : memref<17x256xf32, #tpu.memory_space<vmem>>, vector<1x64xf32>
    %c15 = arith.constant 15 : index
    %c0_90 = arith.constant 0 : index
    %226 = vector.load %arg7[%c15, %c0_90] : memref<17x256xf32, #tpu.memory_space<vmem>>, vector<1x64xf32>
    %cst_91 = arith.constant dense<0.000000e+00> : vector<32xf32>
    %227 = vector.multi_reduction <add>, %224, %cst_91 [1] : vector<32x64xf32> to vector<32xf32>
    %228 = vector.shape_cast %227 : vector<32xf32> to vector<32x1xf32>
    %cst_92 = arith.constant 6.400000e+01 : f32
    %229 = vector.broadcast %cst_92 : f32 to vector<32x1xf32>
    %230 = arith.divf %228, %229 : vector<32x1xf32>
    %231 = vector.broadcast %230 : vector<32x1xf32> to vector<32x64xf32>
    %232 = arith.subf %224, %231 : vector<32x64xf32>
    %233 = arith.mulf %232, %232 : vector<32x64xf32>
    %cst_93 = arith.constant dense<0.000000e+00> : vector<32xf32>
    %234 = vector.multi_reduction <add>, %233, %cst_93 [1] : vector<32x64xf32> to vector<32xf32>
    %235 = vector.shape_cast %234 : vector<32xf32> to vector<32x1xf32>
    %cst_94 = arith.constant 6.400000e+01 : f32
    %236 = vector.broadcast %cst_94 : f32 to vector<32x1xf32>
    %237 = arith.divf %235, %236 : vector<32x1xf32>
    %238 = vector.broadcast %230 : vector<32x1xf32> to vector<32x64xf32>
    %239 = arith.subf %224, %238 : vector<32x64xf32>
    %cst_95 = arith.constant 9.99999974E-6 : f32
    %240 = vector.broadcast %cst_95 : f32 to vector<32x1xf32>
    %241 = arith.addf %237, %240 : vector<32x1xf32>
    %242 = math.rsqrt %241 : vector<32x1xf32>
    %243 = vector.broadcast %242 : vector<32x1xf32> to vector<32x64xf32>
    %244 = arith.mulf %239, %243 : vector<32x64xf32>
    %245 = vector.broadcast %225 : vector<1x64xf32> to vector<32x64xf32>
    %246 = arith.mulf %244, %245 : vector<32x64xf32>
    %247 = vector.broadcast %226 : vector<1x64xf32> to vector<32x64xf32>
    %248 = arith.addf %246, %247 : vector<32x64xf32>
    %249 = arith.truncf %248 : vector<32x64xf32> to vector<32x64xbf16>
    %c0_96 = arith.constant 0 : index
    %c0_97 = arith.constant 0 : index
    %250 = vector.load %arg6[%c0_96, %c0_97] : memref<64x128xbf16, #tpu.memory_space<vmem>>, vector<64x128xbf16>
    %cst_98 = arith.constant dense<0.000000e+00> : vector<32x128xf32>
    %251 = tpu.matmul %249, %250, %cst_98 {dimension_numbers = #tpu.dot_dimension_numbers<[1], [0], [0], [1], [0, 0, 1, 1], [], []>} : vector<32x64xbf16>, vector<64x128xbf16>, vector<32x128xf32> -> vector<32x128xf32>
    %c16 = arith.constant 16 : index
    %c0_99 = arith.constant 0 : index
    %252 = vector.load %arg7[%c16, %c0_99] : memref<17x256xf32, #tpu.memory_space<vmem>>, vector<1x128xf32>
    %253 = vector.broadcast %252 : vector<1x128xf32> to vector<32x128xf32>
    %254 = arith.addf %251, %253 : vector<32x128xf32>
    %c0_100 = arith.constant 0 : index
    %c0_101 = arith.constant 0 : index
    %255 = vector.load %arg8[%c0_100, %c0_101] : memref<32x128xf32, #tpu.memory_space<vmem>>, vector<32x128xf32>
    tpu.vector_store %arg8[%c0_100, %c0_101], %254 {strides = array<i32>} : memref<32x128xf32, #tpu.memory_space<vmem>>, vector<32x128xf32>,
    return
  }
}

</mosaic_0001>

<llo_original>
// kernel: gpt_forward.1
$region0: #{gpt_forward.1}
  #allocation0 [shape = 'u32[]', space=smem, size = 0x4, offset = 0x4, fixed_abs, tag = 'smem constant byte address 0x4 - core index']
  #allocation1 [shape = 'u32[144,128]{1,0:T(1,128)}', space=vmem, size = 0x12000, scoped, tag = 'internal scratch']
  %s0 = inlined_call_operand.vmem [shape: s32[32,1], index: 0, kind: input, shape index: {}]
  %s1 = inlined_call_operand.vmem [shape: f32[128,64], index: 1, kind: input, shape index: {}]
  %s2 = inlined_call_operand.vmem [shape: bf16[2,4,64,48], index: 2, kind: input, shape index: {}]
  %s3 = inlined_call_operand.vmem [shape: bf16[2,4,16,64], index: 3, kind: input, shape index: {}]
  %s4 = inlined_call_operand.vmem [shape: bf16[2,64,256], index: 4, kind: input, shape index: {}]
  %s5 = inlined_call_operand.vmem [shape: bf16[2,256,64], index: 5, kind: input, shape index: {}]
  %s6 = inlined_call_operand.vmem [shape: bf16[64,128], index: 6, kind: input, shape index: {}]
  %s7 = inlined_call_operand.vmem [shape: f32[17,256], index: 7, kind: input, shape index: {}]
  %s8 = inlined_call_operand.hbm [shape: f32[32,128], index: 8, kind: output, shape index: {}]
  %s9 = sld [smem:[#allocation0]]
  $region42: #{gpt_forward.1} parent=0
    _
  %s11 = ssub.s32 1, %s9
  %s12 = scalar_select 0, %s11, %s9
  $region1: #{gpt_forward.1} parent=0
    #allocation2 [shape = 'u8[16384]{0}', space=vmem, size = 0x4000, scoped, tag = 'output window, operand 0, single buffered']
    #allocation3 [shape = 's32[1]{0}', space=sflag, size = 0x4, scoped, tag = 'scoped memory for gpt_forward.1']
    %13 = vsyncpa [#allocation3], 0
    // Predicated region
    $region2: #{gpt_forward.1} parent=1 // pred_check
      _
    $region3: #{gpt_forward.1} parent=1 // pred_check_branch
      %15 = sbr.rel (0) target = $region5
    $region4: #{gpt_forward.1} parent=1 // pred_region
      _
    $region5: #{gpt_forward.1} parent=1 // pred_fallthru
      _
    // Predicated region
    $region6: #{gpt_forward.1} parent=1 // pred_check
      _
    $region7: #{gpt_forward.1} parent=1 // pred_check_branch
      %17 = sbr.rel (0) target = $region9
    $region8: #{gpt_forward.1} parent=1 // pred_region
      _
    $region9: #{gpt_forward.1} parent=1 // pred_fallthru
      _
    // Predicated region
    $region10: #{gpt_forward.1} parent=1 // pred_check
      _
    $region11: #{gpt_forward.1} parent=1 // pred_check_branch
      %19 = sbr.rel (0) target = $region13
    $region12: #{gpt_forward.1} parent=1 // pred_region
      _
    $region13: #{gpt_forward.1} parent=1 // pred_fallthru
      _
    // Predicated region
    $region14: #{gpt_forward.1} parent=1 // pred_check
      _
    $region15: #{gpt_forward.1} parent=1 // pred_check_branch
      %21 = sbr.rel (0) target = $region17
    $region16: #{gpt_forward.1} parent=1 // pred_region
      _
    $region17: #{gpt_forward.1} parent=1 // pred_fallthru
      _
    // Predicated region
    $region18: #{gpt_forward.1} parent=1 // pred_check
      _
    $region19: #{gpt_forward.1} parent=1 // pred_check_branch
      %23 = sbr.rel (0) target = $region21
    $region20: #{gpt_forward.1} parent=1 // pred_region
      _
    $region21: #{gpt_forward.1} parent=1 // pred_fallthru
      _
    // Predicated region
    $region22: #{gpt_forward.1} parent=1 // pred_check
      _
    $region23: #{gpt_forward.1} parent=1 // pred_check_branch
      %25 = sbr.rel (0) target = $region25
    $region24: #{gpt_forward.1} parent=1 // pred_region
      _
    $region25: #{gpt_forward.1} parent=1 // pred_fallthru
      _
    // Predicated region
    $region26: #{gpt_forward.1} parent=1 // pred_check
      _
    $region27: #{gpt_forward.1} parent=1 // pred_check_branch
      %27 = sbr.rel (0) target = $region29
    $region28: #{gpt_forward.1} parent=1 // pred_region
      _
    $region29: #{gpt_forward.1} parent=1 // pred_fallthru
      _
    // Predicated region
    $region30: #{gpt_forward.1} parent=1 // pred_check
      _
    $region31: #{gpt_forward.1} parent=1 // pred_check_branch
      %29 = sbr.rel (0) target = $region33
    $region32: #{gpt_forward.1} parent=1 // pred_region
      _
    $region33: #{gpt_forward.1} parent=1 // pred_fallthru
      _
    %v31 = vlaneseq
    %v32 = vand.u32 %v31, 127
    %v33 = vlaneseq
    %v34 = vshrl.u32 %v33, 7
    %v35 = vadd.s32 %v34, 8
    %v36 = vadd.s32 %v34, 16
    %v37 = vadd.s32 %v34, 24
    %v38 = vand.u32 %v34, 15
    %v39 = vand.u32 %v35, 15
    %v40 = vand.u32 %v36, 15
    %v41 = vand.u32 %v37, 15
    %v42 = vadd.s32 %v38, 72
    %v43 = vadd.s32 %v39, 72
    %v44 = vadd.s32 %v40, 72
    %v45 = vadd.s32 %v41, 72
    %v46 = vld [vmem:[%s0] sm:$0xff]
    %v47 = vld [vmem:[%s0 + $0x8] sm:$0xff]
    %v48 = vld [vmem:[%s0 + $0x10] sm:$0xff]
    %v49 = vld [vmem:[%s0 + $0x18] sm:$0xff]
    %50 = vset.pattern.permute.xlu0 0
    %51 = vperm.xlu0 %50, %v46
    %v52 = vpop.permute.xlu0 %51
    %53 = vset.pattern.permute.xlu0 0
    %54 = vperm.xlu0 %53, %v47
    %v55 = vpop.permute.xlu0 %54
    %56 = vset.pattern.permute.xlu0 0
    %57 = vperm.xlu0 %56, %v48
    %v58 = vpop.permute.xlu0 %57
    %59 = vset.pattern.permute.xlu0 0
    %60 = vperm.xlu0 %59, %v49
    %v61 = vpop.permute.xlu0 %60
    %vm62 = vcmp.eq.s32.totalorder %v32, %v52
    %vm63 = vcmp.eq.s32.totalorder %v32, %v55
    %vm64 = vcmp.eq.s32.totalorder %v32, %v58
    %vm65 = vcmp.eq.s32.totalorder %v32, %v61
    %vm66 = vcmp.eq.s32.totalorder %v32, %v42
    %vm67 = vcmp.eq.s32.totalorder %v32, %v43
    %vm68 = vcmp.eq.s32.totalorder %v32, %v44
    %vm69 = vcmp.eq.s32.totalorder %v32, %v45
    %vm70 = vmor %vm62, %vm66
    %vm71 = vmor %vm63, %vm67
    %vm72 = vmor %vm64, %vm68
    %vm73 = vmor %vm65, %vm69
    %v74 = vsel %vm70, 1, 0
    %v75 = vsel %vm71, 1, 0
    %v76 = vsel %vm72, 1, 0
    %v77 = vsel %vm73, 1, 0
    %v78 = vcvt.s32.f32 %v74
    %v79 = vcvt.s32.f32 %v75
    %v80 = vcvt.s32.f32 %v76
    %v81 = vcvt.s32.f32 %v77
    %v82 = vld [vmem:[%s1] sm:$0xff]
    %v83 = vld [vmem:[%s1 + $0x8] sm:$0xff]
    %v84 = vld [vmem:[%s1 + $0x10] sm:$0xff]
    %v85 = vld [vmem:[%s1 + $0x18] sm:$0xff]
    %v86 = vld [vmem:[%s1 + $0x20] sm:$0xff]
    %v87 = vld [vmem:[%s1 + $0x28] sm:$0xff]
    %v88 = vld [vmem:[%s1 + $0x30] sm:$0xff]
    %v89 = vld [vmem:[%s1 + $0x38] sm:$0xff]
    %v90 = vld [vmem:[%s1 + $0x40] sm:$0xff]
    %v91 = vld [vmem:[%s1 + $0x48] sm:$0xff]
    %v92 = vld [vmem:[%s1 + $0x50] sm:$0xff]
    %v93 = vld [vmem:[%s1 + $0x58] sm:$0xff]
    %v94 = vld [vmem:[%s1 + $0x60] sm:$0xff]
    %v95 = vld [vmem:[%s1 + $0x68] sm:$0xff]
    %v96 = vld [vmem:[%s1 + $0x70] sm:$0xff]
    %v97 = vld [vmem:[%s1 + $0x78] sm:$0xff]
    %98 = vmatprep.subr.mxu0 0.0
    %99 = vmatpush1.msra.mxu0 %v97
    %100 = vmatprep.subr.mxu0 0.0
    %101 = vmatpush1.msra.mxu0 %v96
    %102 = vmatprep.subr.mxu0 0.0
    %103 = vmatpush1.msra.mxu0 %v95
    %104 = vmatprep.subr.mxu0 0.0
    %105 = vmatpush1.msra.mxu0 %v94
    %106 = vmatprep.subr.mxu0 0.0
    %107 = vmatpush1.msra.mxu0 %v93
    %108 = vmatprep.subr.mxu0 0.0
    %109 = vmatpush1.msra.mxu0 %v92
    %110 = vmatprep.subr.mxu0 0.0
    %111 = vmatpush1.msra.mxu0 %v91
    %112 = vmatprep.subr.mxu0 0.0
    %113 = vmatpush1.msra.mxu0 %v90
    %114 = vmatprep.subr.mxu0 0.0
    %115 = vmatpush1.msra.mxu0 %v89
    %116 = vmatprep.subr.mxu0 0.0
    %117 = vmatpush1.msra.mxu0 %v88
    %118 = vmatprep.subr.mxu0 0.0
    %119 = vmatpush1.msra.mxu0 %v87
    %120 = vmatprep.subr.mxu0 0.0
    %121 = vmatpush1.msra.mxu0 %v86
    %122 = vmatprep.subr.mxu0 0.0
    %123 = vmatpush1.msra.mxu0 %v85
    %124 = vmatprep.subr.mxu0 0.0
    %125 = vmatpush1.msra.mxu0 %v84
    %126 = vmatprep.subr.mxu0 0.0
    %127 = vmatpush1.msra.mxu0 %v83
    %128 = vmatprep.subr.mxu0 0.0
    %129 = vmatpush1.msra.mxu0 %v82
    %130 = vmatprep.subr.mxu0 0.0
    %131 = vmatpush2.msra.mxu0 0.0
    %132 = vmatprep.subr.mxu0 0.0
    %133 = vmatpush2.msra.mxu0 0.0
    %134 = vmatprep.subr.mxu0 0.0
    %135 = vmatpush2.msra.mxu0 0.0
    %136 = vmatprep.subr.mxu0 0.0
    %137 = vmatpush2.msra.mxu0 0.0
    %138 = vmatprep.subr.mxu0 0.0
    %139 = vmatpush2.msra.mxu0 0.0
    %140 = vmatprep.subr.mxu0 0.0
    %141 = vmatpush2.msra.mxu0 0.0
    %142 = vmatprep.subr.mxu0 0.0
    %143 = vmatpush2.msra.mxu0 0.0
    %144 = vmatprep.subr.mxu0 0.0
    %145 = vmatpush2.msra.mxu0 0.0
    %146 = vmatprep.subr.mxu0 0.0
    %147 = vmatpush2.msra.mxu0 0.0
    %148 = vmatprep.subr.mxu0 0.0
    %149 = vmatpush2.msra.mxu0 0.0
    %150 = vmatprep.subr.mxu0 0.0
    %151 = vmatpush2.msra.mxu0 0.0
    %152 = vmatprep.subr.mxu0 0.0
    %153 = vmatpush2.msra.mxu0 0.0
    %154 = vmatprep.subr.mxu0 0.0
    %155 = vmatpush2.msra.mxu0 0.0
    %156 = vmatprep.subr.mxu0 0.0
    %157 = vmatpush2.msra.mxu0 0.0
    %158 = vmatprep.subr.mxu0 0.0
    %159 = vmatpush2.msra.mxu0 0.0
    %160 = vmatprep.subr.mxu0 0.0
    %161 = vmatpush2.msra.mxu0 0.0
    %162 = vmatprep.mubr.f32.mxu0 0.0
    %163 = vmatmul.mubr.f32.gmra.mxu0 %v78
    %v164 = vpop.f32.mrf.mxu0
    %v165 = vadd.f32 0.0, %v164
    %v166 = vpop.f32.mrf.mxu0
    %167 = vmatprep.mubr.f32.mxu0 0.0
    %168 = vmatmul.mubr.f32.gmra.mxu0 %v79
    %v169 = vpop.f32.mrf.mxu0
    %v170 = vadd.f32 0.0, %v169
    %v171 = vpop.f32.mrf.mxu0
    %172 = vmatprep.mubr.f32.mxu0 0.0
    %173 = vmatmul.mubr.f32.gmra.mxu0 %v80
    %v174 = vpop.f32.mrf.mxu0
    %v175 = vadd.f32 0.0, %v174
    %v176 = vpop.f32.mrf.mxu0
    %177 = vmatprep.mubr.f32.mxu0 0.0
    %178 = vmatmul.mubr.f32.gmra.mxu0 %v81
    %v179 = vpop.f32.mrf.mxu0
    %v180 = vadd.f32 0.0, %v179
    %v181 = vpop.f32.mrf.mxu0
    %182 = vdwg.mxu0
    %vm183 = vcmp.le.s32.totalorder %v32, %v34
    %vm184 = vcmp.le.s32.totalorder %v32, %v35
    %vm185 = vcmp.le.s32.totalorder %v32, %v36
    %vm186 = vcmp.le.s32.totalorder %v32, %v37
    %v187 = vshra.s32 %v34, 4
    %v188 = vshra.s32 %v35, 4
    %v189 = vshra.s32 %v36, 4
    %v190 = vshra.s32 %v37, 4
    %v191 = vshra.s32 %v32, 4
    %vm192 = vcmp.eq.s32.totalorder %v187, %v191
    %vm193 = vcmp.eq.s32.totalorder %v188, %v191
    %vm194 = vcmp.eq.s32.totalorder %v189, %v191
    %vm195 = vcmp.eq.s32.totalorder %v190, %v191
    %vm196 = vmand %vm183, %vm192
    %vm197 = vmand %vm184, %vm193
    %vm198 = vmand %vm185, %vm194
    %vm199 = vmand %vm186, %vm195
    %v200 = vsel %vm196, 0.0, -1e+30
    %v201 = vsel %vm197, 0.0, -1e+30
    %v202 = vsel %vm198, 0.0, -1e+30
    %v203 = vsel %vm199, 0.0, -1e+30
    %v204 = vld [vmem:[%s7] ss:$0 sm:$0xff]
    %v205 = vld [vmem:[%s7 + $0x1] ss:$0 sm:$0xff]
    %v206 = vld [vmem:[%s7 + $0x2] ss:$0 sm:$0xff]
    %v207 = vld [vmem:[%s7 + $0x3] ss:$0 sm:$0xff]
    %v208 = vld [vmem:[%s7 + $0x4] ss:$0 sm:$0xff]
    %s209 = scalar_lea.vmem %s7, 5
    %v210 = vld [vmem:[%s209] ss:$8 sm:$0x3]
    %v211 = vld [vmem:[%s7 + $0x6] ss:$0 sm:$0xff]
    %vm212 = vcmask 523264
    %v213 = vsel %vm212, %v165, 0.0
    %214 = vadd.xlane.f32.xlu0 %v213
    %v215 = vpop.xlane.xlu0 %214
    %v216 = vsel %vm212, %v170, 0.0
    %217 = vadd.xlane.f32.xlu0 %v216
    %v218 = vpop.xlane.xlu0 %217
    %v219 = vsel %vm212, %v175, 0.0
    %220 = vadd.xlane.f32.xlu0 %v219
    %v221 = vpop.xlane.xlu0 %220
    %v222 = vsel %vm212, %v180, 0.0
    %223 = vadd.xlane.f32.xlu0 %v222
    %v224 = vpop.xlane.xlu0 %223
    %v225 = vrcp.pop 64.0
    %v226 = vmul.f32 %v215, %v225
    %v227 = vmul.f32 %v218, %v225
    %v228 = vmul.f32 %v221, %v225
    %v229 = vmul.f32 %v224, %v225
    %v230 = vsub.f32 %v165, %v226
    %v231 = vsub.f32 %v170, %v227
    %v232 = vsub.f32 %v175, %v228
    %v233 = vsub.f32 %v180, %v229
    %v234 = vmul.f32 %v230, %v230
    %v235 = vmul.f32 %v231, %v231
    %v236 = vmul.f32 %v232, %v232
    %v237 = vmul.f32 %v233, %v233
    %v238 = vsel %vm212, %v234, 0.0
    %239 = vadd.xlane.f32.xlu0 %v238
    %v240 = vpop.xlane.xlu0 %239
    %v241 = vsel %vm212, %v235, 0.0
    %242 = vadd.xlane.f32.xlu0 %v241
    %v243 = vpop.xlane.xlu0 %242
    %v244 = vsel %vm212, %v236, 0.0
    %245 = vadd.xlane.f32.xlu0 %v244
    %v246 = vpop.xlane.xlu0 %245
    %v247 = vsel %vm212, %v237, 0.0
    %248 = vadd.xlane.f32.xlu0 %v247
    %v249 = vpop.xlane.xlu0 %248
    %v250 = vmul.f32 %v240, %v225
    %v251 = vmul.f32 %v243, %v225
    %v252 = vmul.f32 %v246, %v225
    %v253 = vmul.f32 %v249, %v225
    %v254 = vadd.f32 %v250, 1e-05
    %v255 = vadd.f32 %v251, 1e-05
    %v256 = vadd.f32 %v252, 1e-05
    %v257 = vadd.f32 %v253, 1e-05
    %v258 = vrsqrt.pop %v254
    %v259 = vrsqrt.pop %v255
    %v260 = vrsqrt.pop %v256
    %v261 = vrsqrt.pop %v257
    %v262 = vmul.f32 %v230, %v258
    %v263 = vmul.f32 %v231, %v259
    %v264 = vmul.f32 %v232, %v260
    %v265 = vmul.f32 %v233, %v261
    %v266 = vmul.f32 %v262, %v204
    %v267 = vmul.f32 %v263, %v204
    %v268 = vmul.f32 %v264, %v204
    %v269 = vmul.f32 %v265, %v204
    %v270 = vadd.f32 %v266, %v205
    %v271 = vadd.f32 %v267, %v205
    %v272 = vadd.f32 %v268, %v205
    %v273 = vadd.f32 %v269, %v205
    %v274 = vpack.c.bf16 %v271, %v270
    %v275 = vpack.c.bf16 %v273, %v272
    %v276 = vld [vmem:[%s2] sm:$0xf]
    %v277 = vld [vmem:[%s2 + $0x4] sm:$0xf]
    %v278 = vld [vmem:[%s2 + $0x8] sm:$0xf]
    %v279 = vld [vmem:[%s2 + $0xc] sm:$0xf]
    %v280 = vld [vmem:[%s2 + $0x10] sm:$0xf]
    %v281 = vld [vmem:[%s2 + $0x14] sm:$0xf]
    %v282 = vld [vmem:[%s2 + $0x18] sm:$0xf]
    %v283 = vld [vmem:[%s2 + $0x1c] sm:$0xf]
    %v284 = vld [vmem:[%s2 + $0x20] sm:$0xf]
    %v285 = vld [vmem:[%s2 + $0x24] sm:$0xf]
    %v286 = vld [vmem:[%s2 + $0x28] sm:$0xf]
    %v287 = vld [vmem:[%s2 + $0x2c] sm:$0xf]
    %v288 = vld [vmem:[%s2 + $0x30] sm:$0xf]
    %v289 = vld [vmem:[%s2 + $0x34] sm:$0xf]
    %v290 = vld [vmem:[%s2 + $0x38] sm:$0xf]
    %v291 = vld [vmem:[%s2 + $0x3c] sm:$0xf]
    %v292 = vld [vmem:[%s2 + $0x40] sm:$0xf]
    %v293 = vld [vmem:[%s2 + $0x44] sm:$0xf]
    %v294 = vld [vmem:[%s2 + $0x48] sm:$0xf]
    %v295 = vld [vmem:[%s2 + $0x4c] sm:$0xf]
    %v296 = vld [vmem:[%s2 + $0x50] sm:$0xf]
    %v297 = vld [vmem:[%s2 + $0x54] sm:$0xf]
    %v298 = vld [vmem:[%s2 + $0x58] sm:$0xf]
    %v299 = vld [vmem:[%s2 + $0x5c] sm:$0xf]
    %v300 = vld [vmem:[%s2 + $0x60] sm:$0xf]
    %v301 = vld [vmem:[%s2 + $0x64] sm:$0xf]
    %v302 = vld [vmem:[%s2 + $0x68] sm:$0xf]
    %v303 = vld [vmem:[%s2 + $0x6c] sm:$0xf]
    %v304 = vld [vmem:[%s2 + $0x70] sm:$0xf]
    %v305 = vld [vmem:[%s2 + $0x74] sm:$0xf]
    %v306 = vld [vmem:[%s2 + $0x78] sm:$0xf]
    %v307 = vld [vmem:[%s2 + $0x7c] sm:$0xf]
    %v316 = vunpack.c.l.b16 %v276
    %v317 = vunpack.c.l.b16 %v277
    %v318 = vunpack.c.l.b16 %v278
    %v319 = vunpack.c.l.b16 %v279
    %v320 = vunpack.c.l.b16 %v280
    %v321 = vunpack.c.l.b16 %v281
    %v322 = vunpack.c.l.b16 %v282
    %v323 = vunpack.c.l.b16 %v283
    %v324 = vpack.c.b16 %v317, %v316
    %v325 = vpack.c.b16 %v319, %v318
    %v326 = vpack.c.b16 %v321, %v320
    %v327 = vpack.c.b16 %v323, %v322
    %v333 = vsel %vm212, %v274, 0
    %v336 = vsel %vm212, %v275, 0
    %338 = vmatprep.subr.bf16.mxu0 0
    %339 = vmatpush1.bf16.msra.mxu0 0
    %340 = vmatprep.subr.bf16.mxu0 0
    %341 = vmatpush1.bf16.msra.mxu0 0
    %342 = vmatprep.subr.bf16.mxu0 0
    %343 = vmatpush1.bf16.msra.mxu0 0
    %344 = vmatprep.subr.bf16.mxu0 0
    %345 = vmatpush1.bf16.msra.mxu0 0
    %346 = vmatprep.subr.bf16.mxu0 0
    %347 = vmatpush1.bf16.msra.mxu0 %v327
    %348 = vmatprep.subr.bf16.mxu0 0
    %349 = vmatpush1.bf16.msra.mxu0 %v326
    %350 = vmatprep.subr.bf16.mxu0 0
    %351 = vmatpush1.bf16.msra.mxu0 %v325
    %352 = vmatprep.subr.bf16.mxu0 0
    %353 = vmatpush1.bf16.msra.mxu0 %v324
    %354 = vmatprep.subr.bf16.mxu0 0
    %355 = vmatpush2.bf16.msra.mxu0 0
    %356 = vmatprep.subr.bf16.mxu0 0
    %357 = vmatpush2.bf16.msra.mxu0 0
    %358 = vmatprep.subr.bf16.mxu0 0
    %359 = vmatpush2.bf16.msra.mxu0 0
    %360 = vmatprep.subr.bf16.mxu0 0
    %361 = vmatpush2.bf16.msra.mxu0 0
    %362 = vmatprep.subr.bf16.mxu0 0
    %363 = vmatpush2.bf16.msra.mxu0 0
    %364 = vmatprep.subr.bf16.mxu0 0
    %365 = vmatpush2.bf16.msra.mxu0 0
    %366 = vmatprep.subr.bf16.mxu0 0
    %367 = vmatpush2.bf16.msra.mxu0 0
    %368 = vmatprep.subr.bf16.mxu0 0
    %369 = vmatpush2.bf16.msra.mxu0 0
    %370 = vmatprep.mubr.bf16.mxu0 0
    %371 = vmatmul.mubr.bf16.gmra.mxu0 %v333
    %v372 = vpop.f32.mrf.mxu0
    %v373 = vadd.f32 0.0, %v372
    %v374 = vpop.f32.mrf.mxu0
    %v375 = vpop.f32.mrf.mxu0
    %v376 = vadd.f32 0.0, %v375
    %v377 = vpop.f32.mrf.mxu0
    %378 = vmatprep.mubr.bf16.mxu0 0
    %379 = vmatmul.mubr.bf16.gmra.mxu0 %v336
    %v380 = vpop.f32.mrf.mxu0
    %v381 = vadd.f32 0.0, %v380
    %v382 = vpop.f32.mrf.mxu0
    %v383 = vpop.f32.mrf.mxu0
    %v384 = vadd.f32 0.0, %v383
    %v385 = vpop.f32.mrf.mxu0
    %386 = vdwg.mxu0
    %v395 = vunpack.c.l.b16 %v284
    %v396 = vunpack.c.l.b16 %v285
    %v397 = vunpack.c.l.b16 %v286
    %v398 = vunpack.c.l.b16 %v287
    %v399 = vunpack.c.l.b16 %v288
    %v400 = vunpack.c.l.b16 %v289
    %v401 = vunpack.c.l.b16 %v290
    %v402 = vunpack.c.l.b16 %v291
    %v403 = vpack.c.b16 %v396, %v395
    %v404 = vpack.c.b16 %v398, %v397
    %v405 = vpack.c.b16 %v400, %v399
    %v406 = vpack.c.b16 %v402, %v401
    %411 = vmatprep.subr.bf16.mxu0 0
    %412 = vmatpush1.bf16.msra.mxu0 0
    %413 = vmatprep.subr.bf16.mxu0 0
    %414 = vmatpush1.bf16.msra.mxu0 0
    %415 = vmatprep.subr.bf16.mxu0 0
    %416 = vmatpush1.bf16.msra.mxu0 0
    %417 = vmatprep.subr.bf16.mxu0 0
    %418 = vmatpush1.bf16.msra.mxu0 0
    %419 = vmatprep.subr.bf16.mxu0 0
    %420 = vmatpush1.bf16.msra.mxu0 %v406
    %421 = vmatprep.subr.bf16.mxu0 0
    %422 = vmatpush1.bf16.msra.mxu0 %v405
    %423 = vmatprep.subr.bf16.mxu0 0
    %424 = vmatpush1.bf16.msra.mxu0 %v404
    %425 = vmatprep.subr.bf16.mxu0 0
    %426 = vmatpush1.bf16.msra.mxu0 %v403
    %427 = vmatprep.subr.bf16.mxu0 0
    %428 = vmatpush2.bf16.msra.mxu0 0
    %429 = vmatprep.subr.bf16.mxu0 0
    %430 = vmatpush2.bf16.msra.mxu0 0
    %431 = vmatprep.subr.bf16.mxu0 0
    %432 = vmatpush2.bf16.msra.mxu0 0
    %433 = vmatprep.subr.bf16.mxu0 0
    %434 = vmatpush2.bf16.msra.mxu0 0
    %435 = vmatprep.subr.bf16.mxu0 0
    %436 = vmatpush2.bf16.msra.mxu0 0
    %437 = vmatprep.subr.bf16.mxu0 0
    %438 = vmatpush2.bf16.msra.mxu0 0
    %439 = vmatprep.subr.bf16.mxu0 0
    %440 = vmatpush2.bf16.msra.mxu0 0
    %441 = vmatprep.subr.bf16.mxu0 0
    %442 = vmatpush2.bf16.msra.mxu0 0
    %443 = vmatprep.mubr.bf16.mxu0 0
    %444 = vmatmul.mubr.bf16.gmra.mxu0 %v333
    %v445 = vpop.f32.mrf.mxu0
    %v446 = vadd.f32 0.0, %v445
    %v447 = vpop.f32.mrf.mxu0
    %v448 = vpop.f32.mrf.mxu0
    %v449 = vadd.f32 0.0, %v448
    %v450 = vpop.f32.mrf.mxu0
    %451 = vmatprep.mubr.bf16.mxu0 0
    %452 = vmatmul.mubr.bf16.gmra.mxu0 %v336
    %v453 = vpop.f32.mrf.mxu0
    %v454 = vadd.f32 0.0, %v453
    %v455 = vpop.f32.mrf.mxu0
    %v456 = vpop.f32.mrf.mxu0
    %v457 = vadd.f32 0.0, %v456
    %v458 = vpop.f32.mrf.mxu0
    %459 = vdwg.mxu0
    %v468 = vunpack.c.l.b16 %v292
    %v469 = vunpack.c.l.b16 %v293
    %v470 = vunpack.c.l.b16 %v294
    %v471 = vunpack.c.l.b16 %v295
    %v472 = vunpack.c.l.b16 %v296
    %v473 = vunpack.c.l.b16 %v297
    %v474 = vunpack.c.l.b16 %v298
    %v475 = vunpack.c.l.b16 %v299
    %v476 = vpack.c.b16 %v469, %v468
    %v477 = vpack.c.b16 %v471, %v470
    %v478 = vpack.c.b16 %v473, %v472
    %v479 = vpack.c.b16 %v475, %v474
    %484 = vmatprep.subr.bf16.mxu0 0
    %485 = vmatpush1.bf16.msra.mxu0 0
    %486 = vmatprep.subr.bf16.mxu0 0
    %487 = vmatpush1.bf16.msra.mxu0 0
    %488 = vmatprep.subr.bf16.mxu0 0
    %489 = vmatpush1.bf16.msra.mxu0 0
    %490 = vmatprep.subr.bf16.mxu0 0
    %491 = vmatpush1.bf16.msra.mxu0 0
    %492 = vmatprep.subr.bf16.mxu0 0
    %493 = vmatpush1.bf16.msra.mxu0 %v479
    %494 = vmatprep.subr.bf16.mxu0 0
    %495 = vmatpush1.bf16.msra.mxu0 %v478
    %496 = vmatprep.subr.bf16.mxu0 0
    %497 = vmatpush1.bf16.msra.mxu0 %v477
    %498 = vmatprep.subr.bf16.mxu0 0
    %499 = vmatpush1.bf16.msra.mxu0 %v476
    %500 = vmatprep.subr.bf16.mxu0 0
    %501 = vmatpush2.bf16.msra.mxu0 0
    %502 = vmatprep.subr.bf16.mxu0 0
    %503 = vmatpush2.bf16.msra.mxu0 0
    %504 = vmatprep.subr.bf16.mxu0 0
    %505 = vmatpush2.bf16.msra.mxu0 0
    %506 = vmatprep.subr.bf16.mxu0 0
    %507 = vmatpush2.bf16.msra.mxu0 0
    %508 = vmatprep.subr.bf16.mxu0 0
    %509 = vmatpush2.bf16.msra.mxu0 0
    %510 = vmatprep.subr.bf16.mxu0 0
    %511 = vmatpush2.bf16.msra.mxu0 0
    %512 = vmatprep.subr.bf16.mxu0 0
    %513 = vmatpush2.bf16.msra.mxu0 0
    %514 = vmatprep.subr.bf16.mxu0 0
    %515 = vmatpush2.bf16.msra.mxu0 0
    %516 = vmatprep.mubr.bf16.mxu0 0
    %517 = vmatmul.mubr.bf16.gmra.mxu0 %v333
    %v518 = vpop.f32.mrf.mxu0
    %v519 = vadd.f32 0.0, %v518
    %v520 = vpop.f32.mrf.mxu0
    %v521 = vpop.f32.mrf.mxu0
    %v522 = vadd.f32 0.0, %v521
    %v523 = vpop.f32.mrf.mxu0
    %524 = vmatprep.mubr.bf16.mxu0 0
    %525 = vmatmul.mubr.bf16.gmra.mxu0 %v336
    %v526 = vpop.f32.mrf.mxu0
    %v527 = vadd.f32 0.0, %v526
    %v528 = vpop.f32.mrf.mxu0
    %v529 = vpop.f32.mrf.mxu0
    %v530 = vadd.f32 0.0, %v529
    %v531 = vpop.f32.mrf.mxu0
    %532 = vdwg.mxu0
    %v541 = vunpack.c.l.b16 %v300
    %v542 = vunpack.c.l.b16 %v301
    %v543 = vunpack.c.l.b16 %v302
    %v544 = vunpack.c.l.b16 %v303
    %v545 = vunpack.c.l.b16 %v304
    %v546 = vunpack.c.l.b16 %v305
    %v547 = vunpack.c.l.b16 %v306
    %v548 = vunpack.c.l.b16 %v307
    %v549 = vpack.c.b16 %v542, %v541
    %v550 = vpack.c.b16 %v544, %v543
    %v551 = vpack.c.b16 %v546, %v545
    %v552 = vpack.c.b16 %v548, %v547
    %557 = vmatprep.subr.bf16.mxu0 0
    %558 = vmatpush1.bf16.msra.mxu0 0
    %559 = vmatprep.subr.bf16.mxu0 0
    %560 = vmatpush1.bf16.msra.mxu0 0
    %561 = vmatprep.subr.bf16.mxu0 0
    %562 = vmatpush1.bf16.msra.mxu0 0
    %563 = vmatprep.subr.bf16.mxu0 0
    %564 = vmatpush1.bf16.msra.mxu0 0
    %565 = vmatprep.subr.bf16.mxu0 0
    %566 = vmatpush1.bf16.msra.mxu0 %v552
    %567 = vmatprep.subr.bf16.mxu0 0
    %568 = vmatpush1.bf16.msra.mxu0 %v551
    %569 = vmatprep.subr.bf16.mxu0 0
    %570 = vmatpush1.bf16.msra.mxu0 %v550
    %571 = vmatprep.subr.bf16.mxu0 0
    %572 = vmatpush1.bf16.msra.mxu0 %v549
    %573 = vmatprep.subr.bf16.mxu0 0
    %574 = vmatpush2.bf16.msra.mxu0 0
    %575 = vmatprep.subr.bf16.mxu0 0
    %576 = vmatpush2.bf16.msra.mxu0 0
    %577 = vmatprep.subr.bf16.mxu0 0
    %578 = vmatpush2.bf16.msra.mxu0 0
    %579 = vmatprep.subr.bf16.mxu0 0
    %580 = vmatpush2.bf16.msra.mxu0 0
    %581 = vmatprep.subr.bf16.mxu0 0
    %582 = vmatpush2.bf16.msra.mxu0 0
    %583 = vmatprep.subr.bf16.mxu0 0
    %584 = vmatpush2.bf16.msra.mxu0 0
    %585 = vmatprep.subr.bf16.mxu0 0
    %586 = vmatpush2.bf16.msra.mxu0 0
    %587 = vmatprep.subr.bf16.mxu0 0
    %588 = vmatpush2.bf16.msra.mxu0 0
    %589 = vmatprep.mubr.bf16.mxu0 0
    %590 = vmatmul.mubr.bf16.gmra.mxu0 %v333
    %v591 = vpop.f32.mrf.mxu0
    %v592 = vadd.f32 0.0, %v591
    %v593 = vpop.f32.mrf.mxu0
    %v594 = vpop.f32.mrf.mxu0
    %v595 = vadd.f32 0.0, %v594
    %v596 = vpop.f32.mrf.mxu0
    %597 = vmatprep.mubr.bf16.mxu0 0
    %598 = vmatmul.mubr.bf16.gmra.mxu0 %v336
    %v599 = vpop.f32.mrf.mxu0
    %v600 = vadd.f32 0.0, %v599
    %v601 = vpop.f32.mrf.mxu0
    %v602 = vpop.f32.mrf.mxu0
    %v603 = vadd.f32 0.0, %v602
    %v604 = vpop.f32.mrf.mxu0
    %605 = vdwg.mxu0
    %610 = vrot.lane.b32.xlu0 %v373, 112
    %v611 = vpop.permute.xlu0 %610
    %612 = vrot.lane.b32.xlu0 %v376, 112
    %v613 = vpop.permute.xlu0 %612
    %614 = vrot.lane.b32.xlu0 %v381, 112
    %v615 = vpop.permute.xlu0 %614
    %616 = vrot.lane.b32.xlu0 %v384, 112
    %v617 = vpop.permute.xlu0 %616
    %vm618 = vcmask 130048
    %v619 = vsel %vm618, %v373, 0
    %v621 = vsel %vm618, %v376, 0
    %v623 = vsel %vm618, %v381, 0
    %v625 = vsel %vm618, %v384, 0
    %v627 = vsel %vm618, %v611, 0
    %v629 = vsel %vm618, %v613, 0
    %v631 = vsel %vm618, %v615, 0
    %v633 = vsel %vm618, %v617, 0
    %635 = vmatprep.subr.mxu0 0.0
    %636 = vmatpush1.xpose.msra.mxu0 0.0
    %637 = vmatprep.subr.mxu0 0.0
    %638 = vmatpush1.xpose.msra.mxu0 0.0
    %639 = vmatprep.subr.mxu0 0.0
    %640 = vmatpush1.xpose.msra.mxu0 0.0
    %641 = vmatprep.subr.mxu0 0.0
    %642 = vmatpush1.xpose.msra.mxu0 0.0
    %643 = vmatprep.subr.mxu0 0.0
    %644 = vmatpush1.xpose.msra.mxu0 0.0
    %645 = vmatprep.subr.mxu0 0.0
    %646 = vmatpush1.xpose.msra.mxu0 0.0
    %647 = vmatprep.subr.mxu0 0.0
    %648 = vmatpush1.xpose.msra.mxu0 0.0
    %649 = vmatprep.subr.mxu0 0.0
    %650 = vmatpush1.xpose.msra.mxu0 0.0
    %651 = vmatprep.subr.mxu0 0.0
    %652 = vmatpush1.xpose.msra.mxu0 0.0
    %653 = vmatprep.subr.mxu0 0.0
    %654 = vmatpush1.xpose.msra.mxu0 0.0
    %655 = vmatprep.subr.mxu0 0.0
    %656 = vmatpush1.xpose.msra.mxu0 0.0
    %657 = vmatprep.subr.mxu0 0.0
    %658 = vmatpush1.xpose.msra.mxu0 0.0
    %659 = vmatprep.subr.mxu0 0.0
    %660 = vmatpush1.xpose.msra.mxu0 %v633
    %661 = vmatprep.subr.mxu0 0.0
    %662 = vmatpush1.xpose.msra.mxu0 %v631
    %663 = vmatprep.subr.mxu0 0.0
    %664 = vmatpush1.xpose.msra.mxu0 %v629
    %665 = vmatprep.subr.mxu0 0.0
    %666 = vmatpush1.xpose.msra.mxu0 %v627
    %667 = vmatprep.subr.mxu0 0.0
    %668 = vmatpush2.xpose.msra.mxu0 0.0
    %669 = vmatprep.subr.mxu0 0.0
    %670 = vmatpush2.xpose.msra.mxu0 0.0
    %671 = vmatprep.subr.mxu0 0.0
    %672 = vmatpush2.xpose.msra.mxu0 0.0
    %673 = vmatprep.subr.mxu0 0.0
    %674 = vmatpush2.xpose.msra.mxu0 0.0
    %675 = vmatprep.subr.mxu0 0.0
    %676 = vmatpush2.xpose.msra.mxu0 0.0
    %677 = vmatprep.subr.mxu0 0.0
    %678 = vmatpush2.xpose.msra.mxu0 0.0
    %679 = vmatprep.subr.mxu0 0.0
    %680 = vmatpush2.xpose.msra.mxu0 0.0
    %681 = vmatprep.subr.mxu0 0.0
    %682 = vmatpush2.xpose.msra.mxu0 0.0
    %683 = vmatprep.subr.mxu0 0.0
    %684 = vmatpush2.xpose.msra.mxu0 0.0
    %685 = vmatprep.subr.mxu0 0.0
    %686 = vmatpush2.xpose.msra.mxu0 0.0
    %687 = vmatprep.subr.mxu0 0.0
    %688 = vmatpush2.xpose.msra.mxu0 0.0
    %689 = vmatprep.subr.mxu0 0.0
    %690 = vmatpush2.xpose.msra.mxu0 0.0
    %691 = vmatprep.subr.mxu0 0.0
    %692 = vmatpush2.xpose.msra.mxu0 0.0
    %693 = vmatprep.subr.mxu0 0.0
    %694 = vmatpush2.xpose.msra.mxu0 0.0
    %695 = vmatprep.subr.mxu0 0.0
    %696 = vmatpush2.xpose.msra.mxu0 0.0
    %697 = vmatprep.subr.mxu0 0.0
    %698 = vmatpush2.xpose.msra.mxu0 0.0
    %699 = vmatprep.mubr.f32.mxu0 0.0
    %700 = vmatmul.mubr.f32.gmra.mxu0 %v619
    %v701 = vpop.f32.mrf.mxu0
    %v702 = vadd.f32 %v200, %v701
    %v703 = vpop.f32.mrf.mxu0
    %704 = vmatprep.mubr.f32.mxu0 0.0
    %705 = vmatmul.mubr.f32.gmra.mxu0 %v621
    %v706 = vpop.f32.mrf.mxu0
    %v707 = vadd.f32 %v201, %v706
    %v708 = vpop.f32.mrf.mxu0
    %709 = vmatprep.mubr.f32.mxu0 0.0
    %710 = vmatmul.mubr.f32.gmra.mxu0 %v623
    %v711 = vpop.f32.mrf.mxu0
    %v712 = vadd.f32 %v202, %v711
    %v713 = vpop.f32.mrf.mxu0
    %714 = vmatprep.mubr.f32.mxu0 0.0
    %715 = vmatmul.mubr.f32.gmra.mxu0 %v625
    %v716 = vpop.f32.mrf.mxu0
    %v717 = vadd.f32 %v203, %v716
    %v718 = vpop.f32.mrf.mxu0
    %719 = vdwg.mxu0
    %724 = vrot.lane.b32.xlu0 %v446, 112
    %v725 = vpop.permute.xlu0 %724
    %726 = vrot.lane.b32.xlu0 %v449, 112
    %v727 = vpop.permute.xlu0 %726
    %728 = vrot.lane.b32.xlu0 %v454, 112
    %v729 = vpop.permute.xlu0 %728
    %730 = vrot.lane.b32.xlu0 %v457, 112
    %v731 = vpop.permute.xlu0 %730
    %v732 = vsel %vm618, %v446, 0
    %v734 = vsel %vm618, %v449, 0
    %v736 = vsel %vm618, %v454, 0
    %v738 = vsel %vm618, %v457, 0
    %v740 = vsel %vm618, %v725, 0
    %v742 = vsel %vm618, %v727, 0
    %v744 = vsel %vm618, %v729, 0
    %v746 = vsel %vm618, %v731, 0
    %748 = vmatprep.subr.mxu0 0.0
    %749 = vmatpush1.xpose.msra.mxu0 0.0
    %750 = vmatprep.subr.mxu0 0.0
    %751 = vmatpush1.xpose.msra.mxu0 0.0
    %752 = vmatprep.subr.mxu0 0.0
    %753 = vmatpush1.xpose.msra.mxu0 0.0
    %754 = vmatprep.subr.mxu0 0.0
    %755 = vmatpush1.xpose.msra.mxu0 0.0
    %756 = vmatprep.subr.mxu0 0.0
    %757 = vmatpush1.xpose.msra.mxu0 0.0
    %758 = vmatprep.subr.mxu0 0.0
    %759 = vmatpush1.xpose.msra.mxu0 0.0
    %760 = vmatprep.subr.mxu0 0.0
    %761 = vmatpush1.xpose.msra.mxu0 0.0
    %762 = vmatprep.subr.mxu0 0.0
    %763 = vmatpush1.xpose.msra.mxu0 0.0
    %764 = vmatprep.subr.mxu0 0.0
    %765 = vmatpush1.xpose.msra.mxu0 0.0
    %766 = vmatprep.subr.mxu0 0.0
    %767 = vmatpush1.xpose.msra.mxu0 0.0
    %768 = vmatprep.subr.mxu0 0.0
    %769 = vmatpush1.xpose.msra.mxu0 0.0
    %770 = vmatprep.subr.mxu0 0.0
    %771 = vmatpush1.xpose.msra.mxu0 0.0
    %772 = vmatprep.subr.mxu0 0.0
    %773 = vmatpush1.xpose.msra.mxu0 %v746
    %774 = vmatprep.subr.mxu0 0.0
    %775 = vmatpush1.xpose.msra.mxu0 %v744
    %776 = vmatprep.subr.mxu0 0.0
    %777 = vmatpush1.xpose.msra.mxu0 %v742
    %778 = vmatprep.subr.mxu0 0.0
    %779 = vmatpush1.xpose.msra.mxu0 %v740
    %780 = vmatprep.subr.mxu0 0.0
    %781 = vmatpush2.xpose.msra.mxu0 0.0
    %782 = vmatprep.subr.mxu0 0.0
    %783 = vmatpush2.xpose.msra.mxu0 0.0
    %784 = vmatprep.subr.mxu0 0.0
    %785 = vmatpush2.xpose.msra.mxu0 0.0
    %786 = vmatprep.subr.mxu0 0.0
    %787 = vmatpush2.xpose.msra.mxu0 0.0
    %788 = vmatprep.subr.mxu0 0.0
    %789 = vmatpush2.xpose.msra.mxu0 0.0
    %790 = vmatprep.subr.mxu0 0.0
    %791 = vmatpush2.xpose.msra.mxu0 0.0
    %792 = vmatprep.subr.mxu0 0.0
    %793 = vmatpush2.xpose.msra.mxu0 0.0
    %794 = vmatprep.subr.mxu0 0.0
    %795 = vmatpush2.xpose.msra.mxu0 0.0
    %796 = vmatprep.subr.mxu0 0.0
    %797 = vmatpush2.xpose.msra.mxu0 0.0
    %798 = vmatprep.subr.mxu0 0.0
    %799 = vmatpush2.xpose.msra.mxu0 0.0
    %800 = vmatprep.subr.mxu0 0.0
    %801 = vmatpush2.xpose.msra.mxu0 0.0
    %802 = vmatprep.subr.mxu0 0.0
    %803 = vmatpush2.xpose.msra.mxu0 0.0
    %804 = vmatprep.subr.mxu0 0.0
    %805 = vmatpush2.xpose.msra.mxu0 0.0
    %806 = vmatprep.subr.mxu0 0.0
    %807 = vmatpush2.xpose.msra.mxu0 0.0
    %808 = vmatprep.subr.mxu0 0.0
    %809 = vmatpush2.xpose.msra.mxu0 0.0
    %810 = vmatprep.subr.mxu0 0.0
    %811 = vmatpush2.xpose.msra.mxu0 0.0
    %812 = vmatprep.mubr.f32.mxu0 0.0
    %813 = vmatmul.mubr.f32.gmra.mxu0 %v732
    %v814 = vpop.f32.mrf.mxu0
    %v815 = vadd.f32 %v200, %v814
    %v816 = vpop.f32.mrf.mxu0
    %817 = vmatprep.mubr.f32.mxu0 0.0
    %818 = vmatmul.mubr.f32.gmra.mxu0 %v734
    %v819 = vpop.f32.mrf.mxu0
    %v820 = vadd.f32 %v201, %v819
    %v821 = vpop.f32.mrf.mxu0
    %822 = vmatprep.mubr.f32.mxu0 0.0
    %823 = vmatmul.mubr.f32.gmra.mxu0 %v736
    %v824 = vpop.f32.mrf.mxu0
    %v825 = vadd.f32 %v202, %v824
    %v826 = vpop.f32.mrf.mxu0
    %827 = vmatprep.mubr.f32.mxu0 0.0
    %828 = vmatmul.mubr.f32.gmra.mxu0 %v738
    %v829 = vpop.f32.mrf.mxu0
    %v830 = vadd.f32 %v203, %v829
    %v831 = vpop.f32.mrf.mxu0
    %832 = vdwg.mxu0
    %837 = vrot.lane.b32.xlu0 %v519, 112
    %v838 = vpop.permute.xlu0 %837
    %839 = vrot.lane.b32.xlu0 %v522, 112
    %v840 = vpop.permute.xlu0 %839
    %841 = vrot.lane.b32.xlu0 %v527, 112
    %v842 = vpop.permute.xlu0 %841
    %843 = vrot.lane.b32.xlu0 %v530, 112
    %v844 = vpop.permute.xlu0 %843
    %v845 = vsel %vm618, %v519, 0
    %v847 = vsel %vm618, %v522, 0
    %v849 = vsel %vm618, %v527, 0
    %v851 = vsel %vm618, %v530, 0
    %v853 = vsel %vm618, %v838, 0
    %v855 = vsel %vm618, %v840, 0
    %v857 = vsel %vm618, %v842, 0
    %v859 = vsel %vm618, %v844, 0
    %861 = vmatprep.subr.mxu0 0.0
    %862 = vmatpush1.xpose.msra.mxu0 0.0
    %863 = vmatprep.subr.mxu0 0.0
    %864 = vmatpush1.xpose.msra.mxu0 0.0
    %865 = vmatprep.subr.mxu0 0.0
    %866 = vmatpush1.xpose.msra.mxu0 0.0
    %867 = vmatprep.subr.mxu0 0.0
    %868 = vmatpush1.xpose.msra.mxu0 0.0
    %869 = vmatprep.subr.mxu0 0.0
    %870 = vmatpush1.xpose.msra.mxu0 0.0
    %871 = vmatprep.subr.mxu0 0.0
    %872 = vmatpush1.xpose.msra.mxu0 0.0
    %873 = vmatprep.subr.mxu0 0.0
    %874 = vmatpush1.xpose.msra.mxu0 0.0
    %875 = vmatprep.subr.mxu0 0.0
    %876 = vmatpush1.xpose.msra.mxu0 0.0
    %877 = vmatprep.subr.mxu0 0.0
    %878 = vmatpush1.xpose.msra.mxu0 0.0
    %879 = vmatprep.subr.mxu0 0.0
    %880 = vmatpush1.xpose.msra.mxu0 0.0
    %881 = vmatprep.subr.mxu0 0.0
    %882 = vmatpush1.xpose.msra.mxu0 0.0
    %883 = vmatprep.subr.mxu0 0.0
    %884 = vmatpush1.xpose.msra.mxu0 0.0
    %885 = vmatprep.subr.mxu0 0.0
    %886 = vmatpush1.xpose.msra.mxu0 %v859
    %887 = vmatprep.subr.mxu0 0.0
    %888 = vmatpush1.xpose.msra.mxu0 %v857
    %889 = vmatprep.subr.mxu0 0.0
    %890 = vmatpush1.xpose.msra.mxu0 %v855
    %891 = vmatprep.subr.mxu0 0.0
    %892 = vmatpush1.xpose.msra.mxu0 %v853
    %893 = vmatprep.subr.mxu0 0.0
    %894 = vmatpush2.xpose.msra.mxu0 0.0
    %895 = vmatprep.subr.mxu0 0.0
    %896 = vmatpush2.xpose.msra.mxu0 0.0
    %897 = vmatprep.subr.mxu0 0.0
    %898 = vmatpush2.xpose.msra.mxu0 0.0
    %899 = vmatprep.subr.mxu0 0.0
    %900 = vmatpush2.xpose.msra.mxu0 0.0
    %901 = vmatprep.subr.mxu0 0.0
    %902 = vmatpush2.xpose.msra.mxu0 0.0
    %903 = vmatprep.subr.mxu0 0.0
    %904 = vmatpush2.xpose.msra.mxu0 0.0
    %905 = vmatprep.subr.mxu0 0.0
    %906 = vmatpush2.xpose.msra.mxu0 0.0
    %907 = vmatprep.subr.mxu0 0.0
    %908 = vmatpush2.xpose.msra.mxu0 0.0
    %909 = vmatprep.subr.mxu0 0.0
    %910 = vmatpush2.xpose.msra.mxu0 0.0
    %911 = vmatprep.subr.mxu0 0.0
    %912 = vmatpush2.xpose.msra.mxu0 0.0
    %913 = vmatprep.subr.mxu0 0.0
    %914 = vmatpush2.xpose.msra.mxu0 0.0
    %915 = vmatprep.subr.mxu0 0.0
    %916 = vmatpush2.xpose.msra.mxu0 0.0
    %917 = vmatprep.subr.mxu0 0.0
    %918 = vmatpush2.xpose.msra.mxu0 0.0
    %919 = vmatprep.subr.mxu0 0.0
    %920 = vmatpush2.xpose.msra.mxu0 0.0
    %921 = vmatprep.subr.mxu0 0.0
    %922 = vmatpush2.xpose.msra.mxu0 0.0
    %923 = vmatprep.subr.mxu0 0.0
    %924 = vmatpush2.xpose.msra.mxu0 0.0
    %925 = vmatprep.mubr.f32.mxu0 0.0
    %926 = vmatmul.mubr.f32.gmra.mxu0 %v845
    %v927 = vpop.f32.mrf.mxu0
    %v928 = vadd.f32 %v200, %v927
    %v929 = vpop.f32.mrf.mxu0
    %930 = vmatprep.mubr.f32.mxu0 0.0
    %931 = vmatmul.mubr.f32.gmra.mxu0 %v847
    %v932 = vpop.f32.mrf.mxu0
    %v933 = vadd.f32 %v201, %v932
    %v934 = vpop.f32.mrf.mxu0
    %935 = vmatprep.mubr.f32.mxu0 0.0
    %936 = vmatmul.mubr.f32.gmra.mxu0 %v849
    %v937 = vpop.f32.mrf.mxu0
    %v938 = vadd.f32 %v202, %v937
    %v939 = vpop.f32.mrf.mxu0
    %940 = vmatprep.mubr.f32.mxu0 0.0
    %941 = vmatmul.mubr.f32.gmra.mxu0 %v851
    %v942 = vpop.f32.mrf.mxu0
    %v943 = vadd.f32 %v203, %v942
    %v944 = vpop.f32.mrf.mxu0
    %945 = vdwg.mxu0
    %950 = vrot.lane.b32.xlu0 %v592, 112
    %v951 = vpop.permute.xlu0 %950
    %952 = vrot.lane.b32.xlu0 %v595, 112
    %v953 = vpop.permute.xlu0 %952
    %954 = vrot.lane.b32.xlu0 %v600, 112
    %v955 = vpop.permute.xlu0 %954
    %956 = vrot.lane.b32.xlu0 %v603, 112
    %v957 = vpop.permute.xlu0 %956
    %v958 = vsel %vm618, %v592, 0
    %v960 = vsel %vm618, %v595, 0
    %v962 = vsel %vm618, %v600, 0
    %v964 = vsel %vm618, %v603, 0
    %v966 = vsel %vm618, %v951, 0
    %v968 = vsel %vm618, %v953, 0
    %v970 = vsel %vm618, %v955, 0
    %v972 = vsel %vm618, %v957, 0
    %974 = vmatprep.subr.mxu0 0.0
    %975 = vmatpush1.xpose.msra.mxu0 0.0
    %976 = vmatprep.subr.mxu0 0.0
    %977 = vmatpush1.xpose.msra.mxu0 0.0
    %978 = vmatprep.subr.mxu0 0.0
    %979 = vmatpush1.xpose.msra.mxu0 0.0
    %980 = vmatprep.subr.mxu0 0.0
    %981 = vmatpush1.xpose.msra.mxu0 0.0
    %982 = vmatprep.subr.mxu0 0.0
    %983 = vmatpush1.xpose.msra.mxu0 0.0
    %984 = vmatprep.subr.mxu0 0.0
    %985 = vmatpush1.xpose.msra.mxu0 0.0
    %986 = vmatprep.subr.mxu0 0.0
    %987 = vmatpush1.xpose.msra.mxu0 0.0
    %988 = vmatprep.subr.mxu0 0.0
    %989 = vmatpush1.xpose.msra.mxu0 0.0
    %990 = vmatprep.subr.mxu0 0.0
    %991 = vmatpush1.xpose.msra.mxu0 0.0
    %992 = vmatprep.subr.mxu0 0.0
    %993 = vmatpush1.xpose.msra.mxu0 0.0
    %994 = vmatprep.subr.mxu0 0.0
    %995 = vmatpush1.xpose.msra.mxu0 0.0
    %996 = vmatprep.subr.mxu0 0.0
    %997 = vmatpush1.xpose.msra.mxu0 0.0
    %998 = vmatprep.subr.mxu0 0.0
    %999 = vmatpush1.xpose.msra.mxu0 %v972
    %1000 = vmatprep.subr.mxu0 0.0
    %1001 = vmatpush1.xpose.msra.mxu0 %v970
    %1002 = vmatprep.subr.mxu0 0.0
    %1003 = vmatpush1.xpose.msra.mxu0 %v968
    %1004 = vmatprep.subr.mxu0 0.0
    %1005 = vmatpush1.xpose.msra.mxu0 %v966
    %1006 = vmatprep.subr.mxu0 0.0
    %1007 = vmatpush2.xpose.msra.mxu0 0.0
    %1008 = vmatprep.subr.mxu0 0.0
    %1009 = vmatpush2.xpose.msra.mxu0 0.0
    %1010 = vmatprep.subr.mxu0 0.0
    %1011 = vmatpush2.xpose.msra.mxu0 0.0
    %1012 = vmatprep.subr.mxu0 0.0
    %1013 = vmatpush2.xpose.msra.mxu0 0.0
    %1014 = vmatprep.subr.mxu0 0.0
    %1015 = vmatpush2.xpose.msra.mxu0 0.0
    %1016 = vmatprep.subr.mxu0 0.0
    %1017 = vmatpush2.xpose.msra.mxu0 0.0
    %1018 = vmatprep.subr.mxu0 0.0
    %1019 = vmatpush2.xpose.msra.mxu0 0.0
    %1020 = vmatprep.subr.mxu0 0.0
    %1021 = vmatpush2.xpose.msra.mxu0 0.0
    %1022 = vmatprep.subr.mxu0 0.0
    %1023 = vmatpush2.xpose.msra.mxu0 0.0
    %1024 = vmatprep.subr.mxu0 0.0
    %1025 = vmatpush2.xpose.msra.mxu0 0.0
    %1026 = vmatprep.subr.mxu0 0.0
    %1027 = vmatpush2.xpose.msra.mxu0 0.0
    %1028 = vmatprep.subr.mxu0 0.0
    %1029 = vmatpush2.xpose.msra.mxu0 0.0
    %1030 = vmatprep.subr.mxu0 0.0
    %1031 = vmatpush2.xpose.msra.mxu0 0.0
    %1032 = vmatprep.subr.mxu0 0.0
    %1033 = vmatpush2.xpose.msra.mxu0 0.0
    %1034 = vmatprep.subr.mxu0 0.0
    %1035 = vmatpush2.xpose.msra.mxu0 0.0
    %1036 = vmatprep.subr.mxu0 0.0
    %1037 = vmatpush2.xpose.msra.mxu0 0.0
    %1038 = vmatprep.mubr.f32.mxu0 0.0
    %1039 = vmatmul.mubr.f32.gmra.mxu0 %v958
    %v1040 = vpop.f32.mrf.mxu0
    %v1041 = vadd.f32 %v200, %v1040
    %v1042 = vpop.f32.mrf.mxu0
    %1043 = vmatprep.mubr.f32.mxu0 0.0
    %1044 = vmatmul.mubr.f32.gmra.mxu0 %v960
    %v1045 = vpop.f32.mrf.mxu0
    %v1046 = vadd.f32 %v201, %v1045
    %v1047 = vpop.f32.mrf.mxu0
    %1048 = vmatprep.mubr.f32.mxu0 0.0
    %1049 = vmatmul.mubr.f32.gmra.mxu0 %v962
    %v1050 = vpop.f32.mrf.mxu0
    %v1051 = vadd.f32 %v202, %v1050
    %v1052 = vpop.f32.mrf.mxu0
    %1053 = vmatprep.mubr.f32.mxu0 0.0
    %1054 = vmatmul.mubr.f32.gmra.mxu0 %v964
    %v1055 = vpop.f32.mrf.mxu0
    %v1056 = vadd.f32 %v203, %v1055
    %v1057 = vpop.f32.mrf.mxu0
    %1058 = vdwg.mxu0
    %vm1059 = vcmask 261120
    %v1060 = vsel %vm1059, %v702, -inf
    %1061 = vmax.xlane.f32.xlu0 %v1060
    %v1062 = vpop.xlane.xlu0 %1061
    %v1063 = vsel %vm1059, %v707, -inf
    %1064 = vmax.xlane.f32.xlu0 %v1063
    %v1065 = vpop.xlane.xlu0 %1064
    %v1066 = vsel %vm1059, %v712, -inf
    %1067 = vmax.xlane.f32.xlu0 %v1066
    %v1068 = vpop.xlane.xlu0 %1067
    %v1069 = vsel %vm1059, %v717, -inf
    %1070 = vmax.xlane.f32.xlu0 %v1069
    %v1071 = vpop.xlane.xlu0 %1070
    %v1072 = vsel %vm1059, %v815, -inf
    %1073 = vmax.xlane.f32.xlu0 %v1072
    %v1074 = vpop.xlane.xlu0 %1073
    %v1075 = vsel %vm1059, %v820, -inf
    %1076 = vmax.xlane.f32.xlu0 %v1075
    %v1077 = vpop.xlane.xlu0 %1076
    %v1078 = vsel %vm1059, %v825, -inf
    %1079 = vmax.xlane.f32.xlu0 %v1078
    %v1080 = vpop.xlane.xlu0 %1079
    %v1081 = vsel %vm1059, %v830, -inf
    %1082 = vmax.xlane.f32.xlu0 %v1081
    %v1083 = vpop.xlane.xlu0 %1082
    %v1084 = vsel %vm1059, %v928, -inf
    %1085 = vmax.xlane.f32.xlu0 %v1084
    %v1086 = vpop.xlane.xlu0 %1085
    %v1087 = vsel %vm1059, %v933, -inf
    %1088 = vmax.xlane.f32.xlu0 %v1087
    %v1089 = vpop.xlane.xlu0 %1088
    %v1090 = vsel %vm1059, %v938, -inf
    %1091 = vmax.xlane.f32.xlu0 %v1090
    %v1092 = vpop.xlane.xlu0 %1091
    %v1093 = vsel %vm1059, %v943, -inf
    %1094 = vmax.xlane.f32.xlu0 %v1093
    %v1095 = vpop.xlane.xlu0 %1094
    %v1096 = vsel %vm1059, %v1041, -inf
    %1097 = vmax.xlane.f32.xlu0 %v1096
    %v1098 = vpop.xlane.xlu0 %1097
    %v1099 = vsel %vm1059, %v1046, -inf
    %1100 = vmax.xlane.f32.xlu0 %v1099
    %v1101 = vpop.xlane.xlu0 %1100
    %v1102 = vsel %vm1059, %v1051, -inf
    %1103 = vmax.xlane.f32.xlu0 %v1102
    %v1104 = vpop.xlane.xlu0 %1103
    %v1105 = vsel %vm1059, %v1056, -inf
    %1106 = vmax.xlane.f32.xlu0 %v1105
    %v1107 = vpop.xlane.xlu0 %1106
    %v1108 = vsub.f32 %v702, %v1062
    %v1109 = vsub.f32 %v707, %v1065
    %v1110 = vsub.f32 %v712, %v1068
    %v1111 = vsub.f32 %v717, %v1071
    %v1112 = vsub.f32 %v815, %v1074
    %v1113 = vsub.f32 %v820, %v1077
    %v1114 = vsub.f32 %v825, %v1080
    %v1115 = vsub.f32 %v830, %v1083
    %v1116 = vsub.f32 %v928, %v1086
    %v1117 = vsub.f32 %v933, %v1089
    %v1118 = vsub.f32 %v938, %v1092
    %v1119 = vsub.f32 %v943, %v1095
    %v1120 = vsub.f32 %v1041, %v1098
    %v1121 = vsub.f32 %v1046, %v1101
    %v1122 = vsub.f32 %v1051, %v1104
    %v1123 = vsub.f32 %v1056, %v1107
    %v1124 = vmul.f32 %v1108, 1.442695
    %v1125 = vpow.pop %v1124
    %v1126 = vmul.f32 %v1109, 1.442695
    %v1127 = vpow.pop %v1126
    %v1128 = vmul.f32 %v1110, 1.442695
    %v1129 = vpow.pop %v1128
    %v1130 = vmul.f32 %v1111, 1.442695
    %v1131 = vpow.pop %v1130
    %v1132 = vmul.f32 %v1112, 1.442695
    %v1133 = vpow.pop %v1132
    %v1134 = vmul.f32 %v1113, 1.442695
    %v1135 = vpow.pop %v1134
    %v1136 = vmul.f32 %v1114, 1.442695
    %v1137 = vpow.pop %v1136
    %v1138 = vmul.f32 %v1115, 1.442695
    %v1139 = vpow.pop %v1138
    %v1140 = vmul.f32 %v1116, 1.442695
    %v1141 = vpow.pop %v1140
    %v1142 = vmul.f32 %v1117, 1.442695
    %v1143 = vpow.pop %v1142
    %v1144 = vmul.f32 %v1118, 1.442695
    %v1145 = vpow.pop %v1144
    %v1146 = vmul.f32 %v1119, 1.442695
    %v1147 = vpow.pop %v1146
    %v1148 = vmul.f32 %v1120, 1.442695
    %v1149 = vpow.pop %v1148
    %v1150 = vmul.f32 %v1121, 1.442695
    %v1151 = vpow.pop %v1150
    %v1152 = vmul.f32 %v1122, 1.442695
    %v1153 = vpow.pop %v1152
    %v1154 = vmul.f32 %v1123, 1.442695
    %v1155 = vpow.pop %v1154
    %v1156 = vsel %vm1059, %v1125, 0.0
    %1157 = vadd.xlane.f32.xlu0 %v1156
    %v1158 = vpop.xlane.xlu0 %1157
    %v1159 = vsel %vm1059, %v1127, 0.0
    %1160 = vadd.xlane.f32.xlu0 %v1159
    %v1161 = vpop.xlane.xlu0 %1160
    %v1162 = vsel %vm1059, %v1129, 0.0
    %1163 = vadd.xlane.f32.xlu0 %v1162
    %v1164 = vpop.xlane.xlu0 %1163
    %v1165 = vsel %vm1059, %v1131, 0.0
    %1166 = vadd.xlane.f32.xlu0 %v1165
    %v1167 = vpop.xlane.xlu0 %1166
    %v1168 = vsel %vm1059, %v1133, 0.0
    %1169 = vadd.xlane.f32.xlu0 %v1168
    %v1170 = vpop.xlane.xlu0 %1169
    %v1171 = vsel %vm1059, %v1135, 0.0
    %1172 = vadd.xlane.f32.xlu0 %v1171
    %v1173 = vpop.xlane.xlu0 %1172
    %v1174 = vsel %vm1059, %v1137, 0.0
    %1175 = vadd.xlane.f32.xlu0 %v1174
    %v1176 = vpop.xlane.xlu0 %1175
    %v1177 = vsel %vm1059, %v1139, 0.0
    %1178 = vadd.xlane.f32.xlu0 %v1177
    %v1179 = vpop.xlane.xlu0 %1178
    %v1180 = vsel %vm1059, %v1141, 0.0
    %1181 = vadd.xlane.f32.xlu0 %v1180
    %v1182 = vpop.xlane.xlu0 %1181
    %v1183 = vsel %vm1059, %v1143, 0.0
    %1184 = vadd.xlane.f32.xlu0 %v1183
    %v1185 = vpop.xlane.xlu0 %1184
    %v1186 = vsel %vm1059, %v1145, 0.0
    %1187 = vadd.xlane.f32.xlu0 %v1186
    %v1188 = vpop.xlane.xlu0 %1187
    %v1189 = vsel %vm1059, %v1147, 0.0
    %1190 = vadd.xlane.f32.xlu0 %v1189
    %v1191 = vpop.xlane.xlu0 %1190
    %v1192 = vsel %vm1059, %v1149, 0.0
    %1193 = vadd.xlane.f32.xlu0 %v1192
    %v1194 = vpop.xlane.xlu0 %1193
    %v1195 = vsel %vm1059, %v1151, 0.0
    %1196 = vadd.xlane.f32.xlu0 %v1195
    %v1197 = vpop.xlane.xlu0 %1196
    %v1198 = vsel %vm1059, %v1153, 0.0
    %1199 = vadd.xlane.f32.xlu0 %v1198
    %v1200 = vpop.xlane.xlu0 %1199
    %v1201 = vsel %vm1059, %v1155, 0.0
    %1202 = vadd.xlane.f32.xlu0 %v1201
    %v1203 = vpop.xlane.xlu0 %1202
    %v1204 = vrcp.pop %v1158
    %v1205 = vrcp.pop %v1161
    %v1206 = vrcp.pop %v1164
    %v1207 = vrcp.pop %v1167
    %v1208 = vrcp.pop %v1170
    %v1209 = vrcp.pop %v1173
    %v1210 = vrcp.pop %v1176
    %v1211 = vrcp.pop %v1179
    %v1212 = vrcp.pop %v1182
    %v1213 = vrcp.pop %v1185
    %v1214 = vrcp.pop %v1188
    %v1215 = vrcp.pop %v1191
    %v1216 = vrcp.pop %v1194
    %v1217 = vrcp.pop %v1197
    %v1218 = vrcp.pop %v1200
    %v1219 = vrcp.pop %v1203
    %v1220 = vmul.f32 %v1125, %v1204
    %v1221 = vmul.f32 %v1127, %v1205
    %v1222 = vmul.f32 %v1129, %v1206
    %v1223 = vmul.f32 %v1131, %v1207
    %v1224 = vmul.f32 %v1133, %v1208
    %v1225 = vmul.f32 %v1135, %v1209
    %v1226 = vmul.f32 %v1137, %v1210
    %v1227 = vmul.f32 %v1139, %v1211
    %v1228 = vmul.f32 %v1141, %v1212
    %v1229 = vmul.f32 %v1143, %v1213
    %v1230 = vmul.f32 %v1145, %v1214
    %v1231 = vmul.f32 %v1147, %v1215
    %v1232 = vmul.f32 %v1149, %v1216
    %v1233 = vmul.f32 %v1151, %v1217
    %v1234 = vmul.f32 %v1153, %v1218
    %v1235 = vmul.f32 %v1155, %v1219
    %1236 = vrot.lane.b32.xlu0 %v373, 96
    %v1237 = vpop.permute.xlu0 %1236
    %1238 = vrot.lane.b32.xlu0 %v376, 96
    %v1239 = vpop.permute.xlu0 %1238
    %1240 = vrot.lane.b32.xlu0 %v381, 96
    %v1241 = vpop.permute.xlu0 %1240
    %1242 = vrot.lane.b32.xlu0 %v384, 96
    %v1243 = vpop.permute.xlu0 %1242
    %v1249 = vsel %vm1059, %v1220, 0
    %v1252 = vsel %vm1059, %v1221, 0
    %v1255 = vsel %vm1059, %v1222, 0
    %v1258 = vsel %vm1059, %v1223, 0
    %1260 = vmatprep.subr.mxu0 0.0
    %1261 = vmatpush1.msra.mxu0 0.0
    %1262 = vmatprep.subr.mxu0 0.0
    %1263 = vmatpush1.msra.mxu0 0.0
    %1264 = vmatprep.subr.mxu0 0.0
    %1265 = vmatpush1.msra.mxu0 0.0
    %1266 = vmatprep.subr.mxu0 0.0
    %1267 = vmatpush1.msra.mxu0 0.0
    %1268 = vmatprep.subr.mxu0 0.0
    %1269 = vmatpush1.msra.mxu0 0.0
    %1270 = vmatprep.subr.mxu0 0.0
    %1271 = vmatpush1.msra.mxu0 0.0
    %1272 = vmatprep.subr.mxu0 0.0
    %1273 = vmatpush1.msra.mxu0 0.0
    %1274 = vmatprep.subr.mxu0 0.0
    %1275 = vmatpush1.msra.mxu0 0.0
    %1276 = vmatprep.subr.mxu0 0.0
    %1277 = vmatpush1.msra.mxu0 0.0
    %1278 = vmatprep.subr.mxu0 0.0
    %1279 = vmatpush1.msra.mxu0 0.0
    %1280 = vmatprep.subr.mxu0 0.0
    %1281 = vmatpush1.msra.mxu0 0.0
    %1282 = vmatprep.subr.mxu0 0.0
    %1283 = vmatpush1.msra.mxu0 0.0
    %1284 = vmatprep.subr.mxu0 0.0
    %1285 = vmatpush1.msra.mxu0 %v1243
    %1286 = vmatprep.subr.mxu0 0.0
    %1287 = vmatpush1.msra.mxu0 %v1241
    %1288 = vmatprep.subr.mxu0 0.0
    %1289 = vmatpush1.msra.mxu0 %v1239
    %1290 = vmatprep.subr.mxu0 0.0
    %1291 = vmatpush1.msra.mxu0 %v1237
    %1292 = vmatprep.subr.mxu0 0.0
    %1293 = vmatpush2.msra.mxu0 0.0
    %1294 = vmatprep.subr.mxu0 0.0
    %1295 = vmatpush2.msra.mxu0 0.0
    %1296 = vmatprep.subr.mxu0 0.0
    %1297 = vmatpush2.msra.mxu0 0.0
    %1298 = vmatprep.subr.mxu0 0.0
    %1299 = vmatpush2.msra.mxu0 0.0
    %1300 = vmatprep.subr.mxu0 0.0
    %1301 = vmatpush2.msra.mxu0 0.0
    %1302 = vmatprep.subr.mxu0 0.0
    %1303 = vmatpush2.msra.mxu0 0.0
    %1304 = vmatprep.subr.mxu0 0.0
    %1305 = vmatpush2.msra.mxu0 0.0
    %1306 = vmatprep.subr.mxu0 0.0
    %1307 = vmatpush2.msra.mxu0 0.0
    %1308 = vmatprep.subr.mxu0 0.0
    %1309 = vmatpush2.msra.mxu0 0.0
    %1310 = vmatprep.subr.mxu0 0.0
    %1311 = vmatpush2.msra.mxu0 0.0
    %1312 = vmatprep.subr.mxu0 0.0
    %1313 = vmatpush2.msra.mxu0 0.0
    %1314 = vmatprep.subr.mxu0 0.0
    %1315 = vmatpush2.msra.mxu0 0.0
    %1316 = vmatprep.subr.mxu0 0.0
    %1317 = vmatpush2.msra.mxu0 0.0
    %1318 = vmatprep.subr.mxu0 0.0
    %1319 = vmatpush2.msra.mxu0 0.0
    %1320 = vmatprep.subr.mxu0 0.0
    %1321 = vmatpush2.msra.mxu0 0.0
    %1322 = vmatprep.subr.mxu0 0.0
    %1323 = vmatpush2.msra.mxu0 0.0
    %1324 = vmatprep.mubr.f32.mxu0 0.0
    %1325 = vmatmul.mubr.f32.gmra.mxu0 %v1249
    %v1326 = vpop.f32.mrf.mxu0
    %v1327 = vadd.f32 0.0, %v1326
    %v1328 = vpop.f32.mrf.mxu0
    %1329 = vmatprep.mubr.f32.mxu0 0.0
    %1330 = vmatmul.mubr.f32.gmra.mxu0 %v1252
    %v1331 = vpop.f32.mrf.mxu0
    %v1332 = vadd.f32 0.0, %v1331
    %v1333 = vpop.f32.mrf.mxu0
    %1334 = vmatprep.mubr.f32.mxu0 0.0
    %1335 = vmatmul.mubr.f32.gmra.mxu0 %v1255
    %v1336 = vpop.f32.mrf.mxu0
    %v1337 = vadd.f32 0.0, %v1336
    %v1338 = vpop.f32.mrf.mxu0
    %1339 = vmatprep.mubr.f32.mxu0 0.0
    %1340 = vmatmul.mubr.f32.gmra.mxu0 %v1258
    %v1341 = vpop.f32.mrf.mxu0
    %v1342 = vadd.f32 0.0, %v1341
    %v1343 = vpop.f32.mrf.mxu0
    %1344 = vdwg.mxu0
    %1345 = vrot.lane.b32.xlu0 %v446, 96
    %v1346 = vpop.permute.xlu0 %1345
    %1347 = vrot.lane.b32.xlu0 %v449, 96
    %v1348 = vpop.permute.xlu0 %1347
    %1349 = vrot.lane.b32.xlu0 %v454, 96
    %v1350 = vpop.permute.xlu0 %1349
    %1351 = vrot.lane.b32.xlu0 %v457, 96
    %v1352 = vpop.permute.xlu0 %1351
    %v1358 = vsel %vm1059, %v1224, 0
    %v1361 = vsel %vm1059, %v1225, 0
    %v1364 = vsel %vm1059, %v1226, 0
    %v1367 = vsel %vm1059, %v1227, 0
    %1369 = vmatprep.subr.mxu0 0.0
    %1370 = vmatpush1.msra.mxu0 0.0
    %1371 = vmatprep.subr.mxu0 0.0
    %1372 = vmatpush1.msra.mxu0 0.0
    %1373 = vmatprep.subr.mxu0 0.0
    %1374 = vmatpush1.msra.mxu0 0.0
    %1375 = vmatprep.subr.mxu0 0.0
    %1376 = vmatpush1.msra.mxu0 0.0
    %1377 = vmatprep.subr.mxu0 0.0
    %1378 = vmatpush1.msra.mxu0 0.0
    %1379 = vmatprep.subr.mxu0 0.0
    %1380 = vmatpush1.msra.mxu0 0.0
    %1381 = vmatprep.subr.mxu0 0.0
    %1382 = vmatpush1.msra.mxu0 0.0
    %1383 = vmatprep.subr.mxu0 0.0
    %1384 = vmatpush1.msra.mxu0 0.0
    %1385 = vmatprep.subr.mxu0 0.0
    %1386 = vmatpush1.msra.mxu0 0.0
    %1387 = vmatprep.subr.mxu0 0.0
    %1388 = vmatpush1.msra.mxu0 0.0
    %1389 = vmatprep.subr.mxu0 0.0
    %1390 = vmatpush1.msra.mxu0 0.0
    %1391 = vmatprep.subr.mxu0 0.0
    %1392 = vmatpush1.msra.mxu0 0.0
    %1393 = vmatprep.subr.mxu0 0.0
    %1394 = vmatpush1.msra.mxu0 %v1352
    %1395 = vmatprep.subr.mxu0 0.0
    %1396 = vmatpush1.msra.mxu0 %v1350
    %1397 = vmatprep.subr.mxu0 0.0
    %1398 = vmatpush1.msra.mxu0 %v1348
    %1399 = vmatprep.subr.mxu0 0.0
    %1400 = vmatpush1.msra.mxu0 %v1346
    %1401 = vmatprep.subr.mxu0 0.0
    %1402 = vmatpush2.msra.mxu0 0.0
    %1403 = vmatprep.subr.mxu0 0.0
    %1404 = vmatpush2.msra.mxu0 0.0
    %1405 = vmatprep.subr.mxu0 0.0
    %1406 = vmatpush2.msra.mxu0 0.0
    %1407 = vmatprep.subr.mxu0 0.0
    %1408 = vmatpush2.msra.mxu0 0.0
    %1409 = vmatprep.subr.mxu0 0.0
    %1410 = vmatpush2.msra.mxu0 0.0
    %1411 = vmatprep.subr.mxu0 0.0
    %1412 = vmatpush2.msra.mxu0 0.0
    %1413 = vmatprep.subr.mxu0 0.0
    %1414 = vmatpush2.msra.mxu0 0.0
    %1415 = vmatprep.subr.mxu0 0.0
    %1416 = vmatpush2.msra.mxu0 0.0
    %1417 = vmatprep.subr.mxu0 0.0
    %1418 = vmatpush2.msra.mxu0 0.0
    %1419 = vmatprep.subr.mxu0 0.0
    %1420 = vmatpush2.msra.mxu0 0.0
    %1421 = vmatprep.subr.mxu0 0.0
    %1422 = vmatpush2.msra.mxu0 0.0
    %1423 = vmatprep.subr.mxu0 0.0
    %1424 = vmatpush2.msra.mxu0 0.0
    %1425 = vmatprep.subr.mxu0 0.0
    %1426 = vmatpush2.msra.mxu0 0.0
    %1427 = vmatprep.subr.mxu0 0.0
    %1428 = vmatpush2.msra.mxu0 0.0
    %1429 = vmatprep.subr.mxu0 0.0
    %1430 = vmatpush2.msra.mxu0 0.0
    %1431 = vmatprep.subr.mxu0 0.0
    %1432 = vmatpush2.msra.mxu0 0.0
    %1433 = vmatprep.mubr.f32.mxu0 0.0
    %1434 = vmatmul.mubr.f32.gmra.mxu0 %v1358
    %v1435 = vpop.f32.mrf.mxu0
    %v1436 = vadd.f32 0.0, %v1435
    %v1437 = vpop.f32.mrf.mxu0
    %1438 = vmatprep.mubr.f32.mxu0 0.0
    %1439 = vmatmul.mubr.f32.gmra.mxu0 %v1361
    %v1440 = vpop.f32.mrf.mxu0
    %v1441 = vadd.f32 0.0, %v1440
    %v1442 = vpop.f32.mrf.mxu0
    %1443 = vmatprep.mubr.f32.mxu0 0.0
    %1444 = vmatmul.mubr.f32.gmra.mxu0 %v1364
    %v1445 = vpop.f32.mrf.mxu0
    %v1446 = vadd.f32 0.0, %v1445
    %v1447 = vpop.f32.mrf.mxu0
    %1448 = vmatprep.mubr.f32.mxu0 0.0
    %1449 = vmatmul.mubr.f32.gmra.mxu0 %v1367
    %v1450 = vpop.f32.mrf.mxu0
    %v1451 = vadd.f32 0.0, %v1450
    %v1452 = vpop.f32.mrf.mxu0
    %1453 = vdwg.mxu0
    %1454 = vrot.lane.b32.xlu0 %v519, 96
    %v1455 = vpop.permute.xlu0 %1454
    %1456 = vrot.lane.b32.xlu0 %v522, 96
    %v1457 = vpop.permute.xlu0 %1456
    %1458 = vrot.lane.b32.xlu0 %v527, 96
    %v1459 = vpop.permute.xlu0 %1458
    %1460 = vrot.lane.b32.xlu0 %v530, 96
    %v1461 = vpop.permute.xlu0 %1460
    %v1467 = vsel %vm1059, %v1228, 0
    %v1470 = vsel %vm1059, %v1229, 0
    %v1473 = vsel %vm1059, %v1230, 0
    %v1476 = vsel %vm1059, %v1231, 0
    %1478 = vmatprep.subr.mxu0 0.0
    %1479 = vmatpush1.msra.mxu0 0.0
    %1480 = vmatprep.subr.mxu0 0.0
    %1481 = vmatpush1.msra.mxu0 0.0
    %1482 = vmatprep.subr.mxu0 0.0
    %1483 = vmatpush1.msra.mxu0 0.0
    %1484 = vmatprep.subr.mxu0 0.0
    %1485 = vmatpush1.msra.mxu0 0.0
    %1486 = vmatprep.subr.mxu0 0.0
    %1487 = vmatpush1.msra.mxu0 0.0
    %1488 = vmatprep.subr.mxu0 0.0
    %1489 = vmatpush1.msra.mxu0 0.0
    %1490 = vmatprep.subr.mxu0 0.0
    %1491 = vmatpush1.msra.mxu0 0.0
    %1492 = vmatprep.subr.mxu0 0.0
    %1493 = vmatpush1.msra.mxu0 0.0
    %1494 = vmatprep.subr.mxu0 0.0
    %1495 = vmatpush1.msra.mxu0 0.0
    %1496 = vmatprep.subr.mxu0 0.0
    %1497 = vmatpush1.msra.mxu0 0.0
    %1498 = vmatprep.subr.mxu0 0.0
    %1499 = vmatpush1.msra.mxu0 0.0
    %1500 = vmatprep.subr.mxu0 0.0
    %1501 = vmatpush1.msra.mxu0 0.0
    %1502 = vmatprep.subr.mxu0 0.0
    %1503 = vmatpush1.msra.mxu0 %v1461
    %1504 = vmatprep.subr.mxu0 0.0
    %1505 = vmatpush1.msra.mxu0 %v1459
    %1506 = vmatprep.subr.mxu0 0.0
    %1507 = vmatpush1.msra.mxu0 %v1457
    %1508 = vmatprep.subr.mxu0 0.0
    %1509 = vmatpush1.msra.mxu0 %v1455
    %1510 = vmatprep.subr.mxu0 0.0
    %1511 = vmatpush2.msra.mxu0 0.0
    %1512 = vmatprep.subr.mxu0 0.0
    %1513 = vmatpush2.msra.mxu0 0.0
    %1514 = vmatprep.subr.mxu0 0.0
    %1515 = vmatpush2.msra.mxu0 0.0
    %1516 = vmatprep.subr.mxu0 0.0
    %1517 = vmatpush2.msra.mxu0 0.0
    %1518 = vmatprep.subr.mxu0 0.0
    %1519 = vmatpush2.msra.mxu0 0.0
    %1520 = vmatprep.subr.mxu0 0.0
    %1521 = vmatpush2.msra.mxu0 0.0
    %1522 = vmatprep.subr.mxu0 0.0
    %1523 = vmatpush2.msra.mxu0 0.0
    %1524 = vmatprep.subr.mxu0 0.0
    %1525 = vmatpush2.msra.mxu0 0.0
    %1526 = vmatprep.subr.mxu0 0.0
    %1527 = vmatpush2.msra.mxu0 0.0
    %1528 = vmatprep.subr.mxu0 0.0
    %1529 = vmatpush2.msra.mxu0 0.0
    %1530 = vmatprep.subr.mxu0 0.0
    %1531 = vmatpush2.msra.mxu0 0.0
    %1532 = vmatprep.subr.mxu0 0.0
    %1533 = vmatpush2.msra.mxu0 0.0
    %1534 = vmatprep.subr.mxu0 0.0
    %1535 = vmatpush2.msra.mxu0 0.0
    %1536 = vmatprep.subr.mxu0 0.0
    %1537 = vmatpush2.msra.mxu0 0.0
    %1538 = vmatprep.subr.mxu0 0.0
    %1539 = vmatpush2.msra.mxu0 0.0
    %1540 = vmatprep.subr.mxu0 0.0
    %1541 = vmatpush2.msra.mxu0 0.0
    %1542 = vmatprep.mubr.f32.mxu0 0.0
    %1543 = vmatmul.mubr.f32.gmra.mxu0 %v1467
    %v1544 = vpop.f32.mrf.mxu0
    %v1545 = vadd.f32 0.0, %v1544
    %v1546 = vpop.f32.mrf.mxu0
    %1547 = vmatprep.mubr.f32.mxu0 0.0
    %1548 = vmatmul.mubr.f32.gmra.mxu0 %v1470
    %v1549 = vpop.f32.mrf.mxu0
    %v1550 = vadd.f32 0.0, %v1549
    %v1551 = vpop.f32.mrf.mxu0
    %1552 = vmatprep.mubr.f32.mxu0 0.0
    %1553 = vmatmul.mubr.f32.gmra.mxu0 %v1473
    %v1554 = vpop.f32.mrf.mxu0
    %v1555 = vadd.f32 0.0, %v1554
    %v1556 = vpop.f32.mrf.mxu0
    %1557 = vmatprep.mubr.f32.mxu0 0.0
    %1558 = vmatmul.mubr.f32.gmra.mxu0 %v1476
    %v1559 = vpop.f32.mrf.mxu0
    %v1560 = vadd.f32 0.0, %v1559
    %v1561 = vpop.f32.mrf.mxu0
    %1562 = vdwg.mxu0
    %1563 = vrot.lane.b32.xlu0 %v592, 96
    %v1564 = vpop.permute.xlu0 %1563
    %1565 = vrot.lane.b32.xlu0 %v595, 96
    %v1566 = vpop.permute.xlu0 %1565
    %1567 = vrot.lane.b32.xlu0 %v600, 96
    %v1568 = vpop.permute.xlu0 %1567
    %1569 = vrot.lane.b32.xlu0 %v603, 96
    %v1570 = vpop.permute.xlu0 %1569
    %v1576 = vsel %vm1059, %v1232, 0
    %v1579 = vsel %vm1059, %v1233, 0
    %v1582 = vsel %vm1059, %v1234, 0
    %v1585 = vsel %vm1059, %v1235, 0
    %1587 = vmatprep.subr.mxu0 0.0
    %1588 = vmatpush1.msra.mxu0 0.0
    %1589 = vmatprep.subr.mxu0 0.0
    %1590 = vmatpush1.msra.mxu0 0.0
    %1591 = vmatprep.subr.mxu0 0.0
    %1592 = vmatpush1.msra.mxu0 0.0
    %1593 = vmatprep.subr.mxu0 0.0
    %1594 = vmatpush1.msra.mxu0 0.0
    %1595 = vmatprep.subr.mxu0 0.0
    %1596 = vmatpush1.msra.mxu0 0.0
    %1597 = vmatprep.subr.mxu0 0.0
    %1598 = vmatpush1.msra.mxu0 0.0
    %1599 = vmatprep.subr.mxu0 0.0
    %1600 = vmatpush1.msra.mxu0 0.0
    %1601 = vmatprep.subr.mxu0 0.0
    %1602 = vmatpush1.msra.mxu0 0.0
    %1603 = vmatprep.subr.mxu0 0.0
    %1604 = vmatpush1.msra.mxu0 0.0
    %1605 = vmatprep.subr.mxu0 0.0
    %1606 = vmatpush1.msra.mxu0 0.0
    %1607 = vmatprep.subr.mxu0 0.0
    %1608 = vmatpush1.msra.mxu0 0.0
    %1609 = vmatprep.subr.mxu0 0.0
    %1610 = vmatpush1.msra.mxu0 0.0
    %1611 = vmatprep.subr.mxu0 0.0
    %1612 = vmatpush1.msra.mxu0 %v1570
    %1613 = vmatprep.subr.mxu0 0.0
    %1614 = vmatpush1.msra.mxu0 %v1568
    %1615 = vmatprep.subr.mxu0 0.0
    %1616 = vmatpush1.msra.mxu0 %v1566
    %1617 = vmatprep.subr.mxu0 0.0
    %1618 = vmatpush1.msra.mxu0 %v1564
    %1619 = vmatprep.subr.mxu0 0.0
    %1620 = vmatpush2.msra.mxu0 0.0
    %1621 = vmatprep.subr.mxu0 0.0
    %1622 = vmatpush2.msra.mxu0 0.0
    %1623 = vmatprep.subr.mxu0 0.0
    %1624 = vmatpush2.msra.mxu0 0.0
    %1625 = vmatprep.subr.mxu0 0.0
    %1626 = vmatpush2.msra.mxu0 0.0
    %1627 = vmatprep.subr.mxu0 0.0
    %1628 = vmatpush2.msra.mxu0 0.0
    %1629 = vmatprep.subr.mxu0 0.0
    %1630 = vmatpush2.msra.mxu0 0.0
    %1631 = vmatprep.subr.mxu0 0.0
    %1632 = vmatpush2.msra.mxu0 0.0
    %1633 = vmatprep.subr.mxu0 0.0
    %1634 = vmatpush2.msra.mxu0 0.0
    %1635 = vmatprep.subr.mxu0 0.0
    %1636 = vmatpush2.msra.mxu0 0.0
    %1637 = vmatprep.subr.mxu0 0.0
    %1638 = vmatpush2.msra.mxu0 0.0
    %1639 = vmatprep.subr.mxu0 0.0
    %1640 = vmatpush2.msra.mxu0 0.0
    %1641 = vmatprep.subr.mxu0 0.0
    %1642 = vmatpush2.msra.mxu0 0.0
    %1643 = vmatprep.subr.mxu0 0.0
    %1644 = vmatpush2.msra.mxu0 0.0
    %1645 = vmatprep.subr.mxu0 0.0
    %1646 = vmatpush2.msra.mxu0 0.0
    %1647 = vmatprep.subr.mxu0 0.0
    %1648 = vmatpush2.msra.mxu0 0.0
    %1649 = vmatprep.subr.mxu0 0.0
    %1650 = vmatpush2.msra.mxu0 0.0
    %1651 = vmatprep.mubr.f32.mxu0 0.0
    %1652 = vmatmul.mubr.f32.gmra.mxu0 %v1576
    %v1653 = vpop.f32.mrf.mxu0
    %v1654 = vadd.f32 0.0, %v1653
    %v1655 = vpop.f32.mrf.mxu0
    %1656 = vmatprep.mubr.f32.mxu0 0.0
    %1657 = vmatmul.mubr.f32.gmra.mxu0 %v1579
    %v1658 = vpop.f32.mrf.mxu0
    %v1659 = vadd.f32 0.0, %v1658
    %v1660 = vpop.f32.mrf.mxu0
    %1661 = vmatprep.mubr.f32.mxu0 0.0
    %1662 = vmatmul.mubr.f32.gmra.mxu0 %v1582
    %v1663 = vpop.f32.mrf.mxu0
    %v1664 = vadd.f32 0.0, %v1663
    %v1665 = vpop.f32.mrf.mxu0
    %1666 = vmatprep.mubr.f32.mxu0 0.0
    %1667 = vmatmul.mubr.f32.gmra.mxu0 %v1585
    %v1668 = vpop.f32.mrf.mxu0
    %v1669 = vadd.f32 0.0, %v1668
    %v1670 = vpop.f32.mrf.mxu0
    %1671 = vdwg.mxu0
    %v1672 = vpack.c.bf16 %v1332, %v1327
    %v1673 = vpack.c.bf16 %v1342, %v1337
    %v1674 = vpack.c.bf16 %v1441, %v1436
    %v1675 = vpack.c.bf16 %v1451, %v1446
    %v1676 = vpack.c.bf16 %v1550, %v1545
    %v1677 = vpack.c.bf16 %v1560, %v1555
    %v1678 = vpack.c.bf16 %v1659, %v1654
    %v1679 = vpack.c.bf16 %v1669, %v1664
    %v1680 = vld [vmem:[%s3] sm:$0xf]
    %v1681 = vld [vmem:[%s3 + $0x4] sm:$0xf]
    %v1682 = vld [vmem:[%s3 + $0x8] sm:$0xf]
    %v1683 = vld [vmem:[%s3 + $0xc] sm:$0xf]
    %v1684 = vld [vmem:[%s3 + $0x10] sm:$0xf]
    %v1685 = vld [vmem:[%s3 + $0x14] sm:$0xf]
    %v1686 = vld [vmem:[%s3 + $0x18] sm:$0xf]
    %v1687 = vld [vmem:[%s3 + $0x1c] sm:$0xf]
    %v1690 = vunpack.c.l.b16 %v1680
    %v1691 = vunpack.c.l.b16 %v1681
    %v1692 = vpack.c.b16 %v1691, %v1690
    %v1695 = vsel %vm618, %v1672, 0
    %v1698 = vsel %vm618, %v1673, 0
    %1700 = vmatprep.subr.bf16.mxu0 0
    %1701 = vmatpush1.bf16.msra.mxu0 0
    %1702 = vmatprep.subr.bf16.mxu0 0
    %1703 = vmatpush1.bf16.msra.mxu0 0
    %1704 = vmatprep.subr.bf16.mxu0 0
    %1705 = vmatpush1.bf16.msra.mxu0 0
    %1706 = vmatprep.subr.bf16.mxu0 0
    %1707 = vmatpush1.bf16.msra.mxu0 0
    %1708 = vmatprep.subr.bf16.mxu0 0
    %1709 = vmatpush1.bf16.msra.mxu0 0
    %1710 = vmatprep.subr.bf16.mxu0 0
    %1711 = vmatpush1.bf16.msra.mxu0 0
    %1712 = vmatprep.subr.bf16.mxu0 0
    %1713 = vmatpush1.bf16.msra.mxu0 0
    %1714 = vmatprep.subr.bf16.mxu0 0
    %1715 = vmatpush1.bf16.msra.mxu0 %v1692
    %1716 = vmatprep.subr.bf16.mxu0 0
    %1717 = vmatpush2.bf16.msra.mxu0 0
    %1718 = vmatprep.subr.bf16.mxu0 0
    %1719 = vmatpush2.bf16.msra.mxu0 0
    %1720 = vmatprep.subr.bf16.mxu0 0
    %1721 = vmatpush2.bf16.msra.mxu0 0
    %1722 = vmatprep.subr.bf16.mxu0 0
    %1723 = vmatpush2.bf16.msra.mxu0 0
    %1724 = vmatprep.subr.bf16.mxu0 0
    %1725 = vmatpush2.bf16.msra.mxu0 0
    %1726 = vmatprep.subr.bf16.mxu0 0
    %1727 = vmatpush2.bf16.msra.mxu0 0
    %1728 = vmatprep.subr.bf16.mxu0 0
    %1729 = vmatpush2.bf16.msra.mxu0 0
    %1730 = vmatprep.subr.bf16.mxu0 0
    %1731 = vmatpush2.bf16.msra.mxu0 0
    %1732 = vmatprep.mubr.bf16.mxu0 0
    %1733 = vmatmul.mubr.bf16.gmra.mxu0 %v1695
    %v1734 = vpop.f32.mrf.mxu0
    %v1735 = vadd.f32 0.0, %v1734
    %v1736 = vpop.f32.mrf.mxu0
    %v1737 = vpop.f32.mrf.mxu0
    %v1738 = vadd.f32 0.0, %v1737
    %v1739 = vpop.f32.mrf.mxu0
    %1740 = vmatprep.mubr.bf16.mxu0 0
    %1741 = vmatmul.mubr.bf16.gmra.mxu0 %v1698
    %v1742 = vpop.f32.mrf.mxu0
    %v1743 = vadd.f32 0.0, %v1742
    %v1744 = vpop.f32.mrf.mxu0
    %v1745 = vpop.f32.mrf.mxu0
    %v1746 = vadd.f32 0.0, %v1745
    %v1747 = vpop.f32.mrf.mxu0
    %1748 = vdwg.mxu0
    %v1751 = vunpack.c.l.b16 %v1682
    %v1752 = vunpack.c.l.b16 %v1683
    %v1753 = vpack.c.b16 %v1752, %v1751
    %v1756 = vsel %vm618, %v1674, 0
    %v1759 = vsel %vm618, %v1675, 0
    %1761 = vmatprep.subr.bf16.mxu0 0
    %1762 = vmatpush1.bf16.msra.mxu0 0
    %1763 = vmatprep.subr.bf16.mxu0 0
    %1764 = vmatpush1.bf16.msra.mxu0 0
    %1765 = vmatprep.subr.bf16.mxu0 0
    %1766 = vmatpush1.bf16.msra.mxu0 0
    %1767 = vmatprep.subr.bf16.mxu0 0
    %1768 = vmatpush1.bf16.msra.mxu0 0
    %1769 = vmatprep.subr.bf16.mxu0 0
    %1770 = vmatpush1.bf16.msra.mxu0 0
    %1771 = vmatprep.subr.bf16.mxu0 0
    %1772 = vmatpush1.bf16.msra.mxu0 0
    %1773 = vmatprep.subr.bf16.mxu0 0
    %1774 = vmatpush1.bf16.msra.mxu0 0
    %1775 = vmatprep.subr.bf16.mxu0 0
    %1776 = vmatpush1.bf16.msra.mxu0 %v1753
    %1777 = vmatprep.subr.bf16.mxu0 0
    %1778 = vmatpush2.bf16.msra.mxu0 0
    %1779 = vmatprep.subr.bf16.mxu0 0
    %1780 = vmatpush2.bf16.msra.mxu0 0
    %1781 = vmatprep.subr.bf16.mxu0 0
    %1782 = vmatpush2.bf16.msra.mxu0 0
    %1783 = vmatprep.subr.bf16.mxu0 0
    %1784 = vmatpush2.bf16.msra.mxu0 0
    %1785 = vmatprep.subr.bf16.mxu0 0
    %1786 = vmatpush2.bf16.msra.mxu0 0
    %1787 = vmatprep.subr.bf16.mxu0 0
    %1788 = vmatpush2.bf16.msra.mxu0 0
    %1789 = vmatprep.subr.bf16.mxu0 0
    %1790 = vmatpush2.bf16.msra.mxu0 0
    %1791 = vmatprep.subr.bf16.mxu0 0
    %1792 = vmatpush2.bf16.msra.mxu0 0
    %1793 = vmatprep.mubr.bf16.mxu0 0
    %1794 = vmatmul.mubr.bf16.gmra.mxu0 %v1756
    %v1795 = vpop.f32.mrf.mxu0
    %v1796 = vadd.f32 0.0, %v1795
    %v1797 = vpop.f32.mrf.mxu0
    %v1798 = vpop.f32.mrf.mxu0
    %v1799 = vadd.f32 0.0, %v1798
    %v1800 = vpop.f32.mrf.mxu0
    %1801 = vmatprep.mubr.bf16.mxu0 0
    %1802 = vmatmul.mubr.bf16.gmra.mxu0 %v1759
    %v1803 = vpop.f32.mrf.mxu0
    %v1804 = vadd.f32 0.0, %v1803
    %v1805 = vpop.f32.mrf.mxu0
    %v1806 = vpop.f32.mrf.mxu0
    %v1807 = vadd.f32 0.0, %v1806
    %v1808 = vpop.f32.mrf.mxu0
    %1809 = vdwg.mxu0
    %v1812 = vunpack.c.l.b16 %v1684
    %v1813 = vunpack.c.l.b16 %v1685
    %v1814 = vpack.c.b16 %v1813, %v1812
    %v1817 = vsel %vm618, %v1676, 0
    %v1820 = vsel %vm618, %v1677, 0
    %1822 = vmatprep.subr.bf16.mxu0 0
    %1823 = vmatpush1.bf16.msra.mxu0 0
    %1824 = vmatprep.subr.bf16.mxu0 0
    %1825 = vmatpush1.bf16.msra.mxu0 0
    %1826 = vmatprep.subr.bf16.mxu0 0
    %1827 = vmatpush1.bf16.msra.mxu0 0
    %1828 = vmatprep.subr.bf16.mxu0 0
    %1829 = vmatpush1.bf16.msra.mxu0 0
    %1830 = vmatprep.subr.bf16.mxu0 0
    %1831 = vmatpush1.bf16.msra.mxu0 0
    %1832 = vmatprep.subr.bf16.mxu0 0
    %1833 = vmatpush1.bf16.msra.mxu0 0
    %1834 = vmatprep.subr.bf16.mxu0 0
    %1835 = vmatpush1.bf16.msra.mxu0 0
    %1836 = vmatprep.subr.bf16.mxu0 0
    %1837 = vmatpush1.bf16.msra.mxu0 %v1814
    %1838 = vmatprep.subr.bf16.mxu0 0
    %1839 = vmatpush2.bf16.msra.mxu0 0
    %1840 = vmatprep.subr.bf16.mxu0 0
    %1841 = vmatpush2.bf16.msra.mxu0 0
    %1842 = vmatprep.subr.bf16.mxu0 0
    %1843 = vmatpush2.bf16.msra.mxu0 0
    %1844 = vmatprep.subr.bf16.mxu0 0
    %1845 = vmatpush2.bf16.msra.mxu0 0
    %1846 = vmatprep.subr.bf16.mxu0 0
    %1847 = vmatpush2.bf16.msra.mxu0 0
    %1848 = vmatprep.subr.bf16.mxu0 0
    %1849 = vmatpush2.bf16.msra.mxu0 0
    %1850 = vmatprep.subr.bf16.mxu0 0
    %1851 = vmatpush2.bf16.msra.mxu0 0
    %1852 = vmatprep.subr.bf16.mxu0 0
    %1853 = vmatpush2.bf16.msra.mxu0 0
    %1854 = vmatprep.mubr.bf16.mxu0 0
    %1855 = vmatmul.mubr.bf16.gmra.mxu0 %v1817
    %v1856 = vpop.f32.mrf.mxu0
    %v1857 = vadd.f32 0.0, %v1856
    %v1858 = vpop.f32.mrf.mxu0
    %v1859 = vpop.f32.mrf.mxu0
    %v1860 = vadd.f32 0.0, %v1859
    %v1861 = vpop.f32.mrf.mxu0
    %1862 = vmatprep.mubr.bf16.mxu0 0
    %1863 = vmatmul.mubr.bf16.gmra.mxu0 %v1820
    %v1864 = vpop.f32.mrf.mxu0
    %v1865 = vadd.f32 0.0, %v1864
    %v1866 = vpop.f32.mrf.mxu0
    %v1867 = vpop.f32.mrf.mxu0
    %v1868 = vadd.f32 0.0, %v1867
    %v1869 = vpop.f32.mrf.mxu0
    %1870 = vdwg.mxu0
    %v1873 = vunpack.c.l.b16 %v1686
    %v1874 = vunpack.c.l.b16 %v1687
    %v1875 = vpack.c.b16 %v1874, %v1873
    %v1878 = vsel %vm618, %v1678, 0
    %v1881 = vsel %vm618, %v1679, 0
    %1883 = vmatprep.subr.bf16.mxu0 0
    %1884 = vmatpush1.bf16.msra.mxu0 0
    %1885 = vmatprep.subr.bf16.mxu0 0
    %1886 = vmatpush1.bf16.msra.mxu0 0
    %1887 = vmatprep.subr.bf16.mxu0 0
    %1888 = vmatpush1.bf16.msra.mxu0 0
    %1889 = vmatprep.subr.bf16.mxu0 0
    %1890 = vmatpush1.bf16.msra.mxu0 0
    %1891 = vmatprep.subr.bf16.mxu0 0
    %1892 = vmatpush1.bf16.msra.mxu0 0
    %1893 = vmatprep.subr.bf16.mxu0 0
    %1894 = vmatpush1.bf16.msra.mxu0 0
    %1895 = vmatprep.subr.bf16.mxu0 0
    %1896 = vmatpush1.bf16.msra.mxu0 0
    %1897 = vmatprep.subr.bf16.mxu0 0
    %1898 = vmatpush1.bf16.msra.mxu0 %v1875
    %1899 = vmatprep.subr.bf16.mxu0 0
    %1900 = vmatpush2.bf16.msra.mxu0 0
    %1901 = vmatprep.subr.bf16.mxu0 0
    %1902 = vmatpush2.bf16.msra.mxu0 0
    %1903 = vmatprep.subr.bf16.mxu0 0
    %1904 = vmatpush2.bf16.msra.mxu0 0
    %1905 = vmatprep.subr.bf16.mxu0 0
    %1906 = vmatpush2.bf16.msra.mxu0 0
    %1907 = vmatprep.subr.bf16.mxu0 0
    %1908 = vmatpush2.bf16.msra.mxu0 0
    %1909 = vmatprep.subr.bf16.mxu0 0
    %1910 = vmatpush2.bf16.msra.mxu0 0
    %1911 = vmatprep.subr.bf16.mxu0 0
    %1912 = vmatpush2.bf16.msra.mxu0 0
    %1913 = vmatprep.subr.bf16.mxu0 0
    %1914 = vmatpush2.bf16.msra.mxu0 0
    %1915 = vmatprep.mubr.bf16.mxu0 0
    %1916 = vmatmul.mubr.bf16.gmra.mxu0 %v1878
    %v1917 = vpop.f32.mrf.mxu0
    %v1918 = vadd.f32 0.0, %v1917
    %v1919 = vpop.f32.mrf.mxu0
    %v1920 = vpop.f32.mrf.mxu0
    %v1921 = vadd.f32 0.0, %v1920
    %v1922 = vpop.f32.mrf.mxu0
    %1923 = vmatprep.mubr.bf16.mxu0 0
    %1924 = vmatmul.mubr.bf16.gmra.mxu0 %v1881
    %v1925 = vpop.f32.mrf.mxu0
    %v1926 = vadd.f32 0.0, %v1925
    %v1927 = vpop.f32.mrf.mxu0
    %v1928 = vpop.f32.mrf.mxu0
    %v1929 = vadd.f32 0.0, %v1928
    %v1930 = vpop.f32.mrf.mxu0
    %1931 = vdwg.mxu0
    %v1932 = vsel %vm212, %v1735, 0.0
    %v1933 = vsel %vm212, %v1796, 0.0
    %v1934 = vadd.f32 %v1932, %v1933
    %v1935 = vsel %vm212, %v1857, 0.0
    %v1936 = vadd.f32 %v1934, %v1935
    %v1937 = vsel %vm212, %v1918, 0.0
    %v1938 = vadd.f32 %v1936, %v1937
    %v1939 = vsel %vm212, %v1738, 0.0
    %v1940 = vsel %vm212, %v1799, 0.0
    %v1941 = vadd.f32 %v1939, %v1940
    %v1942 = vsel %vm212, %v1860, 0.0
    %v1943 = vadd.f32 %v1941, %v1942
    %v1944 = vsel %vm212, %v1921, 0.0
    %v1945 = vadd.f32 %v1943, %v1944
    %v1946 = vsel %vm212, %v1743, 0.0
    %v1947 = vsel %vm212, %v1804, 0.0
    %v1948 = vadd.f32 %v1946, %v1947
    %v1949 = vsel %vm212, %v1865, 0.0
    %v1950 = vadd.f32 %v1948, %v1949
    %v1951 = vsel %vm212, %v1926, 0.0
    %v1952 = vadd.f32 %v1950, %v1951
    %v1953 = vsel %vm212, %v1746, 0.0
    %v1954 = vsel %vm212, %v1807, 0.0
    %v1955 = vadd.f32 %v1953, %v1954
    %v1956 = vsel %vm212, %v1868, 0.0
    %v1957 = vadd.f32 %v1955, %v1956
    %v1958 = vsel %vm212, %v1929, 0.0
    %v1959 = vadd.f32 %v1957, %v1958
    %v1960 = vadd.f32 %v165, %v1938
    %v1961 = vadd.f32 %v170, %v1945
    %v1962 = vadd.f32 %v175, %v1952
    %v1963 = vadd.f32 %v180, %v1959
    %v1964 = vadd.f32 %v1960, %v206
    %v1965 = vadd.f32 %v1961, %v206
    %v1966 = vadd.f32 %v1962, %v206
    %v1967 = vadd.f32 %v1963, %v206
    %v1968 = vsel %vm212, %v1964, 0.0
    %1969 = vadd.xlane.f32.xlu0 %v1968
    %v1970 = vpop.xlane.xlu0 %1969
    %v1971 = vsel %vm212, %v1965, 0.0
    %1972 = vadd.xlane.f32.xlu0 %v1971
    %v1973 = vpop.xlane.xlu0 %1972
    %v1974 = vsel %vm212, %v1966, 0.0
    %1975 = vadd.xlane.f32.xlu0 %v1974
    %v1976 = vpop.xlane.xlu0 %1975
    %v1977 = vsel %vm212, %v1967, 0.0
    %1978 = vadd.xlane.f32.xlu0 %v1977
    %v1979 = vpop.xlane.xlu0 %1978
    %v1980 = vmul.f32 %v1970, %v225
    %v1981 = vmul.f32 %v1973, %v225
    %v1982 = vmul.f32 %v1976, %v225
    %v1983 = vmul.f32 %v1979, %v225
    %v1984 = vsub.f32 %v1964, %v1980
    %v1985 = vsub.f32 %v1965, %v1981
    %v1986 = vsub.f32 %v1966, %v1982
    %v1987 = vsub.f32 %v1967, %v1983
    %v1988 = vmul.f32 %v1984, %v1984
    %v1989 = vmul.f32 %v1985, %v1985
    %v1990 = vmul.f32 %v1986, %v1986
    %v1991 = vmul.f32 %v1987, %v1987
    %v1992 = vsel %vm212, %v1988, 0.0
    %1993 = vadd.xlane.f32.xlu0 %v1992
    %v1994 = vpop.xlane.xlu0 %1993
    %v1995 = vsel %vm212, %v1989, 0.0
    %1996 = vadd.xlane.f32.xlu0 %v1995
    %v1997 = vpop.xlane.xlu0 %1996
    %v1998 = vsel %vm212, %v1990, 0.0
    %1999 = vadd.xlane.f32.xlu0 %v1998
    %v2000 = vpop.xlane.xlu0 %1999
    %v2001 = vsel %vm212, %v1991, 0.0
    %2002 = vadd.xlane.f32.xlu0 %v2001
    %v2003 = vpop.xlane.xlu0 %2002
    %v2004 = vmul.f32 %v1994, %v225
    %v2005 = vmul.f32 %v1997, %v225
    %v2006 = vmul.f32 %v2000, %v225
    %v2007 = vmul.f32 %v2003, %v225
    %v2008 = vadd.f32 %v2004, 1e-05
    %v2009 = vadd.f32 %v2005, 1e-05
    %v2010 = vadd.f32 %v2006, 1e-05
    %v2011 = vadd.f32 %v2007, 1e-05
    %v2012 = vrsqrt.pop %v2008
    %v2013 = vrsqrt.pop %v2009
    %v2014 = vrsqrt.pop %v2010
    %v2015 = vrsqrt.pop %v2011
    %v2016 = vmul.f32 %v1984, %v2012
    %v2017 = vmul.f32 %v1985, %v2013
    %v2018 = vmul.f32 %v1986, %v2014
    %v2019 = vmul.f32 %v1987, %v2015
    %v2020 = vmul.f32 %v2016, %v207
    %v2021 = vmul.f32 %v2017, %v207
    %v2022 = vmul.f32 %v2018, %v207
    %v2023 = vmul.f32 %v2019, %v207
    %v2024 = vadd.f32 %v2020, %v208
    %v2025 = vadd.f32 %v2021, %v208
    %v2026 = vadd.f32 %v2022, %v208
    %v2027 = vadd.f32 %v2023, %v208
    %v2028 = vpack.c.bf16 %v2025, %v2024
    %v2029 = vpack.c.bf16 %v2027, %v2026
    %v2030 = vld [vmem:[%s4] sm:$0xff]
    %v2031 = vld [vmem:[%s4 + $0x8] sm:$0xff]
    %v2032 = vld [vmem:[%s4 + $0x10] sm:$0xff]
    %v2033 = vld [vmem:[%s4 + $0x18] sm:$0xff]
    %v2034 = vld [vmem:[%s4 + $0x20] sm:$0xff]
    %v2035 = vld [vmem:[%s4 + $0x28] sm:$0xff]
    %v2036 = vld [vmem:[%s4 + $0x30] sm:$0xff]
    %v2037 = vld [vmem:[%s4 + $0x38] sm:$0xff]
    %v2039 = vlaneseq
    %v2040 = vshrl.u32 %v2039, 7
    %v2041 = vsub.s32 0, %v2040
    %v2042 = vrot.slane %v210, %v2041
    %v2043 = vlaneseq
    %v2044 = vshrl.u32 %v2043, 7
    %v2045 = vsub.s32 1, %v2044
    %v2046 = vrot.slane %v210, %v2045
    %v2057 = vunpack.c.l.b16 %v2030
    %v2058 = vunpack.c.h.b16 %v2030
    %v2059 = vunpack.c.l.b16 %v2031
    %v2060 = vunpack.c.h.b16 %v2031
    %v2061 = vunpack.c.l.b16 %v2032
    %v2062 = vunpack.c.h.b16 %v2032
    %v2063 = vunpack.c.l.b16 %v2033
    %v2064 = vunpack.c.h.b16 %v2033
    %v2065 = vunpack.c.l.b16 %v2034
    %v2066 = vunpack.c.h.b16 %v2034
    %v2067 = vunpack.c.l.b16 %v2035
    %v2068 = vunpack.c.h.b16 %v2035
    %v2069 = vunpack.c.l.b16 %v2036
    %v2070 = vunpack.c.h.b16 %v2036
    %v2071 = vunpack.c.l.b16 %v2037
    %v2072 = vunpack.c.h.b16 %v2037
    %v2073 = vpack.c.b16 %v2059, %v2057
    %v2074 = vpack.c.b16 %v2060, %v2058
    %v2075 = vpack.c.b16 %v2063, %v2061
    %v2076 = vpack.c.b16 %v2064, %v2062
    %v2077 = vpack.c.b16 %v2067, %v2065
    %v2078 = vpack.c.b16 %v2068, %v2066
    %v2079 = vpack.c.b16 %v2071, %v2069
    %v2080 = vpack.c.b16 %v2072, %v2070
    %v2090 = vsel %vm212, %v2028, 0
    %v2093 = vsel %vm212, %v2029, 0
    %2095 = vmatprep.subr.bf16.mxu0 0
    %2096 = vmatpush1.bf16.msra.mxu0 0
    %2097 = vmatprep.subr.bf16.mxu0 0
    %2098 = vmatpush1.bf16.msra.mxu0 0
    %2099 = vmatprep.subr.bf16.mxu0 0
    %2100 = vmatpush1.bf16.msra.mxu0 0
    %2101 = vmatprep.subr.bf16.mxu0 0
    %2102 = vmatpush1.bf16.msra.mxu0 0
    %2103 = vmatprep.subr.bf16.mxu0 %v2080
    %2104 = vmatpush1.bf16.msra.mxu0 %v2079
    %2105 = vmatprep.subr.bf16.mxu0 %v2078
    %2106 = vmatpush1.bf16.msra.mxu0 %v2077
    %2107 = vmatprep.subr.bf16.mxu0 %v2076
    %2108 = vmatpush1.bf16.msra.mxu0 %v2075
    %2109 = vmatprep.subr.bf16.mxu0 %v2074
    %2110 = vmatpush1.bf16.msra.mxu0 %v2073
    %2111 = vmatprep.subr.bf16.mxu0 0
    %2112 = vmatpush2.bf16.msra.mxu0 0
    %2113 = vmatprep.subr.bf16.mxu0 0
    %2114 = vmatpush2.bf16.msra.mxu0 0
    %2115 = vmatprep.subr.bf16.mxu0 0
    %2116 = vmatpush2.bf16.msra.mxu0 0
    %2117 = vmatprep.subr.bf16.mxu0 0
    %2118 = vmatpush2.bf16.msra.mxu0 0
    %2119 = vmatprep.subr.bf16.mxu0 0
    %2120 = vmatpush2.bf16.msra.mxu0 0
    %2121 = vmatprep.subr.bf16.mxu0 0
    %2122 = vmatpush2.bf16.msra.mxu0 0
    %2123 = vmatprep.subr.bf16.mxu0 0
    %2124 = vmatpush2.bf16.msra.mxu0 0
    %2125 = vmatprep.subr.bf16.mxu0 0
    %2126 = vmatpush2.bf16.msra.mxu0 0
    %2127 = vmatprep.mubr.bf16.mxu0 0
    %2128 = vmatmul.mubr.bf16.gmra.mxu0 %v2090
    %v2129 = vpop.f32.mrf.mxu0
    %v2130 = vadd.f32 %v2042, %v2129
    %v2131 = vpop.f32.mrf.mxu0
    %v2132 = vadd.f32 %v2046, %v2131
    %v2133 = vpop.f32.mrf.mxu0
    %v2134 = vadd.f32 %v2042, %v2133
    %v2135 = vpop.f32.mrf.mxu0
    %v2136 = vadd.f32 %v2046, %v2135
    %2137 = vmatprep.mubr.bf16.mxu0 0
    %2138 = vmatmul.mubr.bf16.gmra.mxu0 %v2093
    %v2139 = vpop.f32.mrf.mxu0
    %v2140 = vadd.f32 %v2042, %v2139
    %v2141 = vpop.f32.mrf.mxu0
    %v2142 = vadd.f32 %v2046, %v2141
    %v2143 = vpop.f32.mrf.mxu0
    %v2144 = vadd.f32 %v2042, %v2143
    %v2145 = vpop.f32.mrf.mxu0
    %v2146 = vadd.f32 %v2046, %v2145
    %2147 = vdwg.mxu0
    %v2148 = vmax.f32 %v2130, 0.0
    %v2149 = vmax.f32 %v2132, 0.0
    %v2150 = vmax.f32 %v2134, 0.0
    %v2151 = vmax.f32 %v2136, 0.0
    %v2152 = vmax.f32 %v2140, 0.0
    %v2153 = vmax.f32 %v2142, 0.0
    %v2154 = vmax.f32 %v2144, 0.0
    %v2155 = vmax.f32 %v2146, 0.0
    %v2156 = vpack.c.bf16 %v2150, %v2148
    %v2157 = vpack.c.bf16 %v2151, %v2149
    %v2158 = vpack.c.bf16 %v2154, %v2152
    %v2159 = vpack.c.bf16 %v2155, %v2153
    %v2160 = vld [vmem:[%s5] sm:$0xf]
    %v2161 = vld [vmem:[%s5 + $0x4] sm:$0xf]
    %v2162 = vld [vmem:[%s5 + $0x8] sm:$0xf]
    %v2163 = vld [vmem:[%s5 + $0xc] sm:$0xf]
    %v2164 = vld [vmem:[%s5 + $0x10] sm:$0xf]
    %v2165 = vld [vmem:[%s5 + $0x14] sm:$0xf]
    %v2166 = vld [vmem:[%s5 + $0x18] sm:$0xf]
    %v2167 = vld [vmem:[%s5 + $0x1c] sm:$0xf]
    %v2168 = vld [vmem:[%s5 + $0x20] sm:$0xf]
    %v2169 = vld [vmem:[%s5 + $0x24] sm:$0xf]
    %v2170 = vld [vmem:[%s5 + $0x28] sm:$0xf]
    %v2171 = vld [vmem:[%s5 + $0x2c] sm:$0xf]
    %v2172 = vld [vmem:[%s5 + $0x30] sm:$0xf]
    %v2173 = vld [vmem:[%s5 + $0x34] sm:$0xf]
    %v2174 = vld [vmem:[%s5 + $0x38] sm:$0xf]
    %v2175 = vld [vmem:[%s5 + $0x3c] sm:$0xf]
    %v2176 = vld [vmem:[%s5 + $0x40] sm:$0xf]
    %v2177 = vld [vmem:[%s5 + $0x44] sm:$0xf]
    %v2178 = vld [vmem:[%s5 + $0x48] sm:$0xf]
    %v2179 = vld [vmem:[%s5 + $0x4c] sm:$0xf]
    %v2180 = vld [vmem:[%s5 + $0x50] sm:$0xf]
    %v2181 = vld [vmem:[%s5 + $0x54] sm:$0xf]
    %v2182 = vld [vmem:[%s5 + $0x58] sm:$0xf]
    %v2183 = vld [vmem:[%s5 + $0x5c] sm:$0xf]
    %v2184 = vld [vmem:[%s5 + $0x60] sm:$0xf]
    %v2185 = vld [vmem:[%s5 + $0x64] sm:$0xf]
    %v2186 = vld [vmem:[%s5 + $0x68] sm:$0xf]
    %v2187 = vld [vmem:[%s5 + $0x6c] sm:$0xf]
    %v2188 = vld [vmem:[%s5 + $0x70] sm:$0xf]
    %v2189 = vld [vmem:[%s5 + $0x74] sm:$0xf]
    %v2190 = vld [vmem:[%s5 + $0x78] sm:$0xf]
    %v2191 = vld [vmem:[%s5 + $0x7c] sm:$0xf]
    %v2224 = vunpack.c.l.b16 %v2160
    %v2225 = vunpack.c.l.b16 %v2161
    %v2226 = vunpack.c.l.b16 %v2162
    %v2227 = vunpack.c.l.b16 %v2163
    %v2228 = vunpack.c.l.b16 %v2164
    %v2229 = vunpack.c.l.b16 %v2165
    %v2230 = vunpack.c.l.b16 %v2166
    %v2231 = vunpack.c.l.b16 %v2167
    %v2232 = vunpack.c.l.b16 %v2168
    %v2233 = vunpack.c.l.b16 %v2169
    %v2234 = vunpack.c.l.b16 %v2170
    %v2235 = vunpack.c.l.b16 %v2171
    %v2236 = vunpack.c.l.b16 %v2172
    %v2237 = vunpack.c.l.b16 %v2173
    %v2238 = vunpack.c.l.b16 %v2174
    %v2239 = vunpack.c.l.b16 %v2175
    %v2240 = vunpack.c.l.b16 %v2176
    %v2241 = vunpack.c.l.b16 %v2177
    %v2242 = vunpack.c.l.b16 %v2178
    %v2243 = vunpack.c.l.b16 %v2179
    %v2244 = vunpack.c.l.b16 %v2180
    %v2245 = vunpack.c.l.b16 %v2181
    %v2246 = vunpack.c.l.b16 %v2182
    %v2247 = vunpack.c.l.b16 %v2183
    %v2248 = vunpack.c.l.b16 %v2184
    %v2249 = vunpack.c.l.b16 %v2185
    %v2250 = vunpack.c.l.b16 %v2186
    %v2251 = vunpack.c.l.b16 %v2187
    %v2252 = vunpack.c.l.b16 %v2188
    %v2253 = vunpack.c.l.b16 %v2189
    %v2254 = vunpack.c.l.b16 %v2190
    %v2255 = vunpack.c.l.b16 %v2191
    %v2256 = vpack.c.b16 %v2225, %v2224
    %v2257 = vpack.c.b16 %v2227, %v2226
    %v2258 = vpack.c.b16 %v2229, %v2228
    %v2259 = vpack.c.b16 %v2231, %v2230
    %v2260 = vpack.c.b16 %v2233, %v2232
    %v2261 = vpack.c.b16 %v2235, %v2234
    %v2262 = vpack.c.b16 %v2237, %v2236
    %v2263 = vpack.c.b16 %v2239, %v2238
    %v2264 = vpack.c.b16 %v2241, %v2240
    %v2265 = vpack.c.b16 %v2243, %v2242
    %v2266 = vpack.c.b16 %v2245, %v2244
    %v2267 = vpack.c.b16 %v2247, %v2246
    %v2268 = vpack.c.b16 %v2249, %v2248
    %v2269 = vpack.c.b16 %v2251, %v2250
    %v2270 = vpack.c.b16 %v2253, %v2252
    %v2271 = vpack.c.b16 %v2255, %v2254
    %2288 = vmatprep.subr.bf16.mxu0 0
    %2289 = vmatpush1.bf16.msra.mxu0 %v2263
    %2290 = vmatprep.subr.bf16.mxu0 0
    %2291 = vmatpush1.bf16.msra.mxu0 %v2262
    %2292 = vmatprep.subr.bf16.mxu0 0
    %2293 = vmatpush1.bf16.msra.mxu0 %v2261
    %2294 = vmatprep.subr.bf16.mxu0 0
    %2295 = vmatpush1.bf16.msra.mxu0 %v2260
    %2296 = vmatprep.subr.bf16.mxu0 0
    %2297 = vmatpush1.bf16.msra.mxu0 %v2259
    %2298 = vmatprep.subr.bf16.mxu0 0
    %2299 = vmatpush1.bf16.msra.mxu0 %v2258
    %2300 = vmatprep.subr.bf16.mxu0 0
    %2301 = vmatpush1.bf16.msra.mxu0 %v2257
    %2302 = vmatprep.subr.bf16.mxu0 0
    %2303 = vmatpush1.bf16.msra.mxu0 %v2256
    %2304 = vmatprep.subr.bf16.mxu0 0
    %2305 = vmatpush2.bf16.msra.mxu0 %v2271
    %2306 = vmatprep.subr.bf16.mxu0 0
    %2307 = vmatpush2.bf16.msra.mxu0 %v2270
    %2308 = vmatprep.subr.bf16.mxu0 0
    %2309 = vmatpush2.bf16.msra.mxu0 %v2269
    %2310 = vmatprep.subr.bf16.mxu0 0
    %2311 = vmatpush2.bf16.msra.mxu0 %v2268
    %2312 = vmatprep.subr.bf16.mxu0 0
    %2313 = vmatpush2.bf16.msra.mxu0 %v2267
    %2314 = vmatprep.subr.bf16.mxu0 0
    %2315 = vmatpush2.bf16.msra.mxu0 %v2266
    %2316 = vmatprep.subr.bf16.mxu0 0
    %2317 = vmatpush2.bf16.msra.mxu0 %v2265
    %2318 = vmatprep.subr.bf16.mxu0 0
    %2319 = vmatpush2.bf16.msra.mxu0 %v2264
    %2320 = vmatprep.mubr.bf16.mxu0 %v2157
    %2321 = vmatmul.mubr.bf16.gmra.mxu0 %v2156
    %v2322 = vpop.f32.mrf.mxu0
    %v2323 = vadd.f32 0.0, %v2322
    %v2324 = vpop.f32.mrf.mxu0
    %v2325 = vpop.f32.mrf.mxu0
    %v2326 = vadd.f32 0.0, %v2325
    %v2327 = vpop.f32.mrf.mxu0
    %2328 = vmatprep.mubr.bf16.mxu0 %v2159
    %2329 = vmatmul.mubr.bf16.gmra.mxu0 %v2158
    %v2330 = vpop.f32.mrf.mxu0
    %v2331 = vadd.f32 0.0, %v2330
    %v2332 = vpop.f32.mrf.mxu0
    %v2333 = vpop.f32.mrf.mxu0
    %v2334 = vadd.f32 0.0, %v2333
    %v2335 = vpop.f32.mrf.mxu0
    %2336 = vdwg.mxu0
    %v2337 = vadd.f32 %v1964, %v2323
    %v2338 = vadd.f32 %v1965, %v2326
    %v2339 = vadd.f32 %v1966, %v2331
    %v2340 = vadd.f32 %v1967, %v2334
    %v2341 = vadd.f32 %v2337, %v211
    %v2342 = vadd.f32 %v2338, %v211
    %v2343 = vadd.f32 %v2339, %v211
    %v2344 = vadd.f32 %v2340, %v211
    %v2345 = vld [vmem:[%s7 + $0x7] ss:$0 sm:$0xff]
    %v2346 = vld [vmem:[%s7 + $0x10] ss:$0 sm:$0xff]
    %v2347 = vld [vmem:[%s7 + $0x11] ss:$0 sm:$0xff]
    %v2348 = vld [vmem:[%s7 + $0x12] ss:$0 sm:$0xff]
    %v2349 = vld [vmem:[%s7 + $0x13] ss:$0 sm:$0xff]
    %s2350 = scalar_lea.vmem %s7, 20
    %v2351 = vld [vmem:[%s2350] ss:$8 sm:$0x3]
    %v2352 = vld [vmem:[%s7 + $0x15] ss:$0 sm:$0xff]
    %v2353 = vsel %vm212, %v2341, 0.0
    %2354 = vadd.xlane.f32.xlu0 %v2353
    %v2355 = vpop.xlane.xlu0 %2354
    %v2356 = vsel %vm212, %v2342, 0.0
    %2357 = vadd.xlane.f32.xlu0 %v2356
    %v2358 = vpop.xlane.xlu0 %2357
    %v2359 = vsel %vm212, %v2343, 0.0
    %2360 = vadd.xlane.f32.xlu0 %v2359
    %v2361 = vpop.xlane.xlu0 %2360
    %v2362 = vsel %vm212, %v2344, 0.0
    %2363 = vadd.xlane.f32.xlu0 %v2362
    %v2364 = vpop.xlane.xlu0 %2363
    %v2365 = vmul.f32 %v2355, %v225
    %v2366 = vmul.f32 %v2358, %v225
    %v2367 = vmul.f32 %v2361, %v225
    %v2368 = vmul.f32 %v2364, %v225
    %v2369 = vsub.f32 %v2341, %v2365
    %v2370 = vsub.f32 %v2342, %v2366
    %v2371 = vsub.f32 %v2343, %v2367
    %v2372 = vsub.f32 %v2344, %v2368
    %v2373 = vmul.f32 %v2369, %v2369
    %v2374 = vmul.f32 %v2370, %v2370
    %v2375 = vmul.f32 %v2371, %v2371
    %v2376 = vmul.f32 %v2372, %v2372
    %v2377 = vsel %vm212, %v2373, 0.0
    %2378 = vadd.xlane.f32.xlu0 %v2377
    %v2379 = vpop.xlane.xlu0 %2378
    %v2380 = vsel %vm212, %v2374, 0.0
    %2381 = vadd.xlane.f32.xlu0 %v2380
    %v2382 = vpop.xlane.xlu0 %2381
    %v2383 = vsel %vm212, %v2375, 0.0
    %2384 = vadd.xlane.f32.xlu0 %v2383
    %v2385 = vpop.xlane.xlu0 %2384
    %v2386 = vsel %vm212, %v2376, 0.0
    %2387 = vadd.xlane.f32.xlu0 %v2386
    %v2388 = vpop.xlane.xlu0 %2387
    %v2389 = vmul.f32 %v2379, %v225
    %v2390 = vmul.f32 %v2382, %v225
    %v2391 = vmul.f32 %v2385, %v225
    %v2392 = vmul.f32 %v2388, %v225
    %v2393 = vadd.f32 %v2389, 1e-05
    %v2394 = vadd.f32 %v2390, 1e-05
    %v2395 = vadd.f32 %v2391, 1e-05
    %v2396 = vadd.f32 %v2392, 1e-05
    %v2397 = vrsqrt.pop %v2393
    %v2398 = vrsqrt.pop %v2394
    %v2399 = vrsqrt.pop %v2395
    %v2400 = vrsqrt.pop %v2396
    %v2401 = vmul.f32 %v2369, %v2397
    %v2402 = vmul.f32 %v2370, %v2398
    %v2403 = vmul.f32 %v2371, %v2399
    %v2404 = vmul.f32 %v2372, %v2400
    %v2405 = vmul.f32 %v2401, %v2345
    %v2406 = vmul.f32 %v2402, %v2345
    %v2407 = vmul.f32 %v2403, %v2345
    %v2408 = vmul.f32 %v2404, %v2345
    %v2409 = vadd.f32 %v2405, %v2346
    %v2410 = vadd.f32 %v2406, %v2346
    %v2411 = vadd.f32 %v2407, %v2346
    %v2412 = vadd.f32 %v2408, %v2346
    %v2413 = vpack.c.bf16 %v2410, %v2409
    %v2414 = vpack.c.bf16 %v2412, %v2411
    %s2415 = scalar_lea.vmem %s2, 128
    %v2416 = vld [vmem:[%s2415] sm:$0xf]
    %v2417 = vld [vmem:[%s2415 + $0x4] sm:$0xf]
    %v2418 = vld [vmem:[%s2415 + $0x8] sm:$0xf]
    %v2419 = vld [vmem:[%s2415 + $0xc] sm:$0xf]
    %v2420 = vld [vmem:[%s2415 + $0x10] sm:$0xf]
    %v2421 = vld [vmem:[%s2415 + $0x14] sm:$0xf]
    %v2422 = vld [vmem:[%s2415 + $0x18] sm:$0xf]
    %v2423 = vld [vmem:[%s2415 + $0x1c] sm:$0xf]
    %v2424 = vld [vmem:[%s2415 + $0x20] sm:$0xf]
    %v2425 = vld [vmem:[%s2415 + $0x24] sm:$0xf]
    %v2426 = vld [vmem:[%s2415 + $0x28] sm:$0xf]
    %v2427 = vld [vmem:[%s2415 + $0x2c] sm:$0xf]
    %v2428 = vld [vmem:[%s2415 + $0x30] sm:$0xf]
    %v2429 = vld [vmem:[%s2415 + $0x34] sm:$0xf]
    %v2430 = vld [vmem:[%s2415 + $0x38] sm:$0xf]
    %v2431 = vld [vmem:[%s2415 + $0x3c] sm:$0xf]
    %v2432 = vld [vmem:[%s2415 + $0x40] sm:$0xf]
    %v2433 = vld [vmem:[%s2415 + $0x44] sm:$0xf]
    %v2434 = vld [vmem:[%s2415 + $0x48] sm:$0xf]
    %v2435 = vld [vmem:[%s2415 + $0x4c] sm:$0xf]
    %v2436 = vld [vmem:[%s2415 + $0x50] sm:$0xf]
    %v2437 = vld [vmem:[%s2415 + $0x54] sm:$0xf]
    %v2438 = vld [vmem:[%s2415 + $0x58] sm:$0xf]
    %v2439 = vld [vmem:[%s2415 + $0x5c] sm:$0xf]
    %v2440 = vld [vmem:[%s2415 + $0x60] sm:$0xf]
    %v2441 = vld [vmem:[%s2415 + $0x64] sm:$0xf]
    %v2442 = vld [vmem:[%s2415 + $0x68] sm:$0xf]
    %v2443 = vld [vmem:[%s2415 + $0x6c] sm:$0xf]
    %v2444 = vld [vmem:[%s2415 + $0x70] sm:$0xf]
    %v2445 = vld [vmem:[%s2415 + $0x74] sm:$0xf]
    %v2446 = vld [vmem:[%s2415 + $0x78] sm:$0xf]
    %v2447 = vld [vmem:[%s2415 + $0x7c] sm:$0xf]
    %v2456 = vunpack.c.l.b16 %v2416
    %v2457 = vunpack.c.l.b16 %v2417
    %v2458 = vunpack.c.l.b16 %v2418
    %v2459 = vunpack.c.l.b16 %v2419
    %v2460 = vunpack.c.l.b16 %v2420
    %v2461 = vunpack.c.l.b16 %v2421
    %v2462 = vunpack.c.l.b16 %v2422
    %v2463 = vunpack.c.l.b16 %v2423
    %v2464 = vpack.c.b16 %v2457, %v2456
    %v2465 = vpack.c.b16 %v2459, %v2458
    %v2466 = vpack.c.b16 %v2461, %v2460
    %v2467 = vpack.c.b16 %v2463, %v2462
    %v2473 = vsel %vm212, %v2413, 0
    %v2476 = vsel %vm212, %v2414, 0
    %2478 = vmatprep.subr.bf16.mxu0 0
    %2479 = vmatpush1.bf16.msra.mxu0 0
    %2480 = vmatprep.subr.bf16.mxu0 0
    %2481 = vmatpush1.bf16.msra.mxu0 0
    %2482 = vmatprep.subr.bf16.mxu0 0
    %2483 = vmatpush1.bf16.msra.mxu0 0
    %2484 = vmatprep.subr.bf16.mxu0 0
    %2485 = vmatpush1.bf16.msra.mxu0 0
    %2486 = vmatprep.subr.bf16.mxu0 0
    %2487 = vmatpush1.bf16.msra.mxu0 %v2467
    %2488 = vmatprep.subr.bf16.mxu0 0
    %2489 = vmatpush1.bf16.msra.mxu0 %v2466
    %2490 = vmatprep.subr.bf16.mxu0 0
    %2491 = vmatpush1.bf16.msra.mxu0 %v2465
    %2492 = vmatprep.subr.bf16.mxu0 0
    %2493 = vmatpush1.bf16.msra.mxu0 %v2464
    %2494 = vmatprep.subr.bf16.mxu0 0
    %2495 = vmatpush2.bf16.msra.mxu0 0
    %2496 = vmatprep.subr.bf16.mxu0 0
    %2497 = vmatpush2.bf16.msra.mxu0 0
    %2498 = vmatprep.subr.bf16.mxu0 0
    %2499 = vmatpush2.bf16.msra.mxu0 0
    %2500 = vmatprep.subr.bf16.mxu0 0
    %2501 = vmatpush2.bf16.msra.mxu0 0
    %2502 = vmatprep.subr.bf16.mxu0 0
    %2503 = vmatpush2.bf16.msra.mxu0 0
    %2504 = vmatprep.subr.bf16.mxu0 0
    %2505 = vmatpush2.bf16.msra.mxu0 0
    %2506 = vmatprep.subr.bf16.mxu0 0
    %2507 = vmatpush2.bf16.msra.mxu0 0
    %2508 = vmatprep.subr.bf16.mxu0 0
    %2509 = vmatpush2.bf16.msra.mxu0 0
    %2510 = vmatprep.mubr.bf16.mxu0 0
    %2511 = vmatmul.mubr.bf16.gmra.mxu0 %v2473
    %v2512 = vpop.f32.mrf.mxu0
    %v2513 = vadd.f32 0.0, %v2512
    %v2514 = vpop.f32.mrf.mxu0
    %v2515 = vpop.f32.mrf.mxu0
    %v2516 = vadd.f32 0.0, %v2515
    %v2517 = vpop.f32.mrf.mxu0
    %2518 = vmatprep.mubr.bf16.mxu0 0
    %2519 = vmatmul.mubr.bf16.gmra.mxu0 %v2476
    %v2520 = vpop.f32.mrf.mxu0
    %v2521 = vadd.f32 0.0, %v2520
    %v2522 = vpop.f32.mrf.mxu0
    %v2523 = vpop.f32.mrf.mxu0
    %v2524 = vadd.f32 0.0, %v2523
    %v2525 = vpop.f32.mrf.mxu0
    %2526 = vdwg.mxu0
    %v2535 = vunpack.c.l.b16 %v2424
    %v2536 = vunpack.c.l.b16 %v2425
    %v2537 = vunpack.c.l.b16 %v2426
    %v2538 = vunpack.c.l.b16 %v2427
    %v2539 = vunpack.c.l.b16 %v2428
    %v2540 = vunpack.c.l.b16 %v2429
    %v2541 = vunpack.c.l.b16 %v2430
    %v2542 = vunpack.c.l.b16 %v2431
    %v2543 = vpack.c.b16 %v2536, %v2535
    %v2544 = vpack.c.b16 %v2538, %v2537
    %v2545 = vpack.c.b16 %v2540, %v2539
    %v2546 = vpack.c.b16 %v2542, %v2541
    %2551 = vmatprep.subr.bf16.mxu0 0
    %2552 = vmatpush1.bf16.msra.mxu0 0
    %2553 = vmatprep.subr.bf16.mxu0 0
    %2554 = vmatpush1.bf16.msra.mxu0 0
    %2555 = vmatprep.subr.bf16.mxu0 0
    %2556 = vmatpush1.bf16.msra.mxu0 0
    %2557 = vmatprep.subr.bf16.mxu0 0
    %2558 = vmatpush1.bf16.msra.mxu0 0
    %2559 = vmatprep.subr.bf16.mxu0 0
    %2560 = vmatpush1.bf16.msra.mxu0 %v2546
    %2561 = vmatprep.subr.bf16.mxu0 0
    %2562 = vmatpush1.bf16.msra.mxu0 %v2545
    %2563 = vmatprep.subr.bf16.mxu0 0
    %2564 = vmatpush1.bf16.msra.mxu0 %v2544
    %2565 = vmatprep.subr.bf16.mxu0 0
    %2566 = vmatpush1.bf16.msra.mxu0 %v2543
    %2567 = vmatprep.subr.bf16.mxu0 0
    %2568 = vmatpush2.bf16.msra.mxu0 0
    %2569 = vmatprep.subr.bf16.mxu0 0
    %2570 = vmatpush2.bf16.msra.mxu0 0
    %2571 = vmatprep.subr.bf16.mxu0 0
    %2572 = vmatpush2.bf16.msra.mxu0 0
    %2573 = vmatprep.subr.bf16.mxu0 0
    %2574 = vmatpush2.bf16.msra.mxu0 0
    %2575 = vmatprep.subr.bf16.mxu0 0
    %2576 = vmatpush2.bf16.msra.mxu0 0
    %2577 = vmatprep.subr.bf16.mxu0 0
    %2578 = vmatpush2.bf16.msra.mxu0 0
    %2579 = vmatprep.subr.bf16.mxu0 0
    %2580 = vmatpush2.bf16.msra.mxu0 0
    %2581 = vmatprep.subr.bf16.mxu0 0
    %2582 = vmatpush2.bf16.msra.mxu0 0
    %2583 = vmatprep.mubr.bf16.mxu0 0
    %2584 = vmatmul.mubr.bf16.gmra.mxu0 %v2473
    %v2585 = vpop.f32.mrf.mxu0
    %v2586 = vadd.f32 0.0, %v2585
    %v2587 = vpop.f32.mrf.mxu0
    %v2588 = vpop.f32.mrf.mxu0
    %v2589 = vadd.f32 0.0, %v2588
    %v2590 = vpop.f32.mrf.mxu0
    %2591 = vmatprep.mubr.bf16.mxu0 0
    %2592 = vmatmul.mubr.bf16.gmra.mxu0 %v2476
    %v2593 = vpop.f32.mrf.mxu0
    %v2594 = vadd.f32 0.0, %v2593
    %v2595 = vpop.f32.mrf.mxu0
    %v2596 = vpop.f32.mrf.mxu0
    %v2597 = vadd.f32 0.0, %v2596
    %v2598 = vpop.f32.mrf.mxu0
    %2599 = vdwg.mxu0
    %v2608 = vunpack.c.l.b16 %v2432
    %v2609 = vunpack.c.l.b16 %v2433
    %v2610 = vunpack.c.l.b16 %v2434
    %v2611 = vunpack.c.l.b16 %v2435
    %v2612 = vunpack.c.l.b16 %v2436
    %v2613 = vunpack.c.l.b16 %v2437
    %v2614 = vunpack.c.l.b16 %v2438
    %v2615 = vunpack.c.l.b16 %v2439
    %v2616 = vpack.c.b16 %v2609, %v2608
    %v2617 = vpack.c.b16 %v2611, %v2610
    %v2618 = vpack.c.b16 %v2613, %v2612
    %v2619 = vpack.c.b16 %v2615, %v2614
    %2624 = vmatprep.subr.bf16.mxu0 0
    %2625 = vmatpush1.bf16.msra.mxu0 0
    %2626 = vmatprep.subr.bf16.mxu0 0
    %2627 = vmatpush1.bf16.msra.mxu0 0
    %2628 = vmatprep.subr.bf16.mxu0 0
    %2629 = vmatpush1.bf16.msra.mxu0 0
    %2630 = vmatprep.subr.bf16.mxu0 0
    %2631 = vmatpush1.bf16.msra.mxu0 0
    %2632 = vmatprep.subr.bf16.mxu0 0
    %2633 = vmatpush1.bf16.msra.mxu0 %v2619
    %2634 = vmatprep.subr.bf16.mxu0 0
    %2635 = vmatpush1.bf16.msra.mxu0 %v2618
    %2636 = vmatprep.subr.bf16.mxu0 0
    %2637 = vmatpush1.bf16.msra.mxu0 %v2617
    %2638 = vmatprep.subr.bf16.mxu0 0
    %2639 = vmatpush1.bf16.msra.mxu0 %v2616
    %2640 = vmatprep.subr.bf16.mxu0 0
    %2641 = vmatpush2.bf16.msra.mxu0 0
    %2642 = vmatprep.subr.bf16.mxu0 0
    %2643 = vmatpush2.bf16.msra.mxu0 0
    %2644 = vmatprep.subr.bf16.mxu0 0
    %2645 = vmatpush2.bf16.msra.mxu0 0
    %2646 = vmatprep.subr.bf16.mxu0 0
    %2647 = vmatpush2.bf16.msra.mxu0 0
    %2648 = vmatprep.subr.bf16.mxu0 0
    %2649 = vmatpush2.bf16.msra.mxu0 0
    %2650 = vmatprep.subr.bf16.mxu0 0
    %2651 = vmatpush2.bf16.msra.mxu0 0
    %2652 = vmatprep.subr.bf16.mxu0 0
    %2653 = vmatpush2.bf16.msra.mxu0 0
    %2654 = vmatprep.subr.bf16.mxu0 0
    %2655 = vmatpush2.bf16.msra.mxu0 0
    %2656 = vmatprep.mubr.bf16.mxu0 0
    %2657 = vmatmul.mubr.bf16.gmra.mxu0 %v2473
    %v2658 = vpop.f32.mrf.mxu0
    %v2659 = vadd.f32 0.0, %v2658
    %v2660 = vpop.f32.mrf.mxu0
    %v2661 = vpop.f32.mrf.mxu0
    %v2662 = vadd.f32 0.0, %v2661
    %v2663 = vpop.f32.mrf.mxu0
    %2664 = vmatprep.mubr.bf16.mxu0 0
    %2665 = vmatmul.mubr.bf16.gmra.mxu0 %v2476
    %v2666 = vpop.f32.mrf.mxu0
    %v2667 = vadd.f32 0.0, %v2666
    %v2668 = vpop.f32.mrf.mxu0
    %v2669 = vpop.f32.mrf.mxu0
    %v2670 = vadd.f32 0.0, %v2669
    %v2671 = vpop.f32.mrf.mxu0
    %2672 = vdwg.mxu0
    %v2681 = vunpack.c.l.b16 %v2440
    %v2682 = vunpack.c.l.b16 %v2441
    %v2683 = vunpack.c.l.b16 %v2442
    %v2684 = vunpack.c.l.b16 %v2443
    %v2685 = vunpack.c.l.b16 %v2444
    %v2686 = vunpack.c.l.b16 %v2445
    %v2687 = vunpack.c.l.b16 %v2446
    %v2688 = vunpack.c.l.b16 %v2447
    %v2689 = vpack.c.b16 %v2682, %v2681
    %v2690 = vpack.c.b16 %v2684, %v2683
    %v2691 = vpack.c.b16 %v2686, %v2685
    %v2692 = vpack.c.b16 %v2688, %v2687
    %2697 = vmatprep.subr.bf16.mxu0 0
    %2698 = vmatpush1.bf16.msra.mxu0 0
    %2699 = vmatprep.subr.bf16.mxu0 0
    %2700 = vmatpush1.bf16.msra.mxu0 0
    %2701 = vmatprep.subr.bf16.mxu0 0
    %2702 = vmatpush1.bf16.msra.mxu0 0
    %2703 = vmatprep.subr.bf16.mxu0 0
    %2704 = vmatpush1.bf16.msra.mxu0 0
    %2705 = vmatprep.subr.bf16.mxu0 0
    %2706 = vmatpush1.bf16.msra.mxu0 %v2692
    %2707 = vmatprep.subr.bf16.mxu0 0
    %2708 = vmatpush1.bf16.msra.mxu0 %v2691
    %2709 = vmatprep.subr.bf16.mxu0 0
    %2710 = vmatpush1.bf16.msra.mxu0 %v2690
    %2711 = vmatprep.subr.bf16.mxu0 0
    %2712 = vmatpush1.bf16.msra.mxu0 %v2689
    %2713 = vmatprep.subr.bf16.mxu0 0
    %2714 = vmatpush2.bf16.msra.mxu0 0
    %2715 = vmatprep.subr.bf16.mxu0 0
    %2716 = vmatpush2.bf16.msra.mxu0 0
    %2717 = vmatprep.subr.bf16.mxu0 0
    %2718 = vmatpush2.bf16.msra.mxu0 0
    %2719 = vmatprep.subr.bf16.mxu0 0
    %2720 = vmatpush2.bf16.msra.mxu0 0
    %2721 = vmatprep.subr.bf16.mxu0 0
    %2722 = vmatpush2.bf16.msra.mxu0 0
    %2723 = vmatprep.subr.bf16.mxu0 0
    %2724 = vmatpush2.bf16.msra.mxu0 0
    %2725 = vmatprep.subr.bf16.mxu0 0
    %2726 = vmatpush2.bf16.msra.mxu0 0
    %2727 = vmatprep.subr.bf16.mxu0 0
    %2728 = vmatpush2.bf16.msra.mxu0 0
    %2729 = vmatprep.mubr.bf16.mxu0 0
    %2730 = vmatmul.mubr.bf16.gmra.mxu0 %v2473
    %v2731 = vpop.f32.mrf.mxu0
    %v2732 = vadd.f32 0.0, %v2731
    %v2733 = vpop.f32.mrf.mxu0
    %v2734 = vpop.f32.mrf.mxu0
    %v2735 = vadd.f32 0.0, %v2734
    %v2736 = vpop.f32.mrf.mxu0
    %2737 = vmatprep.mubr.bf16.mxu0 0
    %2738 = vmatmul.mubr.bf16.gmra.mxu0 %v2476
    %v2739 = vpop.f32.mrf.mxu0
    %v2740 = vadd.f32 0.0, %v2739
    %v2741 = vpop.f32.mrf.mxu0
    %v2742 = vpop.f32.mrf.mxu0
    %v2743 = vadd.f32 0.0, %v2742
    %v2744 = vpop.f32.mrf.mxu0
    %2745 = vdwg.mxu0
    %2750 = vrot.lane.b32.xlu0 %v2513, 112
    %v2751 = vpop.permute.xlu0 %2750
    %2752 = vrot.lane.b32.xlu0 %v2516, 112
    %v2753 = vpop.permute.xlu0 %2752
    %2754 = vrot.lane.b32.xlu0 %v2521, 112
    %v2755 = vpop.permute.xlu0 %2754
    %2756 = vrot.lane.b32.xlu0 %v2524, 112
    %v2757 = vpop.permute.xlu0 %2756
    %v2758 = vsel %vm618, %v2513, 0
    %v2760 = vsel %vm618, %v2516, 0
    %v2762 = vsel %vm618, %v2521, 0
    %v2764 = vsel %vm618, %v2524, 0
    %v2766 = vsel %vm618, %v2751, 0
    %v2768 = vsel %vm618, %v2753, 0
    %v2770 = vsel %vm618, %v2755, 0
    %v2772 = vsel %vm618, %v2757, 0
    %2774 = vmatprep.subr.mxu0 0.0
    %2775 = vmatpush1.xpose.msra.mxu0 0.0
    %2776 = vmatprep.subr.mxu0 0.0
    %2777 = vmatpush1.xpose.msra.mxu0 0.0
    %2778 = vmatprep.subr.mxu0 0.0
    %2779 = vmatpush1.xpose.msra.mxu0 0.0
    %2780 = vmatprep.subr.mxu0 0.0
    %2781 = vmatpush1.xpose.msra.mxu0 0.0
    %2782 = vmatprep.subr.mxu0 0.0
    %2783 = vmatpush1.xpose.msra.mxu0 0.0
    %2784 = vmatprep.subr.mxu0 0.0
    %2785 = vmatpush1.xpose.msra.mxu0 0.0
    %2786 = vmatprep.subr.mxu0 0.0
    %2787 = vmatpush1.xpose.msra.mxu0 0.0
    %2788 = vmatprep.subr.mxu0 0.0
    %2789 = vmatpush1.xpose.msra.mxu0 0.0
    %2790 = vmatprep.subr.mxu0 0.0
    %2791 = vmatpush1.xpose.msra.mxu0 0.0
    %2792 = vmatprep.subr.mxu0 0.0
    %2793 = vmatpush1.xpose.msra.mxu0 0.0
    %2794 = vmatprep.subr.mxu0 0.0
    %2795 = vmatpush1.xpose.msra.mxu0 0.0
    %2796 = vmatprep.subr.mxu0 0.0
    %2797 = vmatpush1.xpose.msra.mxu0 0.0
    %2798 = vmatprep.subr.mxu0 0.0
    %2799 = vmatpush1.xpose.msra.mxu0 %v2772
    %2800 = vmatprep.subr.mxu0 0.0
    %2801 = vmatpush1.xpose.msra.mxu0 %v2770
    %2802 = vmatprep.subr.mxu0 0.0
    %2803 = vmatpush1.xpose.msra.mxu0 %v2768
    %2804 = vmatprep.subr.mxu0 0.0
    %2805 = vmatpush1.xpose.msra.mxu0 %v2766
    %2806 = vmatprep.subr.mxu0 0.0
    %2807 = vmatpush2.xpose.msra.mxu0 0.0
    %2808 = vmatprep.subr.mxu0 0.0
    %2809 = vmatpush2.xpose.msra.mxu0 0.0
    %2810 = vmatprep.subr.mxu0 0.0
    %2811 = vmatpush2.xpose.msra.mxu0 0.0
    %2812 = vmatprep.subr.mxu0 0.0
    %2813 = vmatpush2.xpose.msra.mxu0 0.0
    %2814 = vmatprep.subr.mxu0 0.0
    %2815 = vmatpush2.xpose.msra.mxu0 0.0
    %2816 = vmatprep.subr.mxu0 0.0
    %2817 = vmatpush2.xpose.msra.mxu0 0.0
    %2818 = vmatprep.subr.mxu0 0.0
    %2819 = vmatpush2.xpose.msra.mxu0 0.0
    %2820 = vmatprep.subr.mxu0 0.0
    %2821 = vmatpush2.xpose.msra.mxu0 0.0
    %2822 = vmatprep.subr.mxu0 0.0
    %2823 = vmatpush2.xpose.msra.mxu0 0.0
    %2824 = vmatprep.subr.mxu0 0.0
    %2825 = vmatpush2.xpose.msra.mxu0 0.0
    %2826 = vmatprep.subr.mxu0 0.0
    %2827 = vmatpush2.xpose.msra.mxu0 0.0
    %2828 = vmatprep.subr.mxu0 0.0
    %2829 = vmatpush2.xpose.msra.mxu0 0.0
    %2830 = vmatprep.subr.mxu0 0.0
    %2831 = vmatpush2.xpose.msra.mxu0 0.0
    %2832 = vmatprep.subr.mxu0 0.0
    %2833 = vmatpush2.xpose.msra.mxu0 0.0
    %2834 = vmatprep.subr.mxu0 0.0
    %2835 = vmatpush2.xpose.msra.mxu0 0.0
    %2836 = vmatprep.subr.mxu0 0.0
    %2837 = vmatpush2.xpose.msra.mxu0 0.0
    %2838 = vmatprep.mubr.f32.mxu0 0.0
    %2839 = vmatmul.mubr.f32.gmra.mxu0 %v2758
    %v2840 = vpop.f32.mrf.mxu0
    %v2841 = vadd.f32 %v200, %v2840
    %v2842 = vpop.f32.mrf.mxu0
    %2843 = vmatprep.mubr.f32.mxu0 0.0
    %2844 = vmatmul.mubr.f32.gmra.mxu0 %v2760
    %v2845 = vpop.f32.mrf.mxu0
    %v2846 = vadd.f32 %v201, %v2845
    %v2847 = vpop.f32.mrf.mxu0
    %2848 = vmatprep.mubr.f32.mxu0 0.0
    %2849 = vmatmul.mubr.f32.gmra.mxu0 %v2762
    %v2850 = vpop.f32.mrf.mxu0
    %v2851 = vadd.f32 %v202, %v2850
    %v2852 = vpop.f32.mrf.mxu0
    %2853 = vmatprep.mubr.f32.mxu0 0.0
    %2854 = vmatmul.mubr.f32.gmra.mxu0 %v2764
    %v2855 = vpop.f32.mrf.mxu0
    %v2856 = vadd.f32 %v203, %v2855
    %v2857 = vpop.f32.mrf.mxu0
    %2858 = vdwg.mxu0
    %2863 = vrot.lane.b32.xlu0 %v2586, 112
    %v2864 = vpop.permute.xlu0 %2863
    %2865 = vrot.lane.b32.xlu0 %v2589, 112
    %v2866 = vpop.permute.xlu0 %2865
    %2867 = vrot.lane.b32.xlu0 %v2594, 112
    %v2868 = vpop.permute.xlu0 %2867
    %2869 = vrot.lane.b32.xlu0 %v2597, 112
    %v2870 = vpop.permute.xlu0 %2869
    %v2871 = vsel %vm618, %v2586, 0
    %v2873 = vsel %vm618, %v2589, 0
    %v2875 = vsel %vm618, %v2594, 0
    %v2877 = vsel %vm618, %v2597, 0
    %v2879 = vsel %vm618, %v2864, 0
    %v2881 = vsel %vm618, %v2866, 0
    %v2883 = vsel %vm618, %v2868, 0
    %v2885 = vsel %vm618, %v2870, 0
    %2887 = vmatprep.subr.mxu0 0.0
    %2888 = vmatpush1.xpose.msra.mxu0 0.0
    %2889 = vmatprep.subr.mxu0 0.0
    %2890 = vmatpush1.xpose.msra.mxu0 0.0
    %2891 = vmatprep.subr.mxu0 0.0
    %2892 = vmatpush1.xpose.msra.mxu0 0.0
    %2893 = vmatprep.subr.mxu0 0.0
    %2894 = vmatpush1.xpose.msra.mxu0 0.0
    %2895 = vmatprep.subr.mxu0 0.0
    %2896 = vmatpush1.xpose.msra.mxu0 0.0
    %2897 = vmatprep.subr.mxu0 0.0
    %2898 = vmatpush1.xpose.msra.mxu0 0.0
    %2899 = vmatprep.subr.mxu0 0.0
    %2900 = vmatpush1.xpose.msra.mxu0 0.0
    %2901 = vmatprep.subr.mxu0 0.0
    %2902 = vmatpush1.xpose.msra.mxu0 0.0
    %2903 = vmatprep.subr.mxu0 0.0
    %2904 = vmatpush1.xpose.msra.mxu0 0.0
    %2905 = vmatprep.subr.mxu0 0.0
    %2906 = vmatpush1.xpose.msra.mxu0 0.0
    %2907 = vmatprep.subr.mxu0 0.0
    %2908 = vmatpush1.xpose.msra.mxu0 0.0
    %2909 = vmatprep.subr.mxu0 0.0
    %2910 = vmatpush1.xpose.msra.mxu0 0.0
    %2911 = vmatprep.subr.mxu0 0.0
    %2912 = vmatpush1.xpose.msra.mxu0 %v2885
    %2913 = vmatprep.subr.mxu0 0.0
    %2914 = vmatpush1.xpose.msra.mxu0 %v2883
    %2915 = vmatprep.subr.mxu0 0.0
    %2916 = vmatpush1.xpose.msra.mxu0 %v2881
    %2917 = vmatprep.subr.mxu0 0.0
    %2918 = vmatpush1.xpose.msra.mxu0 %v2879
    %2919 = vmatprep.subr.mxu0 0.0
    %2920 = vmatpush2.xpose.msra.mxu0 0.0
    %2921 = vmatprep.subr.mxu0 0.0
    %2922 = vmatpush2.xpose.msra.mxu0 0.0
    %2923 = vmatprep.subr.mxu0 0.0
    %2924 = vmatpush2.xpose.msra.mxu0 0.0
    %2925 = vmatprep.subr.mxu0 0.0
    %2926 = vmatpush2.xpose.msra.mxu0 0.0
    %2927 = vmatprep.subr.mxu0 0.0
    %2928 = vmatpush2.xpose.msra.mxu0 0.0
    %2929 = vmatprep.subr.mxu0 0.0
    %2930 = vmatpush2.xpose.msra.mxu0 0.0
    %2931 = vmatprep.subr.mxu0 0.0
    %2932 = vmatpush2.xpose.msra.mxu0 0.0
    %2933 = vmatprep.subr.mxu0 0.0
    %2934 = vmatpush2.xpose.msra.mxu0 0.0
    %2935 = vmatprep.subr.mxu0 0.0
    %2936 = vmatpush2.xpose.msra.mxu0 0.0
    %2937 = vmatprep.subr.mxu0 0.0
    %2938 = vmatpush2.xpose.msra.mxu0 0.0
    %2939 = vmatprep.subr.mxu0 0.0
    %2940 = vmatpush2.xpose.msra.mxu0 0.0
    %2941 = vmatprep.subr.mxu0 0.0
    %2942 = vmatpush2.xpose.msra.mxu0 0.0
    %2943 = vmatprep.subr.mxu0 0.0
    %2944 = vmatpush2.xpose.msra.mxu0 0.0
    %2945 = vmatprep.subr.mxu0 0.0
    %2946 = vmatpush2.xpose.msra.mxu0 0.0
    %2947 = vmatprep.subr.mxu0 0.0
    %2948 = vmatpush2.xpose.msra.mxu0 0.0
    %2949 = vmatprep.subr.mxu0 0.0
    %2950 = vmatpush2.xpose.msra.mxu0 0.0
    %2951 = vmatprep.mubr.f32.mxu0 0.0
    %2952 = vmatmul.mubr.f32.gmra.mxu0 %v2871
    %v2953 = vpop.f32.mrf.mxu0
    %v2954 = vadd.f32 %v200, %v2953
    %v2955 = vpop.f32.mrf.mxu0
    %2956 = vmatprep.mubr.f32.mxu0 0.0
    %2957 = vmatmul.mubr.f32.gmra.mxu0 %v2873
    %v2958 = vpop.f32.mrf.mxu0
    %v2959 = vadd.f32 %v201, %v2958
    %v2960 = vpop.f32.mrf.mxu0
    %2961 = vmatprep.mubr.f32.mxu0 0.0
    %2962 = vmatmul.mubr.f32.gmra.mxu0 %v2875
    %v2963 = vpop.f32.mrf.mxu0
    %v2964 = vadd.f32 %v202, %v2963
    %v2965 = vpop.f32.mrf.mxu0
    %2966 = vmatprep.mubr.f32.mxu0 0.0
    %2967 = vmatmul.mubr.f32.gmra.mxu0 %v2877
    %v2968 = vpop.f32.mrf.mxu0
    %v2969 = vadd.f32 %v203, %v2968
    %v2970 = vpop.f32.mrf.mxu0
    %2971 = vdwg.mxu0
    %2976 = vrot.lane.b32.xlu0 %v2659, 112
    %v2977 = vpop.permute.xlu0 %2976
    %2978 = vrot.lane.b32.xlu0 %v2662, 112
    %v2979 = vpop.permute.xlu0 %2978
    %2980 = vrot.lane.b32.xlu0 %v2667, 112
    %v2981 = vpop.permute.xlu0 %2980
    %2982 = vrot.lane.b32.xlu0 %v2670, 112
    %v2983 = vpop.permute.xlu0 %2982
    %v2984 = vsel %vm618, %v2659, 0
    %v2986 = vsel %vm618, %v2662, 0
    %v2988 = vsel %vm618, %v2667, 0
    %v2990 = vsel %vm618, %v2670, 0
    %v2992 = vsel %vm618, %v2977, 0
    %v2994 = vsel %vm618, %v2979, 0
    %v2996 = vsel %vm618, %v2981, 0
    %v2998 = vsel %vm618, %v2983, 0
    %3000 = vmatprep.subr.mxu0 0.0
    %3001 = vmatpush1.xpose.msra.mxu0 0.0
    %3002 = vmatprep.subr.mxu0 0.0
    %3003 = vmatpush1.xpose.msra.mxu0 0.0
    %3004 = vmatprep.subr.mxu0 0.0
    %3005 = vmatpush1.xpose.msra.mxu0 0.0
    %3006 = vmatprep.subr.mxu0 0.0
    %3007 = vmatpush1.xpose.msra.mxu0 0.0
    %3008 = vmatprep.subr.mxu0 0.0
    %3009 = vmatpush1.xpose.msra.mxu0 0.0
    %3010 = vmatprep.subr.mxu0 0.0
    %3011 = vmatpush1.xpose.msra.mxu0 0.0
    %3012 = vmatprep.subr.mxu0 0.0
    %3013 = vmatpush1.xpose.msra.mxu0 0.0
    %3014 = vmatprep.subr.mxu0 0.0
    %3015 = vmatpush1.xpose.msra.mxu0 0.0
    %3016 = vmatprep.subr.mxu0 0.0
    %3017 = vmatpush1.xpose.msra.mxu0 0.0
    %3018 = vmatprep.subr.mxu0 0.0
    %3019 = vmatpush1.xpose.msra.mxu0 0.0
    %3020 = vmatprep.subr.mxu0 0.0
    %3021 = vmatpush1.xpose.msra.mxu0 0.0
    %3022 = vmatprep.subr.mxu0 0.0
    %3023 = vmatpush1.xpose.msra.mxu0 0.0
    %3024 = vmatprep.subr.mxu0 0.0
    %3025 = vmatpush1.xpose.msra.mxu0 %v2998
    %3026 = vmatprep.subr.mxu0 0.0
    %3027 = vmatpush1.xpose.msra.mxu0 %v2996
    %3028 = vmatprep.subr.mxu0 0.0
    %3029 = vmatpush1.xpose.msra.mxu0 %v2994
    %3030 = vmatprep.subr.mxu0 0.0
    %3031 = vmatpush1.xpose.msra.mxu0 %v2992
    %3032 = vmatprep.subr.mxu0 0.0
    %3033 = vmatpush2.xpose.msra.mxu0 0.0
    %3034 = vmatprep.subr.mxu0 0.0
    %3035 = vmatpush2.xpose.msra.mxu0 0.0
    %3036 = vmatprep.subr.mxu0 0.0
    %3037 = vmatpush2.xpose.msra.mxu0 0.0
    %3038 = vmatprep.subr.mxu0 0.0
    %3039 = vmatpush2.xpose.msra.mxu0 0.0
    %3040 = vmatprep.subr.mxu0 0.0
    %3041 = vmatpush2.xpose.msra.mxu0 0.0
    %3042 = vmatprep.subr.mxu0 0.0
    %3043 = vmatpush2.xpose.msra.mxu0 0.0
    %3044 = vmatprep.subr.mxu0 0.0
    %3045 = vmatpush2.xpose.msra.mxu0 0.0
    %3046 = vmatprep.subr.mxu0 0.0
    %3047 = vmatpush2.xpose.msra.mxu0 0.0
    %3048 = vmatprep.subr.mxu0 0.0
    %3049 = vmatpush2.xpose.msra.mxu0 0.0
    %3050 = vmatprep.subr.mxu0 0.0
    %3051 = vmatpush2.xpose.msra.mxu0 0.0
    %3052 = vmatprep.subr.mxu0 0.0
    %3053 = vmatpush2.xpose.msra.mxu0 0.0
    %3054 = vmatprep.subr.mxu0 0.0
    %3055 = vmatpush2.xpose.msra.mxu0 0.0
    %3056 = vmatprep.subr.mxu0 0.0
    %3057 = vmatpush2.xpose.msra.mxu0 0.0
    %3058 = vmatprep.subr.mxu0 0.0
    %3059 = vmatpush2.xpose.msra.mxu0 0.0
    %3060 = vmatprep.subr.mxu0 0.0
    %3061 = vmatpush2.xpose.msra.mxu0 0.0
    %3062 = vmatprep.subr.mxu0 0.0
    %3063 = vmatpush2.xpose.msra.mxu0 0.0
    %3064 = vmatprep.mubr.f32.mxu0 0.0
    %3065 = vmatmul.mubr.f32.gmra.mxu0 %v2984
    %v3066 = vpop.f32.mrf.mxu0
    %v3067 = vadd.f32 %v200, %v3066
    %v3068 = vpop.f32.mrf.mxu0
    %3069 = vmatprep.mubr.f32.mxu0 0.0
    %3070 = vmatmul.mubr.f32.gmra.mxu0 %v2986
    %v3071 = vpop.f32.mrf.mxu0
    %v3072 = vadd.f32 %v201, %v3071
    %v3073 = vpop.f32.mrf.mxu0
    %3074 = vmatprep.mubr.f32.mxu0 0.0
    %3075 = vmatmul.mubr.f32.gmra.mxu0 %v2988
    %v3076 = vpop.f32.mrf.mxu0
    %v3077 = vadd.f32 %v202, %v3076
    %v3078 = vpop.f32.mrf.mxu0
    %3079 = vmatprep.mubr.f32.mxu0 0.0
    %3080 = vmatmul.mubr.f32.gmra.mxu0 %v2990
    %v3081 = vpop.f32.mrf.mxu0
    %v3082 = vadd.f32 %v203, %v3081
    %v3083 = vpop.f32.mrf.mxu0
    %3084 = vdwg.mxu0
    %3089 = vrot.lane.b32.xlu0 %v2732, 112
    %v3090 = vpop.permute.xlu0 %3089
    %3091 = vrot.lane.b32.xlu0 %v2735, 112
    %v3092 = vpop.permute.xlu0 %3091
    %3093 = vrot.lane.b32.xlu0 %v2740, 112
    %v3094 = vpop.permute.xlu0 %3093
    %3095 = vrot.lane.b32.xlu0 %v2743, 112
    %v3096 = vpop.permute.xlu0 %3095
    %v3097 = vsel %vm618, %v2732, 0
    %v3099 = vsel %vm618, %v2735, 0
    %v3101 = vsel %vm618, %v2740, 0
    %v3103 = vsel %vm618, %v2743, 0
    %v3105 = vsel %vm618, %v3090, 0
    %v3107 = vsel %vm618, %v3092, 0
    %v3109 = vsel %vm618, %v3094, 0
    %v3111 = vsel %vm618, %v3096, 0
    %3113 = vmatprep.subr.mxu0 0.0
    %3114 = vmatpush1.xpose.msra.mxu0 0.0
    %3115 = vmatprep.subr.mxu0 0.0
    %3116 = vmatpush1.xpose.msra.mxu0 0.0
    %3117 = vmatprep.subr.mxu0 0.0
    %3118 = vmatpush1.xpose.msra.mxu0 0.0
    %3119 = vmatprep.subr.mxu0 0.0
    %3120 = vmatpush1.xpose.msra.mxu0 0.0
    %3121 = vmatprep.subr.mxu0 0.0
    %3122 = vmatpush1.xpose.msra.mxu0 0.0
    %3123 = vmatprep.subr.mxu0 0.0
    %3124 = vmatpush1.xpose.msra.mxu0 0.0
    %3125 = vmatprep.subr.mxu0 0.0
    %3126 = vmatpush1.xpose.msra.mxu0 0.0
    %3127 = vmatprep.subr.mxu0 0.0
    %3128 = vmatpush1.xpose.msra.mxu0 0.0
    %3129 = vmatprep.subr.mxu0 0.0
    %3130 = vmatpush1.xpose.msra.mxu0 0.0
    %3131 = vmatprep.subr.mxu0 0.0
    %3132 = vmatpush1.xpose.msra.mxu0 0.0
    %3133 = vmatprep.subr.mxu0 0.0
    %3134 = vmatpush1.xpose.msra.mxu0 0.0
    %3135 = vmatprep.subr.mxu0 0.0
    %3136 = vmatpush1.xpose.msra.mxu0 0.0
    %3137 = vmatprep.subr.mxu0 0.0
    %3138 = vmatpush1.xpose.msra.mxu0 %v3111
    %3139 = vmatprep.subr.mxu0 0.0
    %3140 = vmatpush1.xpose.msra.mxu0 %v3109
    %3141 = vmatprep.subr.mxu0 0.0
    %3142 = vmatpush1.xpose.msra.mxu0 %v3107
    %3143 = vmatprep.subr.mxu0 0.0
    %3144 = vmatpush1.xpose.msra.mxu0 %v3105
    %3145 = vmatprep.subr.mxu0 0.0
    %3146 = vmatpush2.xpose.msra.mxu0 0.0
    %3147 = vmatprep.subr.mxu0 0.0
    %3148 = vmatpush2.xpose.msra.mxu0 0.0
    %3149 = vmatprep.subr.mxu0 0.0
    %3150 = vmatpush2.xpose.msra.mxu0 0.0
    %3151 = vmatprep.subr.mxu0 0.0
    %3152 = vmatpush2.xpose.msra.mxu0 0.0
    %3153 = vmatprep.subr.mxu0 0.0
    %3154 = vmatpush2.xpose.msra.mxu0 0.0
    %3155 = vmatprep.subr.mxu0 0.0
    %3156 = vmatpush2.xpose.msra.mxu0 0.0
    %3157 = vmatprep.subr.mxu0 0.0
    %3158 = vmatpush2.xpose.msra.mxu0 0.0
    %3159 = vmatprep.subr.mxu0 0.0
    %3160 = vmatpush2.xpose.msra.mxu0 0.0
    %3161 = vmatprep.subr.mxu0 0.0
    %3162 = vmatpush2.xpose.msra.mxu0 0.0
    %3163 = vmatprep.subr.mxu0 0.0
    %3164 = vmatpush2.xpose.msra.mxu0 0.0
    %3165 = vmatprep.subr.mxu0 0.0
    %3166 = vmatpush2.xpose.msra.mxu0 0.0
    %3167 = vmatprep.subr.mxu0 0.0
    %3168 = vmatpush2.xpose.msra.mxu0 0.0
    %3169 = vmatprep.subr.mxu0 0.0
    %3170 = vmatpush2.xpose.msra.mxu0 0.0
    %3171 = vmatprep.subr.mxu0 0.0
    %3172 = vmatpush2.xpose.msra.mxu0 0.0
    %3173 = vmatprep.subr.mxu0 0.0
    %3174 = vmatpush2.xpose.msra.mxu0 0.0
    %3175 = vmatprep.subr.mxu0 0.0
    %3176 = vmatpush2.xpose.msra.mxu0 0.0
    %3177 = vmatprep.mubr.f32.mxu0 0.0
    %3178 = vmatmul.mubr.f32.gmra.mxu0 %v3097
    %v3179 = vpop.f32.mrf.mxu0
    %v3180 = vadd.f32 %v200, %v3179
    %v3181 = vpop.f32.mrf.mxu0
    %3182 = vmatprep.mubr.f32.mxu0 0.0
    %3183 = vmatmul.mubr.f32.gmra.mxu0 %v3099
    %v3184 = vpop.f32.mrf.mxu0
    %v3185 = vadd.f32 %v201, %v3184
    %v3186 = vpop.f32.mrf.mxu0
    %3187 = vmatprep.mubr.f32.mxu0 0.0
    %3188 = vmatmul.mubr.f32.gmra.mxu0 %v3101
    %v3189 = vpop.f32.mrf.mxu0
    %v3190 = vadd.f32 %v202, %v3189
    %v3191 = vpop.f32.mrf.mxu0
    %3192 = vmatprep.mubr.f32.mxu0 0.0
    %3193 = vmatmul.mubr.f32.gmra.mxu0 %v3103
    %v3194 = vpop.f32.mrf.mxu0
    %v3195 = vadd.f32 %v203, %v3194
    %v3196 = vpop.f32.mrf.mxu0
    %3197 = vdwg.mxu0
    %v3198 = vsel %vm1059, %v2841, -inf
    %3199 = vmax.xlane.f32.xlu0 %v3198
    %v3200 = vpop.xlane.xlu0 %3199
    %v3201 = vsel %vm1059, %v2846, -inf
    %3202 = vmax.xlane.f32.xlu0 %v3201
    %v3203 = vpop.xlane.xlu0 %3202
    %v3204 = vsel %vm1059, %v2851, -inf
    %3205 = vmax.xlane.f32.xlu0 %v3204
    %v3206 = vpop.xlane.xlu0 %3205
    %v3207 = vsel %vm1059, %v2856, -inf
    %3208 = vmax.xlane.f32.xlu0 %v3207
    %v3209 = vpop.xlane.xlu0 %3208
    %v3210 = vsel %vm1059, %v2954, -inf
    %3211 = vmax.xlane.f32.xlu0 %v3210
    %v3212 = vpop.xlane.xlu0 %3211
    %v3213 = vsel %vm1059, %v2959, -inf
    %3214 = vmax.xlane.f32.xlu0 %v3213
    %v3215 = vpop.xlane.xlu0 %3214
    %v3216 = vsel %vm1059, %v2964, -inf
    %3217 = vmax.xlane.f32.xlu0 %v3216
    %v3218 = vpop.xlane.xlu0 %3217
    %v3219 = vsel %vm1059, %v2969, -inf
    %3220 = vmax.xlane.f32.xlu0 %v3219
    %v3221 = vpop.xlane.xlu0 %3220
    %v3222 = vsel %vm1059, %v3067, -inf
    %3223 = vmax.xlane.f32.xlu0 %v3222
    %v3224 = vpop.xlane.xlu0 %3223
    %v3225 = vsel %vm1059, %v3072, -inf
    %3226 = vmax.xlane.f32.xlu0 %v3225
    %v3227 = vpop.xlane.xlu0 %3226
    %v3228 = vsel %vm1059, %v3077, -inf
    %3229 = vmax.xlane.f32.xlu0 %v3228
    %v3230 = vpop.xlane.xlu0 %3229
    %v3231 = vsel %vm1059, %v3082, -inf
    %3232 = vmax.xlane.f32.xlu0 %v3231
    %v3233 = vpop.xlane.xlu0 %3232
    %v3234 = vsel %vm1059, %v3180, -inf
    %3235 = vmax.xlane.f32.xlu0 %v3234
    %v3236 = vpop.xlane.xlu0 %3235
    %v3237 = vsel %vm1059, %v3185, -inf
    %3238 = vmax.xlane.f32.xlu0 %v3237
    %v3239 = vpop.xlane.xlu0 %3238
    %v3240 = vsel %vm1059, %v3190, -inf
    %3241 = vmax.xlane.f32.xlu0 %v3240
    %v3242 = vpop.xlane.xlu0 %3241
    %v3243 = vsel %vm1059, %v3195, -inf
    %3244 = vmax.xlane.f32.xlu0 %v3243
    %v3245 = vpop.xlane.xlu0 %3244
    %v3246 = vsub.f32 %v2841, %v3200
    %v3247 = vsub.f32 %v2846, %v3203
    %v3248 = vsub.f32 %v2851, %v3206
    %v3249 = vsub.f32 %v2856, %v3209
    %v3250 = vsub.f32 %v2954, %v3212
    %v3251 = vsub.f32 %v2959, %v3215
    %v3252 = vsub.f32 %v2964, %v3218
    %v3253 = vsub.f32 %v2969, %v3221
    %v3254 = vsub.f32 %v3067, %v3224
    %v3255 = vsub.f32 %v3072, %v3227
    %v3256 = vsub.f32 %v3077, %v3230
    %v3257 = vsub.f32 %v3082, %v3233
    %v3258 = vsub.f32 %v3180, %v3236
    %v3259 = vsub.f32 %v3185, %v3239
    %v3260 = vsub.f32 %v3190, %v3242
    %v3261 = vsub.f32 %v3195, %v3245
    %v3262 = vmul.f32 %v3246, 1.442695
    %v3263 = vpow.pop %v3262
    %v3264 = vmul.f32 %v3247, 1.442695
    %v3265 = vpow.pop %v3264
    %v3266 = vmul.f32 %v3248, 1.442695
    %v3267 = vpow.pop %v3266
    %v3268 = vmul.f32 %v3249, 1.442695
    %v3269 = vpow.pop %v3268
    %v3270 = vmul.f32 %v3250, 1.442695
    %v3271 = vpow.pop %v3270
    %v3272 = vmul.f32 %v3251, 1.442695
    %v3273 = vpow.pop %v3272
    %v3274 = vmul.f32 %v3252, 1.442695
    %v3275 = vpow.pop %v3274
    %v3276 = vmul.f32 %v3253, 1.442695
    %v3277 = vpow.pop %v3276
    %v3278 = vmul.f32 %v3254, 1.442695
    %v3279 = vpow.pop %v3278
    %v3280 = vmul.f32 %v3255, 1.442695
    %v3281 = vpow.pop %v3280
    %v3282 = vmul.f32 %v3256, 1.442695
    %v3283 = vpow.pop %v3282
    %v3284 = vmul.f32 %v3257, 1.442695
    %v3285 = vpow.pop %v3284
    %v3286 = vmul.f32 %v3258, 1.442695
    %v3287 = vpow.pop %v3286
    %v3288 = vmul.f32 %v3259, 1.442695
    %v3289 = vpow.pop %v3288
    %v3290 = vmul.f32 %v3260, 1.442695
    %v3291 = vpow.pop %v3290
    %v3292 = vmul.f32 %v3261, 1.442695
    %v3293 = vpow.pop %v3292
    %v3294 = vsel %vm1059, %v3263, 0.0
    %3295 = vadd.xlane.f32.xlu0 %v3294
    %v3296 = vpop.xlane.xlu0 %3295
    %v3297 = vsel %vm1059, %v3265, 0.0
    %3298 = vadd.xlane.f32.xlu0 %v3297
    %v3299 = vpop.xlane.xlu0 %3298
    %v3300 = vsel %vm1059, %v3267, 0.0
    %3301 = vadd.xlane.f32.xlu0 %v3300
    %v3302 = vpop.xlane.xlu0 %3301
    %v3303 = vsel %vm1059, %v3269, 0.0
    %3304 = vadd.xlane.f32.xlu0 %v3303
    %v3305 = vpop.xlane.xlu0 %3304
    %v3306 = vsel %vm1059, %v3271, 0.0
    %3307 = vadd.xlane.f32.xlu0 %v3306
    %v3308 = vpop.xlane.xlu0 %3307
    %v3309 = vsel %vm1059, %v3273, 0.0
    %3310 = vadd.xlane.f32.xlu0 %v3309
    %v3311 = vpop.xlane.xlu0 %3310
    %v3312 = vsel %vm1059, %v3275, 0.0
    %3313 = vadd.xlane.f32.xlu0 %v3312
    %v3314 = vpop.xlane.xlu0 %3313
    %v3315 = vsel %vm1059, %v3277, 0.0
    %3316 = vadd.xlane.f32.xlu0 %v3315
    %v3317 = vpop.xlane.xlu0 %3316
    %v3318 = vsel %vm1059, %v3279, 0.0
    %3319 = vadd.xlane.f32.xlu0 %v3318
    %v3320 = vpop.xlane.xlu0 %3319
    %v3321 = vsel %vm1059, %v3281, 0.0
    %3322 = vadd.xlane.f32.xlu0 %v3321
    %v3323 = vpop.xlane.xlu0 %3322
    %v3324 = vsel %vm1059, %v3283, 0.0
    %3325 = vadd.xlane.f32.xlu0 %v3324
    %v3326 = vpop.xlane.xlu0 %3325
    %v3327 = vsel %vm1059, %v3285, 0.0
    %3328 = vadd.xlane.f32.xlu0 %v3327
    %v3329 = vpop.xlane.xlu0 %3328
    %v3330 = vsel %vm1059, %v3287, 0.0
    %3331 = vadd.xlane.f32.xlu0 %v3330
    %v3332 = vpop.xlane.xlu0 %3331
    %v3333 = vsel %vm1059, %v3289, 0.0
    %3334 = vadd.xlane.f32.xlu0 %v3333
    %v3335 = vpop.xlane.xlu0 %3334
    %v3336 = vsel %vm1059, %v3291, 0.0
    %3337 = vadd.xlane.f32.xlu0 %v3336
    %v3338 = vpop.xlane.xlu0 %3337
    %v3339 = vsel %vm1059, %v3293, 0.0
    %3340 = vadd.xlane.f32.xlu0 %v3339
    %v3341 = vpop.xlane.xlu0 %3340
    %v3342 = vrcp.pop %v3296
    %v3343 = vrcp.pop %v3299
    %v3344 = vrcp.pop %v3302
    %v3345 = vrcp.pop %v3305
    %v3346 = vrcp.pop %v3308
    %v3347 = vrcp.pop %v3311
    %v3348 = vrcp.pop %v3314
    %v3349 = vrcp.pop %v3317
    %v3350 = vrcp.pop %v3320
    %v3351 = vrcp.pop %v3323
    %v3352 = vrcp.pop %v3326
    %v3353 = vrcp.pop %v3329
    %v3354 = vrcp.pop %v3332
    %v3355 = vrcp.pop %v3335
    %v3356 = vrcp.pop %v3338
    %v3357 = vrcp.pop %v3341
    %v3358 = vmul.f32 %v3263, %v3342
    %v3359 = vmul.f32 %v3265, %v3343
    %v3360 = vmul.f32 %v3267, %v3344
    %v3361 = vmul.f32 %v3269, %v3345
    %v3362 = vmul.f32 %v3271, %v3346
    %v3363 = vmul.f32 %v3273, %v3347
    %v3364 = vmul.f32 %v3275, %v3348
    %v3365 = vmul.f32 %v3277, %v3349
    %v3366 = vmul.f32 %v3279, %v3350
    %v3367 = vmul.f32 %v3281, %v3351
    %v3368 = vmul.f32 %v3283, %v3352
    %v3369 = vmul.f32 %v3285, %v3353
    %v3370 = vmul.f32 %v3287, %v3354
    %v3371 = vmul.f32 %v3289, %v3355
    %v3372 = vmul.f32 %v3291, %v3356
    %v3373 = vmul.f32 %v3293, %v3357
    %3374 = vrot.lane.b32.xlu0 %v2513, 96
    %v3375 = vpop.permute.xlu0 %3374
    %3376 = vrot.lane.b32.xlu0 %v2516, 96
    %v3377 = vpop.permute.xlu0 %3376
    %3378 = vrot.lane.b32.xlu0 %v2521, 96
    %v3379 = vpop.permute.xlu0 %3378
    %3380 = vrot.lane.b32.xlu0 %v2524, 96
    %v3381 = vpop.permute.xlu0 %3380
    %v3387 = vsel %vm1059, %v3358, 0
    %v3390 = vsel %vm1059, %v3359, 0
    %v3393 = vsel %vm1059, %v3360, 0
    %v3396 = vsel %vm1059, %v3361, 0
    %3398 = vmatprep.subr.mxu0 0.0
    %3399 = vmatpush1.msra.mxu0 0.0
    %3400 = vmatprep.subr.mxu0 0.0
    %3401 = vmatpush1.msra.mxu0 0.0
    %3402 = vmatprep.subr.mxu0 0.0
    %3403 = vmatpush1.msra.mxu0 0.0
    %3404 = vmatprep.subr.mxu0 0.0
    %3405 = vmatpush1.msra.mxu0 0.0
    %3406 = vmatprep.subr.mxu0 0.0
    %3407 = vmatpush1.msra.mxu0 0.0
    %3408 = vmatprep.subr.mxu0 0.0
    %3409 = vmatpush1.msra.mxu0 0.0
    %3410 = vmatprep.subr.mxu0 0.0
    %3411 = vmatpush1.msra.mxu0 0.0
    %3412 = vmatprep.subr.mxu0 0.0
    %3413 = vmatpush1.msra.mxu0 0.0
    %3414 = vmatprep.subr.mxu0 0.0
    %3415 = vmatpush1.msra.mxu0 0.0
    %3416 = vmatprep.subr.mxu0 0.0
    %3417 = vmatpush1.msra.mxu0 0.0
    %3418 = vmatprep.subr.mxu0 0.0
    %3419 = vmatpush1.msra.mxu0 0.0
    %3420 = vmatprep.subr.mxu0 0.0
    %3421 = vmatpush1.msra.mxu0 0.0
    %3422 = vmatprep.subr.mxu0 0.0
    %3423 = vmatpush1.msra.mxu0 %v3381
    %3424 = vmatprep.subr.mxu0 0.0
    %3425 = vmatpush1.msra.mxu0 %v3379
    %3426 = vmatprep.subr.mxu0 0.0
    %3427 = vmatpush1.msra.mxu0 %v3377
    %3428 = vmatprep.subr.mxu0 0.0
    %3429 = vmatpush1.msra.mxu0 %v3375
    %3430 = vmatprep.subr.mxu0 0.0
    %3431 = vmatpush2.msra.mxu0 0.0
    %3432 = vmatprep.subr.mxu0 0.0
    %3433 = vmatpush2.msra.mxu0 0.0
    %3434 = vmatprep.subr.mxu0 0.0
    %3435 = vmatpush2.msra.mxu0 0.0
    %3436 = vmatprep.subr.mxu0 0.0
    %3437 = vmatpush2.msra.mxu0 0.0
    %3438 = vmatprep.subr.mxu0 0.0
    %3439 = vmatpush2.msra.mxu0 0.0
    %3440 = vmatprep.subr.mxu0 0.0
    %3441 = vmatpush2.msra.mxu0 0.0
    %3442 = vmatprep.subr.mxu0 0.0
    %3443 = vmatpush2.msra.mxu0 0.0
    %3444 = vmatprep.subr.mxu0 0.0
    %3445 = vmatpush2.msra.mxu0 0.0
    %3446 = vmatprep.subr.mxu0 0.0
    %3447 = vmatpush2.msra.mxu0 0.0
    %3448 = vmatprep.subr.mxu0 0.0
    %3449 = vmatpush2.msra.mxu0 0.0
    %3450 = vmatprep.subr.mxu0 0.0
    %3451 = vmatpush2.msra.mxu0 0.0
    %3452 = vmatprep.subr.mxu0 0.0
    %3453 = vmatpush2.msra.mxu0 0.0
    %3454 = vmatprep.subr.mxu0 0.0
    %3455 = vmatpush2.msra.mxu0 0.0
    %3456 = vmatprep.subr.mxu0 0.0
    %3457 = vmatpush2.msra.mxu0 0.0
    %3458 = vmatprep.subr.mxu0 0.0
    %3459 = vmatpush2.msra.mxu0 0.0
    %3460 = vmatprep.subr.mxu0 0.0
    %3461 = vmatpush2.msra.mxu0 0.0
    %3462 = vmatprep.mubr.f32.mxu0 0.0
    %3463 = vmatmul.mubr.f32.gmra.mxu0 %v3387
    %v3464 = vpop.f32.mrf.mxu0
    %v3465 = vadd.f32 0.0, %v3464
    %v3466 = vpop.f32.mrf.mxu0
    %3467 = vmatprep.mubr.f32.mxu0 0.0
    %3468 = vmatmul.mubr.f32.gmra.mxu0 %v3390
    %v3469 = vpop.f32.mrf.mxu0
    %v3470 = vadd.f32 0.0, %v3469
    %v3471 = vpop.f32.mrf.mxu0
    %3472 = vmatprep.mubr.f32.mxu0 0.0
    %3473 = vmatmul.mubr.f32.gmra.mxu0 %v3393
    %v3474 = vpop.f32.mrf.mxu0
    %v3475 = vadd.f32 0.0, %v3474
    %v3476 = vpop.f32.mrf.mxu0
    %3477 = vmatprep.mubr.f32.mxu0 0.0
    %3478 = vmatmul.mubr.f32.gmra.mxu0 %v3396
    %v3479 = vpop.f32.mrf.mxu0
    %v3480 = vadd.f32 0.0, %v3479
    %v3481 = vpop.f32.mrf.mxu0
    %3482 = vdwg.mxu0
    %3483 = vrot.lane.b32.xlu0 %v2586, 96
    %v3484 = vpop.permute.xlu0 %3483
    %3485 = vrot.lane.b32.xlu0 %v2589, 96
    %v3486 = vpop.permute.xlu0 %3485
    %3487 = vrot.lane.b32.xlu0 %v2594, 96
    %v3488 = vpop.permute.xlu0 %3487
    %3489 = vrot.lane.b32.xlu0 %v2597, 96
    %v3490 = vpop.permute.xlu0 %3489
    %v3496 = vsel %vm1059, %v3362, 0
    %v3499 = vsel %vm1059, %v3363, 0
    %v3502 = vsel %vm1059, %v3364, 0
    %v3505 = vsel %vm1059, %v3365, 0
    %3507 = vmatprep.subr.mxu0 0.0
    %3508 = vmatpush1.msra.mxu0 0.0
    %3509 = vmatprep.subr.mxu0 0.0
    %3510 = vmatpush1.msra.mxu0 0.0
    %3511 = vmatprep.subr.mxu0 0.0
    %3512 = vmatpush1.msra.mxu0 0.0
    %3513 = vmatprep.subr.mxu0 0.0
    %3514 = vmatpush1.msra.mxu0 0.0
    %3515 = vmatprep.subr.mxu0 0.0
    %3516 = vmatpush1.msra.mxu0 0.0
    %3517 = vmatprep.subr.mxu0 0.0
    %3518 = vmatpush1.msra.mxu0 0.0
    %3519 = vmatprep.subr.mxu0 0.0
    %3520 = vmatpush1.msra.mxu0 0.0
    %3521 = vmatprep.subr.mxu0 0.0
    %3522 = vmatpush1.msra.mxu0 0.0
    %3523 = vmatprep.subr.mxu0 0.0
    %3524 = vmatpush1.msra.mxu0 0.0
    %3525 = vmatprep.subr.mxu0 0.0
    %3526 = vmatpush1.msra.mxu0 0.0
    %3527 = vmatprep.subr.mxu0 0.0
    %3528 = vmatpush1.msra.mxu0 0.0
    %3529 = vmatprep.subr.mxu0 0.0
    %3530 = vmatpush1.msra.mxu0 0.0
    %3531 = vmatprep.subr.mxu0 0.0
    %3532 = vmatpush1.msra.mxu0 %v3490
    %3533 = vmatprep.subr.mxu0 0.0
    %3534 = vmatpush1.msra.mxu0 %v3488
    %3535 = vmatprep.subr.mxu0 0.0
    %3536 = vmatpush1.msra.mxu0 %v3486
    %3537 = vmatprep.subr.mxu0 0.0
    %3538 = vmatpush1.msra.mxu0 %v3484
    %3539 = vmatprep.subr.mxu0 0.0
    %3540 = vmatpush2.msra.mxu0 0.0
    %3541 = vmatprep.subr.mxu0 0.0
    %3542 = vmatpush2.msra.mxu0 0.0
    %3543 = vmatprep.subr.mxu0 0.0
    %3544 = vmatpush2.msra.mxu0 0.0
    %3545 = vmatprep.subr.mxu0 0.0
    %3546 = vmatpush2.msra.mxu0 0.0
    %3547 = vmatprep.subr.mxu0 0.0
    %3548 = vmatpush2.msra.mxu0 0.0
    %3549 = vmatprep.subr.mxu0 0.0
    %3550 = vmatpush2.msra.mxu0 0.0
    %3551 = vmatprep.subr.mxu0 0.0
    %3552 = vmatpush2.msra.mxu0 0.0
    %3553 = vmatprep.subr.mxu0 0.0
    %3554 = vmatpush2.msra.mxu0 0.0
    %3555 = vmatprep.subr.mxu0 0.0
    %3556 = vmatpush2.msra.mxu0 0.0
    %3557 = vmatprep.subr.mxu0 0.0
    %3558 = vmatpush2.msra.mxu0 0.0
    %3559 = vmatprep.subr.mxu0 0.0
    %3560 = vmatpush2.msra.mxu0 0.0
    %3561 = vmatprep.subr.mxu0 0.0
    %3562 = vmatpush2.msra.mxu0 0.0
    %3563 = vmatprep.subr.mxu0 0.0
    %3564 = vmatpush2.msra.mxu0 0.0
    %3565 = vmatprep.subr.mxu0 0.0
    %3566 = vmatpush2.msra.mxu0 0.0
    %3567 = vmatprep.subr.mxu0 0.0
    %3568 = vmatpush2.msra.mxu0 0.0
    %3569 = vmatprep.subr.mxu0 0.0
    %3570 = vmatpush2.msra.mxu0 0.0
    %3571 = vmatprep.mubr.f32.mxu0 0.0
    %3572 = vmatmul.mubr.f32.gmra.mxu0 %v3496
    %v3573 = vpop.f32.mrf.mxu0
    %v3574 = vadd.f32 0.0, %v3573
    %v3575 = vpop.f32.mrf.mxu0
    %3576 = vmatprep.mubr.f32.mxu0 0.0
    %3577 = vmatmul.mubr.f32.gmra.mxu0 %v3499
    %v3578 = vpop.f32.mrf.mxu0
    %v3579 = vadd.f32 0.0, %v3578
    %v3580 = vpop.f32.mrf.mxu0
    %3581 = vmatprep.mubr.f32.mxu0 0.0
    %3582 = vmatmul.mubr.f32.gmra.mxu0 %v3502
    %v3583 = vpop.f32.mrf.mxu0
    %v3584 = vadd.f32 0.0, %v3583
    %v3585 = vpop.f32.mrf.mxu0
    %3586 = vmatprep.mubr.f32.mxu0 0.0
    %3587 = vmatmul.mubr.f32.gmra.mxu0 %v3505
    %v3588 = vpop.f32.mrf.mxu0
    %v3589 = vadd.f32 0.0, %v3588
    %v3590 = vpop.f32.mrf.mxu0
    %3591 = vdwg.mxu0
    %3592 = vrot.lane.b32.xlu0 %v2659, 96
    %v3593 = vpop.permute.xlu0 %3592
    %3594 = vrot.lane.b32.xlu0 %v2662, 96
    %v3595 = vpop.permute.xlu0 %3594
    %3596 = vrot.lane.b32.xlu0 %v2667, 96
    %v3597 = vpop.permute.xlu0 %3596
    %3598 = vrot.lane.b32.xlu0 %v2670, 96
    %v3599 = vpop.permute.xlu0 %3598
    %v3605 = vsel %vm1059, %v3366, 0
    %v3608 = vsel %vm1059, %v3367, 0
    %v3611 = vsel %vm1059, %v3368, 0
    %v3614 = vsel %vm1059, %v3369, 0
    %3616 = vmatprep.subr.mxu0 0.0
    %3617 = vmatpush1.msra.mxu0 0.0
    %3618 = vmatprep.subr.mxu0 0.0
    %3619 = vmatpush1.msra.mxu0 0.0
    %3620 = vmatprep.subr.mxu0 0.0
    %3621 = vmatpush1.msra.mxu0 0.0
    %3622 = vmatprep.subr.mxu0 0.0
    %3623 = vmatpush1.msra.mxu0 0.0
    %3624 = vmatprep.subr.mxu0 0.0
    %3625 = vmatpush1.msra.mxu0 0.0
    %3626 = vmatprep.subr.mxu0 0.0
    %3627 = vmatpush1.msra.mxu0 0.0
    %3628 = vmatprep.subr.mxu0 0.0
    %3629 = vmatpush1.msra.mxu0 0.0
    %3630 = vmatprep.subr.mxu0 0.0
    %3631 = vmatpush1.msra.mxu0 0.0
    %3632 = vmatprep.subr.mxu0 0.0
    %3633 = vmatpush1.msra.mxu0 0.0
    %3634 = vmatprep.subr.mxu0 0.0
    %3635 = vmatpush1.msra.mxu0 0.0
    %3636 = vmatprep.subr.mxu0 0.0
    %3637 = vmatpush1.msra.mxu0 0.0
    %3638 = vmatprep.subr.mxu0 0.0
    %3639 = vmatpush1.msra.mxu0 0.0
    %3640 = vmatprep.subr.mxu0 0.0
    %3641 = vmatpush1.msra.mxu0 %v3599
    %3642 = vmatprep.subr.mxu0 0.0
    %3643 = vmatpush1.msra.mxu0 %v3597
    %3644 = vmatprep.subr.mxu0 0.0
    %3645 = vmatpush1.msra.mxu0 %v3595
    %3646 = vmatprep.subr.mxu0 0.0
    %3647 = vmatpush1.msra.mxu0 %v3593
    %3648 = vmatprep.subr.mxu0 0.0
    %3649 = vmatpush2.msra.mxu0 0.0
    %3650 = vmatprep.subr.mxu0 0.0
    %3651 = vmatpush2.msra.mxu0 0.0
    %3652 = vmatprep.subr.mxu0 0.0
    %3653 = vmatpush2.msra.mxu0 0.0
    %3654 = vmatprep.subr.mxu0 0.0
    %3655 = vmatpush2.msra.mxu0 0.0
    %3656 = vmatprep.subr.mxu0 0.0
    %3657 = vmatpush2.msra.mxu0 0.0
    %3658 = vmatprep.subr.mxu0 0.0
    %3659 = vmatpush2.msra.mxu0 0.0
    %3660 = vmatprep.subr.mxu0 0.0
    %3661 = vmatpush2.msra.mxu0 0.0
    %3662 = vmatprep.subr.mxu0 0.0
    %3663 = vmatpush2.msra.mxu0 0.0
    %3664 = vmatprep.subr.mxu0 0.0
    %3665 = vmatpush2.msra.mxu0 0.0
    %3666 = vmatprep.subr.mxu0 0.0
    %3667 = vmatpush2.msra.mxu0 0.0
    %3668 = vmatprep.subr.mxu0 0.0
    %3669 = vmatpush2.msra.mxu0 0.0
    %3670 = vmatprep.subr.mxu0 0.0
    %3671 = vmatpush2.msra.mxu0 0.0
    %3672 = vmatprep.subr.mxu0 0.0
    %3673 = vmatpush2.msra.mxu0 0.0
    %3674 = vmatprep.subr.mxu0 0.0
    %3675 = vmatpush2.msra.mxu0 0.0
    %3676 = vmatprep.subr.mxu0 0.0
    %3677 = vmatpush2.msra.mxu0 0.0
    %3678 = vmatprep.subr.mxu0 0.0
    %3679 = vmatpush2.msra.mxu0 0.0
    %3680 = vmatprep.mubr.f32.mxu0 0.0
    %3681 = vmatmul.mubr.f32.gmra.mxu0 %v3605
    %v3682 = vpop.f32.mrf.mxu0
    %v3683 = vadd.f32 0.0, %v3682
    %v3684 = vpop.f32.mrf.mxu0
    %3685 = vmatprep.mubr.f32.mxu0 0.0
    %3686 = vmatmul.mubr.f32.gmra.mxu0 %v3608
    %v3687 = vpop.f32.mrf.mxu0
    %v3688 = vadd.f32 0.0, %v3687
    %v3689 = vpop.f32.mrf.mxu0
    %3690 = vmatprep.mubr.f32.mxu0 0.0
    %3691 = vmatmul.mubr.f32.gmra.mxu0 %v3611
    %v3692 = vpop.f32.mrf.mxu0
    %v3693 = vadd.f32 0.0, %v3692
    %v3694 = vpop.f32.mrf.mxu0
    %3695 = vmatprep.mubr.f32.mxu0 0.0
    %3696 = vmatmul.mubr.f32.gmra.mxu0 %v3614
    %v3697 = vpop.f32.mrf.mxu0
    %v3698 = vadd.f32 0.0, %v3697
    %v3699 = vpop.f32.mrf.mxu0
    %3700 = vdwg.mxu0
    %3701 = vrot.lane.b32.xlu0 %v2732, 96
    %v3702 = vpop.permute.xlu0 %3701
    %3703 = vrot.lane.b32.xlu0 %v2735, 96
    %v3704 = vpop.permute.xlu0 %3703
    %3705 = vrot.lane.b32.xlu0 %v2740, 96
    %v3706 = vpop.permute.xlu0 %3705
    %3707 = vrot.lane.b32.xlu0 %v2743, 96
    %v3708 = vpop.permute.xlu0 %3707
    %v3714 = vsel %vm1059, %v3370, 0
    %v3717 = vsel %vm1059, %v3371, 0
    %v3720 = vsel %vm1059, %v3372, 0
    %v3723 = vsel %vm1059, %v3373, 0
    %3725 = vmatprep.subr.mxu0 0.0
    %3726 = vmatpush1.msra.mxu0 0.0
    %3727 = vmatprep.subr.mxu0 0.0
    %3728 = vmatpush1.msra.mxu0 0.0
    %3729 = vmatprep.subr.mxu0 0.0
    %3730 = vmatpush1.msra.mxu0 0.0
    %3731 = vmatprep.subr.mxu0 0.0
    %3732 = vmatpush1.msra.mxu0 0.0
    %3733 = vmatprep.subr.mxu0 0.0
    %3734 = vmatpush1.msra.mxu0 0.0
    %3735 = vmatprep.subr.mxu0 0.0
    %3736 = vmatpush1.msra.mxu0 0.0
    %3737 = vmatprep.subr.mxu0 0.0
    %3738 = vmatpush1.msra.mxu0 0.0
    %3739 = vmatprep.subr.mxu0 0.0
    %3740 = vmatpush1.msra.mxu0 0.0
    %3741 = vmatprep.subr.mxu0 0.0
    %3742 = vmatpush1.msra.mxu0 0.0
    %3743 = vmatprep.subr.mxu0 0.0
    %3744 = vmatpush1.msra.mxu0 0.0
    %3745 = vmatprep.subr.mxu0 0.0
    %3746 = vmatpush1.msra.mxu0 0.0
    %3747 = vmatprep.subr.mxu0 0.0
    %3748 = vmatpush1.msra.mxu0 0.0
    %3749 = vmatprep.subr.mxu0 0.0
    %3750 = vmatpush1.msra.mxu0 %v3708
    %3751 = vmatprep.subr.mxu0 0.0
    %3752 = vmatpush1.msra.mxu0 %v3706
    %3753 = vmatprep.subr.mxu0 0.0
    %3754 = vmatpush1.msra.mxu0 %v3704
    %3755 = vmatprep.subr.mxu0 0.0
    %3756 = vmatpush1.msra.mxu0 %v3702
    %3757 = vmatprep.subr.mxu0 0.0
    %3758 = vmatpush2.msra.mxu0 0.0
    %3759 = vmatprep.subr.mxu0 0.0
    %3760 = vmatpush2.msra.mxu0 0.0
    %3761 = vmatprep.subr.mxu0 0.0
    %3762 = vmatpush2.msra.mxu0 0.0
    %3763 = vmatprep.subr.mxu0 0.0
    %3764 = vmatpush2.msra.mxu0 0.0
    %3765 = vmatprep.subr.mxu0 0.0
    %3766 = vmatpush2.msra.mxu0 0.0
    %3767 = vmatprep.subr.mxu0 0.0
    %3768 = vmatpush2.msra.mxu0 0.0
    %3769 = vmatprep.subr.mxu0 0.0
    %3770 = vmatpush2.msra.mxu0 0.0
    %3771 = vmatprep.subr.mxu0 0.0
    %3772 = vmatpush2.msra.mxu0 0.0
    %3773 = vmatprep.subr.mxu0 0.0
    %3774 = vmatpush2.msra.mxu0 0.0
    %3775 = vmatprep.subr.mxu0 0.0
    %3776 = vmatpush2.msra.mxu0 0.0
    %3777 = vmatprep.subr.mxu0 0.0
    %3778 = vmatpush2.msra.mxu0 0.0
    %3779 = vmatprep.subr.mxu0 0.0
    %3780 = vmatpush2.msra.mxu0 0.0
    %3781 = vmatprep.subr.mxu0 0.0
    %3782 = vmatpush2.msra.mxu0 0.0
    %3783 = vmatprep.subr.mxu0 0.0
    %3784 = vmatpush2.msra.mxu0 0.0
    %3785 = vmatprep.subr.mxu0 0.0
    %3786 = vmatpush2.msra.mxu0 0.0
    %3787 = vmatprep.subr.mxu0 0.0
    %3788 = vmatpush2.msra.mxu0 0.0
    %3789 = vmatprep.mubr.f32.mxu0 0.0
    %3790 = vmatmul.mubr.f32.gmra.mxu0 %v3714
    %v3791 = vpop.f32.mrf.mxu0
    %v3792 = vadd.f32 0.0, %v3791
    %v3793 = vpop.f32.mrf.mxu0
    %3794 = vmatprep.mubr.f32.mxu0 0.0
    %3795 = vmatmul.mubr.f32.gmra.mxu0 %v3717
    %v3796 = vpop.f32.mrf.mxu0
    %v3797 = vadd.f32 0.0, %v3796
    %v3798 = vpop.f32.mrf.mxu0
    %3799 = vmatprep.mubr.f32.mxu0 0.0
    %3800 = vmatmul.mubr.f32.gmra.mxu0 %v3720
    %v3801 = vpop.f32.mrf.mxu0
    %v3802 = vadd.f32 0.0, %v3801
    %v3803 = vpop.f32.mrf.mxu0
    %3804 = vmatprep.mubr.f32.mxu0 0.0
    %3805 = vmatmul.mubr.f32.gmra.mxu0 %v3723
    %v3806 = vpop.f32.mrf.mxu0
    %v3807 = vadd.f32 0.0, %v3806
    %v3808 = vpop.f32.mrf.mxu0
    %3809 = vdwg.mxu0
    %v3810 = vpack.c.bf16 %v3470, %v3465
    %v3811 = vpack.c.bf16 %v3480, %v3475
    %v3812 = vpack.c.bf16 %v3579, %v3574
    %v3813 = vpack.c.bf16 %v3589, %v3584
    %v3814 = vpack.c.bf16 %v3688, %v3683
    %v3815 = vpack.c.bf16 %v3698, %v3693
    %v3816 = vpack.c.bf16 %v3797, %v3792
    %v3817 = vpack.c.bf16 %v3807, %v3802
    %s3818 = scalar_lea.vmem %s3, 32
    %v3819 = vld [vmem:[%s3818] sm:$0xf]
    %v3820 = vld [vmem:[%s3818 + $0x4] sm:$0xf]
    %v3821 = vld [vmem:[%s3818 + $0x8] sm:$0xf]
    %v3822 = vld [vmem:[%s3818 + $0xc] sm:$0xf]
    %v3823 = vld [vmem:[%s3818 + $0x10] sm:$0xf]
    %v3824 = vld [vmem:[%s3818 + $0x14] sm:$0xf]
    %v3825 = vld [vmem:[%s3818 + $0x18] sm:$0xf]
    %v3826 = vld [vmem:[%s3818 + $0x1c] sm:$0xf]
    %v3829 = vunpack.c.l.b16 %v3819
    %v3830 = vunpack.c.l.b16 %v3820
    %v3831 = vpack.c.b16 %v3830, %v3829
    %v3834 = vsel %vm618, %v3810, 0
    %v3837 = vsel %vm618, %v3811, 0
    %3839 = vmatprep.subr.bf16.mxu0 0
    %3840 = vmatpush1.bf16.msra.mxu0 0
    %3841 = vmatprep.subr.bf16.mxu0 0
    %3842 = vmatpush1.bf16.msra.mxu0 0
    %3843 = vmatprep.subr.bf16.mxu0 0
    %3844 = vmatpush1.bf16.msra.mxu0 0
    %3845 = vmatprep.subr.bf16.mxu0 0
    %3846 = vmatpush1.bf16.msra.mxu0 0
    %3847 = vmatprep.subr.bf16.mxu0 0
    %3848 = vmatpush1.bf16.msra.mxu0 0
    %3849 = vmatprep.subr.bf16.mxu0 0
    %3850 = vmatpush1.bf16.msra.mxu0 0
    %3851 = vmatprep.subr.bf16.mxu0 0
    %3852 = vmatpush1.bf16.msra.mxu0 0
    %3853 = vmatprep.subr.bf16.mxu0 0
    %3854 = vmatpush1.bf16.msra.mxu0 %v3831
    %3855 = vmatprep.subr.bf16.mxu0 0
    %3856 = vmatpush2.bf16.msra.mxu0 0
    %3857 = vmatprep.subr.bf16.mxu0 0
    %3858 = vmatpush2.bf16.msra.mxu0 0
    %3859 = vmatprep.subr.bf16.mxu0 0
    %3860 = vmatpush2.bf16.msra.mxu0 0
    %3861 = vmatprep.subr.bf16.mxu0 0
    %3862 = vmatpush2.bf16.msra.mxu0 0
    %3863 = vmatprep.subr.bf16.mxu0 0
    %3864 = vmatpush2.bf16.msra.mxu0 0
    %3865 = vmatprep.subr.bf16.mxu0 0
    %3866 = vmatpush2.bf16.msra.mxu0 0
    %3867 = vmatprep.subr.bf16.mxu0 0
    %3868 = vmatpush2.bf16.msra.mxu0 0
    %3869 = vmatprep.subr.bf16.mxu0 0
    %3870 = vmatpush2.bf16.msra.mxu0 0
    %3871 = vmatprep.mubr.bf16.mxu0 0
    %3872 = vmatmul.mubr.bf16.gmra.mxu0 %v3834
    %v3873 = vpop.f32.mrf.mxu0
    %v3874 = vadd.f32 0.0, %v3873
    %v3875 = vpop.f32.mrf.mxu0
    %v3876 = vpop.f32.mrf.mxu0
    %v3877 = vadd.f32 0.0, %v3876
    %v3878 = vpop.f32.mrf.mxu0
    %3879 = vmatprep.mubr.bf16.mxu0 0
    %3880 = vmatmul.mubr.bf16.gmra.mxu0 %v3837
    %v3881 = vpop.f32.mrf.mxu0
    %v3882 = vadd.f32 0.0, %v3881
    %v3883 = vpop.f32.mrf.mxu0
    %v3884 = vpop.f32.mrf.mxu0
    %v3885 = vadd.f32 0.0, %v3884
    %v3886 = vpop.f32.mrf.mxu0
    %3887 = vdwg.mxu0
    %v3890 = vunpack.c.l.b16 %v3821
    %v3891 = vunpack.c.l.b16 %v3822
    %v3892 = vpack.c.b16 %v3891, %v3890
    %v3895 = vsel %vm618, %v3812, 0
    %v3898 = vsel %vm618, %v3813, 0
    %3900 = vmatprep.subr.bf16.mxu0 0
    %3901 = vmatpush1.bf16.msra.mxu0 0
    %3902 = vmatprep.subr.bf16.mxu0 0
    %3903 = vmatpush1.bf16.msra.mxu0 0
    %3904 = vmatprep.subr.bf16.mxu0 0
    %3905 = vmatpush1.bf16.msra.mxu0 0
    %3906 = vmatprep.subr.bf16.mxu0 0
    %3907 = vmatpush1.bf16.msra.mxu0 0
    %3908 = vmatprep.subr.bf16.mxu0 0
    %3909 = vmatpush1.bf16.msra.mxu0 0
    %3910 = vmatprep.subr.bf16.mxu0 0
    %3911 = vmatpush1.bf16.msra.mxu0 0
    %3912 = vmatprep.subr.bf16.mxu0 0
    %3913 = vmatpush1.bf16.msra.mxu0 0
    %3914 = vmatprep.subr.bf16.mxu0 0
    %3915 = vmatpush1.bf16.msra.mxu0 %v3892
    %3916 = vmatprep.subr.bf16.mxu0 0
    %3917 = vmatpush2.bf16.msra.mxu0 0
    %3918 = vmatprep.subr.bf16.mxu0 0
    %3919 = vmatpush2.bf16.msra.mxu0 0
    %3920 = vmatprep.subr.bf16.mxu0 0
    %3921 = vmatpush2.bf16.msra.mxu0 0
    %3922 = vmatprep.subr.bf16.mxu0 0
    %3923 = vmatpush2.bf16.msra.mxu0 0
    %3924 = vmatprep.subr.bf16.mxu0 0
    %3925 = vmatpush2.bf16.msra.mxu0 0
    %3926 = vmatprep.subr.bf16.mxu0 0
    %3927 = vmatpush2.bf16.msra.mxu0 0
    %3928 = vmatprep.subr.bf16.mxu0 0
    %3929 = vmatpush2.bf16.msra.mxu0 0
    %3930 = vmatprep.subr.bf16.mxu0 0
    %3931 = vmatpush2.bf16.msra.mxu0 0
    %3932 = vmatprep.mubr.bf16.mxu0 0
    %3933 = vmatmul.mubr.bf16.gmra.mxu0 %v3895
    %v3934 = vpop.f32.mrf.mxu0
    %v3935 = vadd.f32 0.0, %v3934
    %v3936 = vpop.f32.mrf.mxu0
    %v3937 = vpop.f32.mrf.mxu0
    %v3938 = vadd.f32 0.0, %v3937
    %v3939 = vpop.f32.mrf.mxu0
    %3940 = vmatprep.mubr.bf16.mxu0 0
    %3941 = vmatmul.mubr.bf16.gmra.mxu0 %v3898
    %v3942 = vpop.f32.mrf.mxu0
    %v3943 = vadd.f32 0.0, %v3942
    %v3944 = vpop.f32.mrf.mxu0
    %v3945 = vpop.f32.mrf.mxu0
    %v3946 = vadd.f32 0.0, %v3945
    %v3947 = vpop.f32.mrf.mxu0
    %3948 = vdwg.mxu0
    %v3951 = vunpack.c.l.b16 %v3823
    %v3952 = vunpack.c.l.b16 %v3824
    %v3953 = vpack.c.b16 %v3952, %v3951
    %v3956 = vsel %vm618, %v3814, 0
    %v3959 = vsel %vm618, %v3815, 0
    %3961 = vmatprep.subr.bf16.mxu0 0
    %3962 = vmatpush1.bf16.msra.mxu0 0
    %3963 = vmatprep.subr.bf16.mxu0 0
    %3964 = vmatpush1.bf16.msra.mxu0 0
    %3965 = vmatprep.subr.bf16.mxu0 0
    %3966 = vmatpush1.bf16.msra.mxu0 0
    %3967 = vmatprep.subr.bf16.mxu0 0
    %3968 = vmatpush1.bf16.msra.mxu0 0
    %3969 = vmatprep.subr.bf16.mxu0 0
    %3970 = vmatpush1.bf16.msra.mxu0 0
    %3971 = vmatprep.subr.bf16.mxu0 0
    %3972 = vmatpush1.bf16.msra.mxu0 0
    %3973 = vmatprep.subr.bf16.mxu0 0
    %3974 = vmatpush1.bf16.msra.mxu0 0
    %3975 = vmatprep.subr.bf16.mxu0 0
    %3976 = vmatpush1.bf16.msra.mxu0 %v3953
    %3977 = vmatprep.subr.bf16.mxu0 0
    %3978 = vmatpush2.bf16.msra.mxu0 0
    %3979 = vmatprep.subr.bf16.mxu0 0
    %3980 = vmatpush2.bf16.msra.mxu0 0
    %3981 = vmatprep.subr.bf16.mxu0 0
    %3982 = vmatpush2.bf16.msra.mxu0 0
    %3983 = vmatprep.subr.bf16.mxu0 0
    %3984 = vmatpush2.bf16.msra.mxu0 0
    %3985 = vmatprep.subr.bf16.mxu0 0
    %3986 = vmatpush2.bf16.msra.mxu0 0
    %3987 = vmatprep.subr.bf16.mxu0 0
    %3988 = vmatpush2.bf16.msra.mxu0 0
    %3989 = vmatprep.subr.bf16.mxu0 0
    %3990 = vmatpush2.bf16.msra.mxu0 0
    %3991 = vmatprep.subr.bf16.mxu0 0
    %3992 = vmatpush2.bf16.msra.mxu0 0
    %3993 = vmatprep.mubr.bf16.mxu0 0
    %3994 = vmatmul.mubr.bf16.gmra.mxu0 %v3956
    %v3995 = vpop.f32.mrf.mxu0
    %v3996 = vadd.f32 0.0, %v3995
    %v3997 = vpop.f32.mrf.mxu0
    %v3998 = vpop.f32.mrf.mxu0
    %v3999 = vadd.f32 0.0, %v3998
    %v4000 = vpop.f32.mrf.mxu0
    %4001 = vmatprep.mubr.bf16.mxu0 0
    %4002 = vmatmul.mubr.bf16.gmra.mxu0 %v3959
    %v4003 = vpop.f32.mrf.mxu0
    %v4004 = vadd.f32 0.0, %v4003
    %v4005 = vpop.f32.mrf.mxu0
    %v4006 = vpop.f32.mrf.mxu0
    %v4007 = vadd.f32 0.0, %v4006
    %v4008 = vpop.f32.mrf.mxu0
    %4009 = vdwg.mxu0
    %v4012 = vunpack.c.l.b16 %v3825
    %v4013 = vunpack.c.l.b16 %v3826
    %v4014 = vpack.c.b16 %v4013, %v4012
    %v4017 = vsel %vm618, %v3816, 0
    %v4020 = vsel %vm618, %v3817, 0
    %4022 = vmatprep.subr.bf16.mxu0 0
    %4023 = vmatpush1.bf16.msra.mxu0 0
    %4024 = vmatprep.subr.bf16.mxu0 0
    %4025 = vmatpush1.bf16.msra.mxu0 0
    %4026 = vmatprep.subr.bf16.mxu0 0
    %4027 = vmatpush1.bf16.msra.mxu0 0
    %4028 = vmatprep.subr.bf16.mxu0 0
    %4029 = vmatpush1.bf16.msra.mxu0 0
    %4030 = vmatprep.subr.bf16.mxu0 0
    %4031 = vmatpush1.bf16.msra.mxu0 0
    %4032 = vmatprep.subr.bf16.mxu0 0
    %4033 = vmatpush1.bf16.msra.mxu0 0
    %4034 = vmatprep.subr.bf16.mxu0 0
    %4035 = vmatpush1.bf16.msra.mxu0 0
    %4036 = vmatprep.subr.bf16.mxu0 0
    %4037 = vmatpush1.bf16.msra.mxu0 %v4014
    %4038 = vmatprep.subr.bf16.mxu0 0
    %4039 = vmatpush2.bf16.msra.mxu0 0
    %4040 = vmatprep.subr.bf16.mxu0 0
    %4041 = vmatpush2.bf16.msra.mxu0 0
    %4042 = vmatprep.subr.bf16.mxu0 0
    %4043 = vmatpush2.bf16.msra.mxu0 0
    %4044 = vmatprep.subr.bf16.mxu0 0
    %4045 = vmatpush2.bf16.msra.mxu0 0
    %4046 = vmatprep.subr.bf16.mxu0 0
    %4047 = vmatpush2.bf16.msra.mxu0 0
    %4048 = vmatprep.subr.bf16.mxu0 0
    %4049 = vmatpush2.bf16.msra.mxu0 0
    %4050 = vmatprep.subr.bf16.mxu0 0
    %4051 = vmatpush2.bf16.msra.mxu0 0
    %4052 = vmatprep.subr.bf16.mxu0 0
    %4053 = vmatpush2.bf16.msra.mxu0 0
    %4054 = vmatprep.mubr.bf16.mxu0 0
    %4055 = vmatmul.mubr.bf16.gmra.mxu0 %v4017
    %v4056 = vpop.f32.mrf.mxu0
    %v4057 = vadd.f32 0.0, %v4056
    %v4058 = vpop.f32.mrf.mxu0
    %v4059 = vpop.f32.mrf.mxu0
    %v4060 = vadd.f32 0.0, %v4059
    %v4061 = vpop.f32.mrf.mxu0
    %4062 = vmatprep.mubr.bf16.mxu0 0
    %4063 = vmatmul.mubr.bf16.gmra.mxu0 %v4020
    %v4064 = vpop.f32.mrf.mxu0
    %v4065 = vadd.f32 0.0, %v4064
    %v4066 = vpop.f32.mrf.mxu0
    %v4067 = vpop.f32.mrf.mxu0
    %v4068 = vadd.f32 0.0, %v4067
    %v4069 = vpop.f32.mrf.mxu0
    %4070 = vdwg.mxu0
    %v4071 = vsel %vm212, %v3874, 0.0
    %v4072 = vsel %vm212, %v3935, 0.0
    %v4073 = vadd.f32 %v4071, %v4072
    %v4074 = vsel %vm212, %v3996, 0.0
    %v4075 = vadd.f32 %v4073, %v4074
    %v4076 = vsel %vm212, %v4057, 0.0
    %v4077 = vadd.f32 %v4075, %v4076
    %v4078 = vsel %vm212, %v3877, 0.0
    %v4079 = vsel %vm212, %v3938, 0.0
    %v4080 = vadd.f32 %v4078, %v4079
    %v4081 = vsel %vm212, %v3999, 0.0
    %v4082 = vadd.f32 %v4080, %v4081
    %v4083 = vsel %vm212, %v4060, 0.0
    %v4084 = vadd.f32 %v4082, %v4083
    %v4085 = vsel %vm212, %v3882, 0.0
    %v4086 = vsel %vm212, %v3943, 0.0
    %v4087 = vadd.f32 %v4085, %v4086
    %v4088 = vsel %vm212, %v4004, 0.0
    %v4089 = vadd.f32 %v4087, %v4088
    %v4090 = vsel %vm212, %v4065, 0.0
    %v4091 = vadd.f32 %v4089, %v4090
    %v4092 = vsel %vm212, %v3885, 0.0
    %v4093 = vsel %vm212, %v3946, 0.0
    %v4094 = vadd.f32 %v4092, %v4093
    %v4095 = vsel %vm212, %v4007, 0.0
    %v4096 = vadd.f32 %v4094, %v4095
    %v4097 = vsel %vm212, %v4068, 0.0
    %v4098 = vadd.f32 %v4096, %v4097
    %v4099 = vadd.f32 %v2341, %v4077
    %v4100 = vadd.f32 %v2342, %v4084
    %v4101 = vadd.f32 %v2343, %v4091
    %v4102 = vadd.f32 %v2344, %v4098
    %v4103 = vadd.f32 %v4099, %v2347
    %v4104 = vadd.f32 %v4100, %v2347
    %v4105 = vadd.f32 %v4101, %v2347
    %v4106 = vadd.f32 %v4102, %v2347
    %v4107 = vsel %vm212, %v4103, 0.0
    %4108 = vadd.xlane.f32.xlu0 %v4107
    %v4109 = vpop.xlane.xlu0 %4108
    %v4110 = vsel %vm212, %v4104, 0.0
    %4111 = vadd.xlane.f32.xlu0 %v4110
    %v4112 = vpop.xlane.xlu0 %4111
    %v4113 = vsel %vm212, %v4105, 0.0
    %4114 = vadd.xlane.f32.xlu0 %v4113
    %v4115 = vpop.xlane.xlu0 %4114
    %v4116 = vsel %vm212, %v4106, 0.0
    %4117 = vadd.xlane.f32.xlu0 %v4116
    %v4118 = vpop.xlane.xlu0 %4117
    %v4119 = vmul.f32 %v4109, %v225
    %v4120 = vmul.f32 %v4112, %v225
    %v4121 = vmul.f32 %v4115, %v225
    %v4122 = vmul.f32 %v4118, %v225
    %v4123 = vsub.f32 %v4103, %v4119
    %v4124 = vsub.f32 %v4104, %v4120
    %v4125 = vsub.f32 %v4105, %v4121
    %v4126 = vsub.f32 %v4106, %v4122
    %v4127 = vmul.f32 %v4123, %v4123
    %v4128 = vmul.f32 %v4124, %v4124
    %v4129 = vmul.f32 %v4125, %v4125
    %v4130 = vmul.f32 %v4126, %v4126
    %v4131 = vsel %vm212, %v4127, 0.0
    %4132 = vadd.xlane.f32.xlu0 %v4131
    %v4133 = vpop.xlane.xlu0 %4132
    %v4134 = vsel %vm212, %v4128, 0.0
    %4135 = vadd.xlane.f32.xlu0 %v4134
    %v4136 = vpop.xlane.xlu0 %4135
    %v4137 = vsel %vm212, %v4129, 0.0
    %4138 = vadd.xlane.f32.xlu0 %v4137
    %v4139 = vpop.xlane.xlu0 %4138
    %v4140 = vsel %vm212, %v4130, 0.0
    %4141 = vadd.xlane.f32.xlu0 %v4140
    %v4142 = vpop.xlane.xlu0 %4141
    %v4143 = vmul.f32 %v4133, %v225
    %v4144 = vmul.f32 %v4136, %v225
    %v4145 = vmul.f32 %v4139, %v225
    %v4146 = vmul.f32 %v4142, %v225
    %v4147 = vadd.f32 %v4143, 1e-05
    %v4148 = vadd.f32 %v4144, 1e-05
    %v4149 = vadd.f32 %v4145, 1e-05
    %v4150 = vadd.f32 %v4146, 1e-05
    %v4151 = vrsqrt.pop %v4147
    %v4152 = vrsqrt.pop %v4148
    %v4153 = vrsqrt.pop %v4149
    %v4154 = vrsqrt.pop %v4150
    %v4155 = vmul.f32 %v4123, %v4151
    %v4156 = vmul.f32 %v4124, %v4152
    %v4157 = vmul.f32 %v4125, %v4153
    %v4158 = vmul.f32 %v4126, %v4154
    %v4159 = vmul.f32 %v4155, %v2348
    %v4160 = vmul.f32 %v4156, %v2348
    %v4161 = vmul.f32 %v4157, %v2348
    %v4162 = vmul.f32 %v4158, %v2348
    %v4163 = vadd.f32 %v4159, %v2349
    %v4164 = vadd.f32 %v4160, %v2349
    %v4165 = vadd.f32 %v4161, %v2349
    %v4166 = vadd.f32 %v4162, %v2349
    %v4167 = vpack.c.bf16 %v4164, %v4163
    %v4168 = vpack.c.bf16 %v4166, %v4165
    %s4169 = scalar_lea.vmem %s4, 64
    %v4170 = vld [vmem:[%s4169] sm:$0xff]
    %v4171 = vld [vmem:[%s4169 + $0x8] sm:$0xff]
    %v4172 = vld [vmem:[%s4169 + $0x10] sm:$0xff]
    %v4173 = vld [vmem:[%s4169 + $0x18] sm:$0xff]
    %v4174 = vld [vmem:[%s4169 + $0x20] sm:$0xff]
    %v4175 = vld [vmem:[%s4169 + $0x28] sm:$0xff]
    %v4176 = vld [vmem:[%s4169 + $0x30] sm:$0xff]
    %v4177 = vld [vmem:[%s4169 + $0x38] sm:$0xff]
    %v4179 = vlaneseq
    %v4180 = vshrl.u32 %v4179, 7
    %v4181 = vsub.s32 0, %v4180
    %v4182 = vrot.slane %v2351, %v4181
    %v4183 = vlaneseq
    %v4184 = vshrl.u32 %v4183, 7
    %v4185 = vsub.s32 1, %v4184
    %v4186 = vrot.slane %v2351, %v4185
    %v4197 = vunpack.c.l.b16 %v4170
    %v4198 = vunpack.c.h.b16 %v4170
    %v4199 = vunpack.c.l.b16 %v4171
    %v4200 = vunpack.c.h.b16 %v4171
    %v4201 = vunpack.c.l.b16 %v4172
    %v4202 = vunpack.c.h.b16 %v4172
    %v4203 = vunpack.c.l.b16 %v4173
    %v4204 = vunpack.c.h.b16 %v4173
    %v4205 = vunpack.c.l.b16 %v4174
    %v4206 = vunpack.c.h.b16 %v4174
    %v4207 = vunpack.c.l.b16 %v4175
    %v4208 = vunpack.c.h.b16 %v4175
    %v4209 = vunpack.c.l.b16 %v4176
    %v4210 = vunpack.c.h.b16 %v4176
    %v4211 = vunpack.c.l.b16 %v4177
    %v4212 = vunpack.c.h.b16 %v4177
    %v4213 = vpack.c.b16 %v4199, %v4197
    %v4214 = vpack.c.b16 %v4200, %v4198
    %v4215 = vpack.c.b16 %v4203, %v4201
    %v4216 = vpack.c.b16 %v4204, %v4202
    %v4217 = vpack.c.b16 %v4207, %v4205
    %v4218 = vpack.c.b16 %v4208, %v4206
    %v4219 = vpack.c.b16 %v4211, %v4209
    %v4220 = vpack.c.b16 %v4212, %v4210
    %v4230 = vsel %vm212, %v4167, 0
    %v4233 = vsel %vm212, %v4168, 0
    %4235 = vmatprep.subr.bf16.mxu0 0
    %4236 = vmatpush1.bf16.msra.mxu0 0
    %4237 = vmatprep.subr.bf16.mxu0 0
    %4238 = vmatpush1.bf16.msra.mxu0 0
    %4239 = vmatprep.subr.bf16.mxu0 0
    %4240 = vmatpush1.bf16.msra.mxu0 0
    %4241 = vmatprep.subr.bf16.mxu0 0
    %4242 = vmatpush1.bf16.msra.mxu0 0
    %4243 = vmatprep.subr.bf16.mxu0 %v4220
    %4244 = vmatpush1.bf16.msra.mxu0 %v4219
    %4245 = vmatprep.subr.bf16.mxu0 %v4218
    %4246 = vmatpush1.bf16.msra.mxu0 %v4217
    %4247 = vmatprep.subr.bf16.mxu0 %v4216
    %4248 = vmatpush1.bf16.msra.mxu0 %v4215
    %4249 = vmatprep.subr.bf16.mxu0 %v4214
    %4250 = vmatpush1.bf16.msra.mxu0 %v4213
    %4251 = vmatprep.subr.bf16.mxu0 0
    %4252 = vmatpush2.bf16.msra.mxu0 0
    %4253 = vmatprep.subr.bf16.mxu0 0
    %4254 = vmatpush2.bf16.msra.mxu0 0
    %4255 = vmatprep.subr.bf16.mxu0 0
    %4256 = vmatpush2.bf16.msra.mxu0 0
    %4257 = vmatprep.subr.bf16.mxu0 0
    %4258 = vmatpush2.bf16.msra.mxu0 0
    %4259 = vmatprep.subr.bf16.mxu0 0
    %4260 = vmatpush2.bf16.msra.mxu0 0
    %4261 = vmatprep.subr.bf16.mxu0 0
    %4262 = vmatpush2.bf16.msra.mxu0 0
    %4263 = vmatprep.subr.bf16.mxu0 0
    %4264 = vmatpush2.bf16.msra.mxu0 0
    %4265 = vmatprep.subr.bf16.mxu0 0
    %4266 = vmatpush2.bf16.msra.mxu0 0
    %4267 = vmatprep.mubr.bf16.mxu0 0
    %4268 = vmatmul.mubr.bf16.gmra.mxu0 %v4230
    %v4269 = vpop.f32.mrf.mxu0
    %v4270 = vadd.f32 %v4182, %v4269
    %v4271 = vpop.f32.mrf.mxu0
    %v4272 = vadd.f32 %v4186, %v4271
    %v4273 = vpop.f32.mrf.mxu0
    %v4274 = vadd.f32 %v4182, %v4273
    %v4275 = vpop.f32.mrf.mxu0
    %v4276 = vadd.f32 %v4186, %v4275
    %4277 = vmatprep.mubr.bf16.mxu0 0
    %4278 = vmatmul.mubr.bf16.gmra.mxu0 %v4233
    %v4279 = vpop.f32.mrf.mxu0
    %v4280 = vadd.f32 %v4182, %v4279
    %v4281 = vpop.f32.mrf.mxu0
    %v4282 = vadd.f32 %v4186, %v4281
    %v4283 = vpop.f32.mrf.mxu0
    %v4284 = vadd.f32 %v4182, %v4283
    %v4285 = vpop.f32.mrf.mxu0
    %v4286 = vadd.f32 %v4186, %v4285
    %4287 = vdwg.mxu0
    %v4288 = vmax.f32 %v4270, 0.0
    %v4289 = vmax.f32 %v4272, 0.0
    %v4290 = vmax.f32 %v4274, 0.0
    %v4291 = vmax.f32 %v4276, 0.0
    %v4292 = vmax.f32 %v4280, 0.0
    %v4293 = vmax.f32 %v4282, 0.0
    %v4294 = vmax.f32 %v4284, 0.0
    %v4295 = vmax.f32 %v4286, 0.0
    %v4296 = vpack.c.bf16 %v4290, %v4288
    %v4297 = vpack.c.bf16 %v4291, %v4289
    %v4298 = vpack.c.bf16 %v4294, %v4292
    %v4299 = vpack.c.bf16 %v4295, %v4293
    %s4300 = scalar_lea.vmem %s5, 128
    %v4301 = vld [vmem:[%s4300] sm:$0xf]
    %v4302 = vld [vmem:[%s4300 + $0x4] sm:$0xf]
    %v4303 = vld [vmem:[%s4300 + $0x8] sm:$0xf]
    %v4304 = vld [vmem:[%s4300 + $0xc] sm:$0xf]
    %v4305 = vld [vmem:[%s4300 + $0x10] sm:$0xf]
    %v4306 = vld [vmem:[%s4300 + $0x14] sm:$0xf]
    %v4307 = vld [vmem:[%s4300 + $0x18] sm:$0xf]
    %v4308 = vld [vmem:[%s4300 + $0x1c] sm:$0xf]
    %v4309 = vld [vmem:[%s4300 + $0x20] sm:$0xf]
    %v4310 = vld [vmem:[%s4300 + $0x24] sm:$0xf]
    %v4311 = vld [vmem:[%s4300 + $0x28] sm:$0xf]
    %v4312 = vld [vmem:[%s4300 + $0x2c] sm:$0xf]
    %v4313 = vld [vmem:[%s4300 + $0x30] sm:$0xf]
    %v4314 = vld [vmem:[%s4300 + $0x34] sm:$0xf]
    %v4315 = vld [vmem:[%s4300 + $0x38] sm:$0xf]
    %v4316 = vld [vmem:[%s4300 + $0x3c] sm:$0xf]
    %v4317 = vld [vmem:[%s4300 + $0x40] sm:$0xf]
    %v4318 = vld [vmem:[%s4300 + $0x44] sm:$0xf]
    %v4319 = vld [vmem:[%s4300 + $0x48] sm:$0xf]
    %v4320 = vld [vmem:[%s4300 + $0x4c] sm:$0xf]
    %v4321 = vld [vmem:[%s4300 + $0x50] sm:$0xf]
    %v4322 = vld [vmem:[%s4300 + $0x54] sm:$0xf]
    %v4323 = vld [vmem:[%s4300 + $0x58] sm:$0xf]
    %v4324 = vld [vmem:[%s4300 + $0x5c] sm:$0xf]
    %v4325 = vld [vmem:[%s4300 + $0x60] sm:$0xf]
    %v4326 = vld [vmem:[%s4300 + $0x64] sm:$0xf]
    %v4327 = vld [vmem:[%s4300 + $0x68] sm:$0xf]
    %v4328 = vld [vmem:[%s4300 + $0x6c] sm:$0xf]
    %v4329 = vld [vmem:[%s4300 + $0x70] sm:$0xf]
    %v4330 = vld [vmem:[%s4300 + $0x74] sm:$0xf]
    %v4331 = vld [vmem:[%s4300 + $0x78] sm:$0xf]
    %v4332 = vld [vmem:[%s4300 + $0x7c] sm:$0xf]
    %v4365 = vunpack.c.l.b16 %v4301
    %v4366 = vunpack.c.l.b16 %v4302
    %v4367 = vunpack.c.l.b16 %v4303
    %v4368 = vunpack.c.l.b16 %v4304
    %v4369 = vunpack.c.l.b16 %v4305
    %v4370 = vunpack.c.l.b16 %v4306
    %v4371 = vunpack.c.l.b16 %v4307
    %v4372 = vunpack.c.l.b16 %v4308
    %v4373 = vunpack.c.l.b16 %v4309
    %v4374 = vunpack.c.l.b16 %v4310
    %v4375 = vunpack.c.l.b16 %v4311
    %v4376 = vunpack.c.l.b16 %v4312
    %v4377 = vunpack.c.l.b16 %v4313
    %v4378 = vunpack.c.l.b16 %v4314
    %v4379 = vunpack.c.l.b16 %v4315
    %v4380 = vunpack.c.l.b16 %v4316
    %v4381 = vunpack.c.l.b16 %v4317
    %v4382 = vunpack.c.l.b16 %v4318
    %v4383 = vunpack.c.l.b16 %v4319
    %v4384 = vunpack.c.l.b16 %v4320
    %v4385 = vunpack.c.l.b16 %v4321
    %v4386 = vunpack.c.l.b16 %v4322
    %v4387 = vunpack.c.l.b16 %v4323
    %v4388 = vunpack.c.l.b16 %v4324
    %v4389 = vunpack.c.l.b16 %v4325
    %v4390 = vunpack.c.l.b16 %v4326
    %v4391 = vunpack.c.l.b16 %v4327
    %v4392 = vunpack.c.l.b16 %v4328
    %v4393 = vunpack.c.l.b16 %v4329
    %v4394 = vunpack.c.l.b16 %v4330
    %v4395 = vunpack.c.l.b16 %v4331
    %v4396 = vunpack.c.l.b16 %v4332
    %v4397 = vpack.c.b16 %v4366, %v4365
    %v4398 = vpack.c.b16 %v4368, %v4367
    %v4399 = vpack.c.b16 %v4370, %v4369
    %v4400 = vpack.c.b16 %v4372, %v4371
    %v4401 = vpack.c.b16 %v4374, %v4373
    %v4402 = vpack.c.b16 %v4376, %v4375
    %v4403 = vpack.c.b16 %v4378, %v4377
    %v4404 = vpack.c.b16 %v4380, %v4379
    %v4405 = vpack.c.b16 %v4382, %v4381
    %v4406 = vpack.c.b16 %v4384, %v4383
    %v4407 = vpack.c.b16 %v4386, %v4385
    %v4408 = vpack.c.b16 %v4388, %v4387
    %v4409 = vpack.c.b16 %v4390, %v4389
    %v4410 = vpack.c.b16 %v4392, %v4391
    %v4411 = vpack.c.b16 %v4394, %v4393
    %v4412 = vpack.c.b16 %v4396, %v4395
    %4429 = vmatprep.subr.bf16.mxu0 0
    %4430 = vmatpush1.bf16.msra.mxu0 %v4404
    %4431 = vmatprep.subr.bf16.mxu0 0
    %4432 = vmatpush1.bf16.msra.mxu0 %v4403
    %4433 = vmatprep.subr.bf16.mxu0 0
    %4434 = vmatpush1.bf16.msra.mxu0 %v4402
    %4435 = vmatprep.subr.bf16.mxu0 0
    %4436 = vmatpush1.bf16.msra.mxu0 %v4401
    %4437 = vmatprep.subr.bf16.mxu0 0
    %4438 = vmatpush1.bf16.msra.mxu0 %v4400
    %4439 = vmatprep.subr.bf16.mxu0 0
    %4440 = vmatpush1.bf16.msra.mxu0 %v4399
    %4441 = vmatprep.subr.bf16.mxu0 0
    %4442 = vmatpush1.bf16.msra.mxu0 %v4398
    %4443 = vmatprep.subr.bf16.mxu0 0
    %4444 = vmatpush1.bf16.msra.mxu0 %v4397
    %4445 = vmatprep.subr.bf16.mxu0 0
    %4446 = vmatpush2.bf16.msra.mxu0 %v4412
    %4447 = vmatprep.subr.bf16.mxu0 0
    %4448 = vmatpush2.bf16.msra.mxu0 %v4411
    %4449 = vmatprep.subr.bf16.mxu0 0
    %4450 = vmatpush2.bf16.msra.mxu0 %v4410
    %4451 = vmatprep.subr.bf16.mxu0 0
    %4452 = vmatpush2.bf16.msra.mxu0 %v4409
    %4453 = vmatprep.subr.bf16.mxu0 0
    %4454 = vmatpush2.bf16.msra.mxu0 %v4408
    %4455 = vmatprep.subr.bf16.mxu0 0
    %4456 = vmatpush2.bf16.msra.mxu0 %v4407
    %4457 = vmatprep.subr.bf16.mxu0 0
    %4458 = vmatpush2.bf16.msra.mxu0 %v4406
    %4459 = vmatprep.subr.bf16.mxu0 0
    %4460 = vmatpush2.bf16.msra.mxu0 %v4405
    %4461 = vmatprep.mubr.bf16.mxu0 %v4297
    %4462 = vmatmul.mubr.bf16.gmra.mxu0 %v4296
    %v4463 = vpop.f32.mrf.mxu0
    %v4464 = vadd.f32 0.0, %v4463
    %v4465 = vpop.f32.mrf.mxu0
    %v4466 = vpop.f32.mrf.mxu0
    %v4467 = vadd.f32 0.0, %v4466
    %v4468 = vpop.f32.mrf.mxu0
    %4469 = vmatprep.mubr.bf16.mxu0 %v4299
    %4470 = vmatmul.mubr.bf16.gmra.mxu0 %v4298
    %v4471 = vpop.f32.mrf.mxu0
    %v4472 = vadd.f32 0.0, %v4471
    %v4473 = vpop.f32.mrf.mxu0
    %v4474 = vpop.f32.mrf.mxu0
    %v4475 = vadd.f32 0.0, %v4474
    %v4476 = vpop.f32.mrf.mxu0
    %4477 = vdwg.mxu0
    %v4478 = vadd.f32 %v4103, %v4464
    %v4479 = vadd.f32 %v4104, %v4467
    %v4480 = vadd.f32 %v4105, %v4472
    %v4481 = vadd.f32 %v4106, %v4475
    %v4482 = vadd.f32 %v4478, %v2352
    %v4483 = vadd.f32 %v4479, %v2352
    %v4484 = vadd.f32 %v4480, %v2352
    %v4485 = vadd.f32 %v4481, %v2352
    %v4486 = vld [vmem:[%s7 + $0x16] ss:$0 sm:$0xff]
    %v4487 = vld [vmem:[%s7 + $0x17] ss:$0 sm:$0xff]
    %v4488 = vsel %vm212, %v4482, 0.0
    %4489 = vadd.xlane.f32.xlu0 %v4488
    %v4490 = vpop.xlane.xlu0 %4489
    %v4491 = vsel %vm212, %v4483, 0.0
    %4492 = vadd.xlane.f32.xlu0 %v4491
    %v4493 = vpop.xlane.xlu0 %4492
    %v4494 = vsel %vm212, %v4484, 0.0
    %4495 = vadd.xlane.f32.xlu0 %v4494
    %v4496 = vpop.xlane.xlu0 %4495
    %v4497 = vsel %vm212, %v4485, 0.0
    %4498 = vadd.xlane.f32.xlu0 %v4497
    %v4499 = vpop.xlane.xlu0 %4498
    %v4500 = vmul.f32 %v4490, %v225
    %v4501 = vmul.f32 %v4493, %v225
    %v4502 = vmul.f32 %v4496, %v225
    %v4503 = vmul.f32 %v4499, %v225
    %v4504 = vsub.f32 %v4482, %v4500
    %v4505 = vsub.f32 %v4483, %v4501
    %v4506 = vsub.f32 %v4484, %v4502
    %v4507 = vsub.f32 %v4485, %v4503
    %v4508 = vmul.f32 %v4504, %v4504
    %v4509 = vmul.f32 %v4505, %v4505
    %v4510 = vmul.f32 %v4506, %v4506
    %v4511 = vmul.f32 %v4507, %v4507
    %v4512 = vsel %vm212, %v4508, 0.0
    %4513 = vadd.xlane.f32.xlu0 %v4512
    %v4514 = vpop.xlane.xlu0 %4513
    %v4515 = vsel %vm212, %v4509, 0.0
    %4516 = vadd.xlane.f32.xlu0 %v4515
    %v4517 = vpop.xlane.xlu0 %4516
    %v4518 = vsel %vm212, %v4510, 0.0
    %4519 = vadd.xlane.f32.xlu0 %v4518
    %v4520 = vpop.xlane.xlu0 %4519
    %v4521 = vsel %vm212, %v4511, 0.0
    %4522 = vadd.xlane.f32.xlu0 %v4521
    %v4523 = vpop.xlane.xlu0 %4522
    %v4524 = vmul.f32 %v4514, %v225
    %v4525 = vmul.f32 %v4517, %v225
    %v4526 = vmul.f32 %v4520, %v225
    %v4527 = vmul.f32 %v4523, %v225
    %v4528 = vadd.f32 %v4524, 1e-05
    %v4529 = vadd.f32 %v4525, 1e-05
    %v4530 = vadd.f32 %v4526, 1e-05
    %v4531 = vadd.f32 %v4527, 1e-05
    %v4532 = vrsqrt.pop %v4528
    %v4533 = vrsqrt.pop %v4529
    %v4534 = vrsqrt.pop %v4530
    %v4535 = vrsqrt.pop %v4531
    %v4536 = vmul.f32 %v4504, %v4532
    %v4537 = vmul.f32 %v4505, %v4533
    %v4538 = vmul.f32 %v4506, %v4534
    %v4539 = vmul.f32 %v4507, %v4535
    %v4540 = vmul.f32 %v4536, %v4486
    %v4541 = vmul.f32 %v4537, %v4486
    %v4542 = vmul.f32 %v4538, %v4486
    %v4543 = vmul.f32 %v4539, %v4486
    %v4544 = vadd.f32 %v4540, %v4487
    %v4545 = vadd.f32 %v4541, %v4487
    %v4546 = vadd.f32 %v4542, %v4487
    %v4547 = vadd.f32 %v4543, %v4487
    %v4548 = vpack.c.bf16 %v4545, %v4544
    %v4549 = vpack.c.bf16 %v4547, %v4546
    %v4550 = vld [vmem:[%s6] sm:$0xf]
    %v4551 = vld [vmem:[%s6 + $0x4] sm:$0xf]
    %v4552 = vld [vmem:[%s6 + $0x8] sm:$0xf]
    %v4553 = vld [vmem:[%s6 + $0xc] sm:$0xf]
    %v4554 = vld [vmem:[%s6 + $0x10] sm:$0xf]
    %v4555 = vld [vmem:[%s6 + $0x14] sm:$0xf]
    %v4556 = vld [vmem:[%s6 + $0x18] sm:$0xf]
    %v4557 = vld [vmem:[%s6 + $0x1c] sm:$0xf]
    %v4558 = vld [vmem:[%s7 + $0x20] ss:$0 sm:$0xff]
    %v4567 = vunpack.c.l.b16 %v4550
    %v4568 = vunpack.c.l.b16 %v4551
    %v4569 = vunpack.c.l.b16 %v4552
    %v4570 = vunpack.c.l.b16 %v4553
    %v4571 = vunpack.c.l.b16 %v4554
    %v4572 = vunpack.c.l.b16 %v4555
    %v4573 = vunpack.c.l.b16 %v4556
    %v4574 = vunpack.c.l.b16 %v4557
    %v4575 = vpack.c.b16 %v4568, %v4567
    %v4576 = vpack.c.b16 %v4570, %v4569
    %v4577 = vpack.c.b16 %v4572, %v4571
    %v4578 = vpack.c.b16 %v4574, %v4573
    %v4584 = vsel %vm212, %v4548, 0
    %v4587 = vsel %vm212, %v4549, 0
    %4589 = vmatprep.subr.bf16.mxu0 0
    %4590 = vmatpush1.bf16.msra.mxu0 0
    %4591 = vmatprep.subr.bf16.mxu0 0
    %4592 = vmatpush1.bf16.msra.mxu0 0
    %4593 = vmatprep.subr.bf16.mxu0 0
    %4594 = vmatpush1.bf16.msra.mxu0 0
    %4595 = vmatprep.subr.bf16.mxu0 0
    %4596 = vmatpush1.bf16.msra.mxu0 0
    %4597 = vmatprep.subr.bf16.mxu0 0
    %4598 = vmatpush1.bf16.msra.mxu0 %v4578
    %4599 = vmatprep.subr.bf16.mxu0 0
    %4600 = vmatpush1.bf16.msra.mxu0 %v4577
    %4601 = vmatprep.subr.bf16.mxu0 0
    %4602 = vmatpush1.bf16.msra.mxu0 %v4576
    %4603 = vmatprep.subr.bf16.mxu0 0
    %4604 = vmatpush1.bf16.msra.mxu0 %v4575
    %4605 = vmatprep.subr.bf16.mxu0 0
    %4606 = vmatpush2.bf16.msra.mxu0 0
    %4607 = vmatprep.subr.bf16.mxu0 0
    %4608 = vmatpush2.bf16.msra.mxu0 0
    %4609 = vmatprep.subr.bf16.mxu0 0
    %4610 = vmatpush2.bf16.msra.mxu0 0
    %4611 = vmatprep.subr.bf16.mxu0 0
    %4612 = vmatpush2.bf16.msra.mxu0 0
    %4613 = vmatprep.subr.bf16.mxu0 0
    %4614 = vmatpush2.bf16.msra.mxu0 0
    %4615 = vmatprep.subr.bf16.mxu0 0
    %4616 = vmatpush2.bf16.msra.mxu0 0
    %4617 = vmatprep.subr.bf16.mxu0 0
    %4618 = vmatpush2.bf16.msra.mxu0 0
    %4619 = vmatprep.subr.bf16.mxu0 0
    %4620 = vmatpush2.bf16.msra.mxu0 0
    %4621 = vmatprep.mubr.bf16.mxu0 0
    %4622 = vmatmul.mubr.bf16.gmra.mxu0 %v4584
    %v4623 = vpop.f32.mrf.mxu0
    %v4624 = vadd.f32 %v4558, %v4623
    %v4625 = vpop.f32.mrf.mxu0
    %v4626 = vpop.f32.mrf.mxu0
    %v4627 = vadd.f32 %v4558, %v4626
    %v4628 = vpop.f32.mrf.mxu0
    %4629 = vmatprep.mubr.bf16.mxu0 0
    %4630 = vmatmul.mubr.bf16.gmra.mxu0 %v4587
    %v4631 = vpop.f32.mrf.mxu0
    %v4632 = vadd.f32 %v4558, %v4631
    %v4633 = vpop.f32.mrf.mxu0
    %v4634 = vpop.f32.mrf.mxu0
    %v4635 = vadd.f32 %v4558, %v4634
    %v4636 = vpop.f32.mrf.mxu0
    %4637 = vdwg.mxu0
    %4638 = vst [vmem:[#allocation2] sm:$0xff] %v4624
    %4639 = vst [vmem:[#allocation2 + $0x8] sm:$0xff] %v4627
    %4640 = vst [vmem:[#allocation2 + $0x10] sm:$0xff] %v4632
    %4641 = vst [vmem:[#allocation2 + $0x18] sm:$0xff] %v4635
    // Predicated region
    $region34: #{gpt_forward.1} parent=1 // pred_check
      _
    $region35: #{gpt_forward.1} parent=1 // pred_check_branch
      %4643 = sbr.rel (0) target = $region37
    $region36: #{gpt_forward.1} parent=1 // pred_region
      %s4645 = ssub.s32 512, 512
      %4646 = vsyncadd [#allocation3], %s4645
      %s4647 = sshll.u32 [#allocation2], 4
      %s4648 = int_to_ptr.vmem [resolvable:$true] %s4647
      %4653 = dma.vmem_to_hbm [thread:$0]  %s4648, 512, %s8, [#allocation3], 128, 128, 8
    $region37: #{gpt_forward.1} parent=1 // pred_fallthru
      _
    // Predicated region
    $region38: #{gpt_forward.1} parent=1 // pred_check
      _
    $region39: #{gpt_forward.1} parent=1 // pred_check_branch
      %4655 = sbr.rel (0) target = $region41
    $region40: #{gpt_forward.1} parent=1 // pred_region
      %4656 = dma.done [#allocation3], 512
    $region41: #{gpt_forward.1} parent=1 // pred_fallthru
      _
    %4657 = vsyncpa [#allocation3], 1

</llo_original>
